<compile_context>
chip_gen: v7x
topology: tpu7x:2x2x1
jax: 0.10.0
libtpu: 0.0.40
codegen_flags: <defaults>
</compile_context>

<pallas_src>
import functools

import jax
import jax.numpy as jnp
import numpy as np
from jax import lax
from jax.experimental import pallas as pl
from jax.experimental.pallas import tpu as pltpu


def _round_up(x, m):
    return (x + m - 1) // m * m


def _make_kernel(num_layers, T, Bp, H, Gp):
    n_in = 4 + 3 * (num_layers - 1) + 2  # x, w_ih0, w_hh0, b0, per-layer(w_ih,w_hh,b), w_fc, b_fc

    def kernel(*refs):
        x_ref = refs[0]                      # (T*Bp, D)
        w_ih0_ref = refs[1]                  # (D,  Gp)  packed gate columns [i|f|g|o]
        w_hh0_ref = refs[2]                  # (H,  Gp)
        b0_ref = refs[3]                     # (1,  Gp)  (b_ih + b_hh, layer 0)
        layer_refs = refs[4:4 + 3 * (num_layers - 1)]
        w_fc_ref = refs[n_in - 2]            # (H,  Cp)
        b_fc_ref = refs[n_in - 1]            # (1,  Cp)
        out_ref = refs[n_in]                 # (T*Bp, Cp)
        xproj_ref = refs[n_in + 1]           # scratch (T*Bp, Gp)
        seq_ref = refs[n_in + 2]             # scratch (T*Bp, H)

        # Layer-0 input projection for ALL timesteps: one MXU dot, bias folded in.
        xproj_ref[...] = (
            jnp.dot(x_ref[...], w_ih0_ref[...], preferred_element_type=jnp.float32)
            + b0_ref[...]
        )

        # Static lane mask selecting the g-gate lanes of the packed [i|f|g|o] vector.
        lane = lax.broadcasted_iota(jnp.int32, (Bp, Gp), 1)
        is_g = (lane >= 2 * H) & (lane < 3 * H)

        def cell(gates, c_prev):
            # One sigmoid pass + one tanh pass over the packed 128-lane gate vreg,
            # then realign the 32-lane gate groups via static lane slices (XLU).
            acts = jnp.where(is_g, jnp.tanh(gates), jax.nn.sigmoid(gates))
            i_a = acts[:, 0 * H:1 * H]
            f_a = acts[:, 1 * H:2 * H]
            g_a = acts[:, 2 * H:3 * H]
            o_a = acts[:, 3 * H:4 * H]
            c_new = f_a * c_prev + i_a * g_a
            h_new = o_a * jnp.tanh(c_new)
            return h_new, c_new

        zeros = jnp.zeros((Bp, H), jnp.float32)
        init = tuple(zeros for _ in range(2 * num_layers))  # h0, c0, h1, c1, ...

        def body(t, carry):
            hs = list(carry[0::2])
            cs = list(carry[1::2])
            row = pl.multiple_of(t * Bp, Bp)  # sublane-aligned timestep offset

            # Layer 0: x-projection precomputed; only the recurrent dot per step.
            # Weights are read from VMEM at the use site (not hoisted to SSA).
            gates = xproj_ref[pl.ds(row, Bp), :] + jnp.dot(
                hs[0], w_hh0_ref[...], preferred_element_type=jnp.float32)
            hs[0], cs[0] = cell(gates, cs[0])
            inp = hs[0]

            # Layers > 0: two dots accumulated into the same f32 value (no concat).
            for l in range(1, num_layers):
                w_ih_ref = layer_refs[3 * (l - 1) + 0]
                w_hh_ref = layer_refs[3 * (l - 1) + 1]
                b_ref = layer_refs[3 * (l - 1) + 2]
                gates = (
                    jnp.dot(inp, w_ih_ref[...], preferred_element_type=jnp.float32)
                    + jnp.dot(hs[l], w_hh_ref[...], preferred_element_type=jnp.float32)
                    + b_ref[...]
                )
                hs[l], cs[l] = cell(gates, cs[l])
                inp = hs[l]

            seq_ref[pl.ds(row, Bp), :] = inp

            new_carry = []
            for h, c in zip(hs, cs):
                new_carry.extend([h, c])
            return tuple(new_carry)

        # Fully unrolled recurrence (T small & static): h/c stay in vregs and the
        # LLO scheduler can overlap adjacent steps' MXU/EUP latencies.
        lax.fori_loop(0, T, body, init, unroll=True)

        # Final fc over the whole sequence: one dot, lane-dense (Cp=128) store.
        out_ref[...] = (
            jnp.dot(seq_ref[...], w_fc_ref[...], preferred_element_type=jnp.float32)
            + b_fc_ref[...]
        )

    return kernel


def simple_lstm_forward(x, params, *, num_layers, hidden_size, num_classes):
    """x: (B, T, input_size) float32, batch_first like the PyTorch module."""
    B, T, D = x.shape
    H = hidden_size
    C = num_classes
    Gp = _round_up(4 * H, 128)   # packed gate width (== 128 for H=32: no padding)
    Cp = _round_up(C, 128)       # lane-dense logits width
    Bp = _round_up(B, 8)         # f32 sublane tile

    # Time-major, batch padded to the sublane tile, flattened to (T*Bp, D).
    x_tm = jnp.transpose(x, (1, 0, 2))                              # (T, B, D)
    if Bp != B:
        x_tm = jnp.pad(x_tm, ((0, 0), (0, Bp - B), (0, 0)))
    x_flat = x_tm.reshape(T * Bp, D)

    def pack(w_t):
        # (K, 4H) packed gate columns [i|f|g|o] -> (K, Gp) (trailing zero pad only).
        K, G = w_t.shape
        return jnp.pad(w_t, ((0, 0), (0, Gp - G))) if Gp != G else w_t

    w_ih0, w_hh0, b_ih0, b_hh0 = params["lstm"][0]
    inputs = [
        x_flat,
        pack(w_ih0.T),                                   # (D, Gp)
        pack(w_hh0.T),                                   # (H, Gp)
        pack((b_ih0 + b_hh0).reshape(1, 4 * H)),         # (1, Gp)
    ]
    for layer in range(1, num_layers):
        w_ih, w_hh, b_ih, b_hh = params["lstm"][layer]
        inputs.extend([
            pack(w_ih.T),                                # (H, Gp)
            pack(w_hh.T),                                # (H, Gp)
            pack((b_ih + b_hh).reshape(1, 4 * H)),       # (1, Gp)
        ])
    w_fc, b_fc = params["fc"]
    inputs.append(jnp.pad(w_fc.T, ((0, 0), (0, Cp - C))))            # (H, Cp)
    inputs.append(jnp.pad(b_fc.reshape(1, C), ((0, 0), (0, Cp - C))))  # (1, Cp)

    kernel = _make_kernel(num_layers, T, Bp, H, Gp)
    vmem_spec = pl.BlockSpec(memory_space=pltpu.MemorySpace.VMEM)

    logits = pl.pallas_call(
        kernel,
        out_shape=jax.ShapeDtypeStruct((T * Bp, Cp), jnp.float32),
        in_specs=[vmem_spec] * len(inputs),
        out_specs=vmem_spec,
        scratch_shapes=[
            pltpu.VMEM((T * Bp, Gp), jnp.float32),   # layer-0 x-projection
            pltpu.VMEM((T * Bp, H), jnp.float32),    # top-layer hidden states
        ],
    )(*inputs)

    out = logits.reshape(T, Bp, Cp)                                  # (T, Bp, Cp)
    return jnp.transpose(out, (1, 0, 2))[:B, :, :C]                  # (B, T, C)


def init_params(key, input_size, hidden_size, num_layers, num_classes):
    """Deterministic init mirroring nn.LSTM / nn.Linear parameter shapes (PyTorch layout)."""
    H = hidden_size
    bound = 1.0 / np.sqrt(H)
    params = {"lstm": [], "fc": None}
    for layer in range(num_layers):
        d_in = input_size if layer == 0 else H
        key, k1, k2, k3, k4 = jax.random.split(key, 5)
        w_ih = jax.random.uniform(k1, (4 * H, d_in), jnp.float32, -bound, bound)
        w_hh = jax.random.uniform(k2, (4 * H, H), jnp.float32, -bound, bound)
        b_ih = jax.random.uniform(k3, (4 * H,), jnp.float32, -bound, bound)
        b_hh = jax.random.uniform(k4, (4 * H,), jnp.float32, -bound, bound)
        params["lstm"].append((w_ih, w_hh, b_ih, b_hh))
    key, k1, k2 = jax.random.split(key, 3)
    w_fc = jax.random.uniform(k1, (num_classes, H), jnp.float32, -bound, bound)
    b_fc = jax.random.uniform(k2, (num_classes,), jnp.float32, -bound, bound)
    params["fc"] = (w_fc, b_fc)
    return params


def simple_lstm_reference(x, params, *, num_layers, hidden_size, num_classes):
    """Pure-JAX reference (same math as PyTorch nn.LSTM + nn.Linear, zero initial state)."""
    B, T, D = x.shape
    H = hidden_size
    h = [jnp.zeros((B, H), jnp.float32) for _ in range(num_layers)]
    c = [jnp.zeros((B, H), jnp.float32) for _ in range(num_layers)]
    outs = []
    for t in range(T):
        inp = x[:, t, :]
        for layer in range(num_layers):
            w_ih, w_hh, b_ih, b_hh = params["lstm"][layer]
            gates = inp @ w_ih.T + h[layer] @ w_hh.T + b_ih + b_hh
            i_g = jax.nn.sigmoid(gates[:, 0 * H:1 * H])
            f_g = jax.nn.sigmoid(gates[:, 1 * H:2 * H])
            g_g = jnp.tanh(gates[:, 2 * H:3 * H])
            o_g = jax.nn.sigmoid(gates[:, 3 * H:4 * H])
            c[layer] = f_g * c[layer] + i_g * g_g
            h[layer] = o_g * jnp.tanh(c[layer])
            inp = h[layer]
        outs.append(inp)
    seq = jnp.stack(outs, axis=1)  # (B, T, H)
    w_fc, b_fc = params["fc"]
    return seq @ w_fc.T + b_fc


if __name__ == "__main__":
    B, T = 2, 8
    input_size, hidden_size, num_layers, num_classes = 16, 32, 2, 10

    key = jax.random.PRNGKey(0)
    key, xk = jax.random.split(key)
    x = jax.random.normal(xk, (B, T, input_size), jnp.float32)

    params = init_params(key, input_size, hidden_size, num_layers, num_classes)

    fwd = jax.jit(
        functools.partial(
            simple_lstm_forward,
            num_layers=num_layers,
            hidden_size=hidden_size,
            num_classes=num_classes,
        )
    )
    out = fwd(x, params)
    jax.block_until_ready(out)

    ref = simple_lstm_reference(
        x, params,
        num_layers=num_layers, hidden_size=hidden_size, num_classes=num_classes,
    )
    np.testing.assert_allclose(np.asarray(out), np.asarray(ref), rtol=1e-4, atol=5e-4)
    assert out.shape == (B, T, num_classes)
    print("KERNEL_OK")
</pallas_src>

<mosaic_0001>
module attributes {stable_mosaic.version = 11 : i64} {
  func.func @kernel(%arg0: memref<64x16xf32, #tpu.memory_space<vmem>>, %arg1: memref<16x128xf32, #tpu.memory_space<vmem>>, %arg2: memref<32x128xf32, #tpu.memory_space<vmem>>, %arg3: memref<1x128xf32, #tpu.memory_space<vmem>>, %arg4: memref<32x128xf32, #tpu.memory_space<vmem>>, %arg5: memref<32x128xf32, #tpu.memory_space<vmem>>, %arg6: memref<1x128xf32, #tpu.memory_space<vmem>>, %arg7: memref<32x128xf32, #tpu.memory_space<vmem>>, %arg8: memref<1x128xf32, #tpu.memory_space<vmem>>, %arg9: memref<64x128xf32, #tpu.memory_space<vmem>>, %arg10: memref<64x128xf32, #tpu.memory_space<vmem>>, %arg11: memref<64x32xf32, #tpu.memory_space<vmem>>) attributes {dimension_semantics = [], scalar_prefetch = 0 : i64, scratch_operands = 2 : i64, tpu.core_type = #tpu.core_type<tc>} {
    %c0 = arith.constant 0 : index
    %c0_0 = arith.constant 0 : index
    %0 = vector.load %arg0[%c0, %c0_0] : memref<64x16xf32, #tpu.memory_space<vmem>>, vector<64x16xf32>
    %c0_1 = arith.constant 0 : index
    %c0_2 = arith.constant 0 : index
    %1 = vector.load %arg1[%c0_1, %c0_2] : memref<16x128xf32, #tpu.memory_space<vmem>>, vector<16x128xf32>
    %cst = arith.constant dense<0.000000e+00> : vector<64x128xf32>
    %2 = tpu.matmul %0, %1, %cst {dimension_numbers = #tpu.dot_dimension_numbers<[1], [0], [0], [1], [0, 0, 1, 1], [], []>} : vector<64x16xf32>, vector<16x128xf32>, vector<64x128xf32> -> vector<64x128xf32>
    %c0_3 = arith.constant 0 : index
    %c0_4 = arith.constant 0 : index
    %3 = vector.load %arg3[%c0_3, %c0_4] : memref<1x128xf32, #tpu.memory_space<vmem>>, vector<1x128xf32>
    %4 = vector.broadcast %3 : vector<1x128xf32> to vector<64x128xf32>
    %5 = arith.addf %2, %4 : vector<64x128xf32>
    %c0_5 = arith.constant 0 : index
    %c0_6 = arith.constant 0 : index
    %6 = vector.load %arg10[%c0_5, %c0_6] : memref<64x128xf32, #tpu.memory_space<vmem>>, vector<64x128xf32>
    tpu.vector_store %arg10[%c0_5, %c0_6], %5 {strides = array<i32>} : memref<64x128xf32, #tpu.memory_space<vmem>>, vector<64x128xf32>,
    %7 = tpu.iota {dimensions = array<i32: 1>} : vector<8x128xi32>
    %c64_i32 = arith.constant 64 : i32
    %8 = vector.broadcast %c64_i32 : i32 to vector<8x128xi32>
    %9 = arith.cmpi sge, %7, %8 : vector<8x128xi32>
    %c96_i32 = arith.constant 96 : i32
    %10 = vector.broadcast %c96_i32 : i32 to vector<8x128xi32>
    %11 = arith.cmpi slt, %7, %10 : vector<8x128xi32>
    %12 = arith.andi %9, %11 : vector<8x128xi1>
    %cst_7 = arith.constant 0.000000e+00 : f32
    %13 = vector.broadcast %cst_7 : f32 to vector<8x32xf32>
    %c0_i32 = arith.constant 0 : i32
    %c8_i32 = arith.constant 8 : i32
    %14 = arith.muli %c0_i32, %c8_i32 : i32
    %15 = tpu.assume_multiple %14, 8 : i32
    %16 = arith.index_cast %15 : i32 to index
    %c0_8 = arith.constant 0 : index
    %17 = vector.load %arg10[%16, %c0_8] : memref<64x128xf32, #tpu.memory_space<vmem>>, vector<8x128xf32>
    %c0_9 = arith.constant 0 : index
    %c0_10 = arith.constant 0 : index
    %18 = vector.load %arg2[%c0_9, %c0_10] : memref<32x128xf32, #tpu.memory_space<vmem>>, vector<32x128xf32>
    %cst_11 = arith.constant dense<0.000000e+00> : vector<8x128xf32>
    %19 = tpu.matmul %13, %18, %cst_11 {dimension_numbers = #tpu.dot_dimension_numbers<[1], [0], [0], [1], [0, 0, 1, 1], [], []>} : vector<8x32xf32>, vector<32x128xf32>, vector<8x128xf32> -> vector<8x128xf32>
    %20 = arith.addf %17, %19 : vector<8x128xf32>
    %21 = math.tanh %20 : vector<8x128xf32>
    %22 = arith.negf %20 : vector<8x128xf32>
    %23 = math.exp %22 : vector<8x128xf32>
    %cst_12 = arith.constant 1.000000e+00 : f32
    %24 = vector.broadcast %cst_12 : f32 to vector<8x128xf32>
    %25 = arith.addf %24, %23 : vector<8x128xf32>
    %26 = arith.divf %24, %25 : vector<8x128xf32>
    %27 = arith.select %12, %21, %26 : vector<8x128xi1>, vector<8x128xf32>
    %28 = vector.extract_strided_slice %27 {offsets = [0, 0], sizes = [8, 32], strides = [1, 1]} : vector<8x128xf32> to vector<8x32xf32>
    %29 = vector.extract_strided_slice %27 {offsets = [0, 32], sizes = [8, 32], strides = [1, 1]} : vector<8x128xf32> to vector<8x32xf32>
    %30 = vector.extract_strided_slice %27 {offsets = [0, 64], sizes = [8, 32], strides = [1, 1]} : vector<8x128xf32> to vector<8x32xf32>
    %31 = vector.extract_strided_slice %27 {offsets = [0, 96], sizes = [8, 32], strides = [1, 1]} : vector<8x128xf32> to vector<8x32xf32>
    %32 = arith.mulf %29, %13 : vector<8x32xf32>
    %33 = arith.mulf %28, %30 : vector<8x32xf32>
    %34 = arith.addf %32, %33 : vector<8x32xf32>
    %35 = math.tanh %34 : vector<8x32xf32>
    %36 = arith.mulf %31, %35 : vector<8x32xf32>
    %c0_13 = arith.constant 0 : index
    %c0_14 = arith.constant 0 : index
    %37 = vector.load %arg4[%c0_13, %c0_14] : memref<32x128xf32, #tpu.memory_space<vmem>>, vector<32x128xf32>
    %cst_15 = arith.constant dense<0.000000e+00> : vector<8x128xf32>
    %38 = tpu.matmul %36, %37, %cst_15 {dimension_numbers = #tpu.dot_dimension_numbers<[1], [0], [0], [1], [0, 0, 1, 1], [], []>} : vector<8x32xf32>, vector<32x128xf32>, vector<8x128xf32> -> vector<8x128xf32>
    %c0_16 = arith.constant 0 : index
    %c0_17 = arith.constant 0 : index
    %39 = vector.load %arg5[%c0_16, %c0_17] : memref<32x128xf32, #tpu.memory_space<vmem>>, vector<32x128xf32>
    %cst_18 = arith.constant dense<0.000000e+00> : vector<8x128xf32>
    %40 = tpu.matmul %13, %39, %cst_18 {dimension_numbers = #tpu.dot_dimension_numbers<[1], [0], [0], [1], [0, 0, 1, 1], [], []>} : vector<8x32xf32>, vector<32x128xf32>, vector<8x128xf32> -> vector<8x128xf32>
    %41 = arith.addf %38, %40 : vector<8x128xf32>
    %c0_19 = arith.constant 0 : index
    %c0_20 = arith.constant 0 : index
    %42 = vector.load %arg6[%c0_19, %c0_20] : memref<1x128xf32, #tpu.memory_space<vmem>>, vector<1x128xf32>
    %43 = vector.broadcast %42 : vector<1x128xf32> to vector<8x128xf32>
    %44 = arith.addf %41, %43 : vector<8x128xf32>
    %45 = math.tanh %44 : vector<8x128xf32>
    %46 = arith.negf %44 : vector<8x128xf32>
    %47 = math.exp %46 : vector<8x128xf32>
    %cst_21 = arith.constant 1.000000e+00 : f32
    %48 = vector.broadcast %cst_21 : f32 to vector<8x128xf32>
    %49 = arith.addf %48, %47 : vector<8x128xf32>
    %50 = arith.divf %48, %49 : vector<8x128xf32>
    %51 = arith.select %12, %45, %50 : vector<8x128xi1>, vector<8x128xf32>
    %52 = vector.extract_strided_slice %51 {offsets = [0, 0], sizes = [8, 32], strides = [1, 1]} : vector<8x128xf32> to vector<8x32xf32>
    %53 = vector.extract_strided_slice %51 {offsets = [0, 32], sizes = [8, 32], strides = [1, 1]} : vector<8x128xf32> to vector<8x32xf32>
    %54 = vector.extract_strided_slice %51 {offsets = [0, 64], sizes = [8, 32], strides = [1, 1]} : vector<8x128xf32> to vector<8x32xf32>
    %55 = vector.extract_strided_slice %51 {offsets = [0, 96], sizes = [8, 32], strides = [1, 1]} : vector<8x128xf32> to vector<8x32xf32>
    %56 = arith.mulf %53, %13 : vector<8x32xf32>
    %57 = arith.mulf %52, %54 : vector<8x32xf32>
    %58 = arith.addf %56, %57 : vector<8x32xf32>
    %59 = math.tanh %58 : vector<8x32xf32>
    %60 = arith.mulf %55, %59 : vector<8x32xf32>
    %61 = arith.index_cast %15 : i32 to index
    %c0_22 = arith.constant 0 : index
    %62 = vector.load %arg11[%61, %c0_22] : memref<64x32xf32, #tpu.memory_space<vmem>>, vector<8x32xf32>
    tpu.vector_store %arg11[%61, %c0_22], %60 {strides = array<i32>} : memref<64x32xf32, #tpu.memory_space<vmem>>, vector<8x32xf32>,
    %c1_i32 = arith.constant 1 : i32
    %c8_i32_23 = arith.constant 8 : i32
    %63 = arith.muli %c1_i32, %c8_i32_23 : i32
    %64 = tpu.assume_multiple %63, 8 : i32
    %65 = arith.index_cast %64 : i32 to index
    %c0_24 = arith.constant 0 : index
    %66 = vector.load %arg10[%65, %c0_24] : memref<64x128xf32, #tpu.memory_space<vmem>>, vector<8x128xf32>
    %c0_25 = arith.constant 0 : index
    %c0_26 = arith.constant 0 : index
    %67 = vector.load %arg2[%c0_25, %c0_26] : memref<32x128xf32, #tpu.memory_space<vmem>>, vector<32x128xf32>
    %cst_27 = arith.constant dense<0.000000e+00> : vector<8x128xf32>
    %68 = tpu.matmul %36, %67, %cst_27 {dimension_numbers = #tpu.dot_dimension_numbers<[1], [0], [0], [1], [0, 0, 1, 1], [], []>} : vector<8x32xf32>, vector<32x128xf32>, vector<8x128xf32> -> vector<8x128xf32>
    %69 = arith.addf %66, %68 : vector<8x128xf32>
    %70 = math.tanh %69 : vector<8x128xf32>
    %71 = arith.negf %69 : vector<8x128xf32>
    %72 = math.exp %71 : vector<8x128xf32>
    %cst_28 = arith.constant 1.000000e+00 : f32
    %73 = vector.broadcast %cst_28 : f32 to vector<8x128xf32>
    %74 = arith.addf %73, %72 : vector<8x128xf32>
    %75 = arith.divf %73, %74 : vector<8x128xf32>
    %76 = arith.select %12, %70, %75 : vector<8x128xi1>, vector<8x128xf32>
    %77 = vector.extract_strided_slice %76 {offsets = [0, 0], sizes = [8, 32], strides = [1, 1]} : vector<8x128xf32> to vector<8x32xf32>
    %78 = vector.extract_strided_slice %76 {offsets = [0, 32], sizes = [8, 32], strides = [1, 1]} : vector<8x128xf32> to vector<8x32xf32>
    %79 = vector.extract_strided_slice %76 {offsets = [0, 64], sizes = [8, 32], strides = [1, 1]} : vector<8x128xf32> to vector<8x32xf32>
    %80 = vector.extract_strided_slice %76 {offsets = [0, 96], sizes = [8, 32], strides = [1, 1]} : vector<8x128xf32> to vector<8x32xf32>
    %81 = arith.mulf %78, %34 : vector<8x32xf32>
    %82 = arith.mulf %77, %79 : vector<8x32xf32>
    %83 = arith.addf %81, %82 : vector<8x32xf32>
    %84 = math.tanh %83 : vector<8x32xf32>
    %85 = arith.mulf %80, %84 : vector<8x32xf32>
    %c0_29 = arith.constant 0 : index
    %c0_30 = arith.constant 0 : index
    %86 = vector.load %arg4[%c0_29, %c0_30] : memref<32x128xf32, #tpu.memory_space<vmem>>, vector<32x128xf32>
    %cst_31 = arith.constant dense<0.000000e+00> : vector<8x128xf32>
    %87 = tpu.matmul %85, %86, %cst_31 {dimension_numbers = #tpu.dot_dimension_numbers<[1], [0], [0], [1], [0, 0, 1, 1], [], []>} : vector<8x32xf32>, vector<32x128xf32>, vector<8x128xf32> -> vector<8x128xf32>
    %c0_32 = arith.constant 0 : index
    %c0_33 = arith.constant 0 : index
    %88 = vector.load %arg5[%c0_32, %c0_33] : memref<32x128xf32, #tpu.memory_space<vmem>>, vector<32x128xf32>
    %cst_34 = arith.constant dense<0.000000e+00> : vector<8x128xf32>
    %89 = tpu.matmul %60, %88, %cst_34 {dimension_numbers = #tpu.dot_dimension_numbers<[1], [0], [0], [1], [0, 0, 1, 1], [], []>} : vector<8x32xf32>, vector<32x128xf32>, vector<8x128xf32> -> vector<8x128xf32>
    %90 = arith.addf %87, %89 : vector<8x128xf32>
    %c0_35 = arith.constant 0 : index
    %c0_36 = arith.constant 0 : index
    %91 = vector.load %arg6[%c0_35, %c0_36] : memref<1x128xf32, #tpu.memory_space<vmem>>, vector<1x128xf32>
    %92 = vector.broadcast %91 : vector<1x128xf32> to vector<8x128xf32>
    %93 = arith.addf %90, %92 : vector<8x128xf32>
    %94 = math.tanh %93 : vector<8x128xf32>
    %95 = arith.negf %93 : vector<8x128xf32>
    %96 = math.exp %95 : vector<8x128xf32>
    %cst_37 = arith.constant 1.000000e+00 : f32
    %97 = vector.broadcast %cst_37 : f32 to vector<8x128xf32>
    %98 = arith.addf %97, %96 : vector<8x128xf32>
    %99 = arith.divf %97, %98 : vector<8x128xf32>
    %100 = arith.select %12, %94, %99 : vector<8x128xi1>, vector<8x128xf32>
    %101 = vector.extract_strided_slice %100 {offsets = [0, 0], sizes = [8, 32], strides = [1, 1]} : vector<8x128xf32> to vector<8x32xf32>
    %102 = vector.extract_strided_slice %100 {offsets = [0, 32], sizes = [8, 32], strides = [1, 1]} : vector<8x128xf32> to vector<8x32xf32>
    %103 = vector.extract_strided_slice %100 {offsets = [0, 64], sizes = [8, 32], strides = [1, 1]} : vector<8x128xf32> to vector<8x32xf32>
    %104 = vector.extract_strided_slice %100 {offsets = [0, 96], sizes = [8, 32], strides = [1, 1]} : vector<8x128xf32> to vector<8x32xf32>
    %105 = arith.mulf %102, %58 : vector<8x32xf32>
    %106 = arith.mulf %101, %103 : vector<8x32xf32>
    %107 = arith.addf %105, %106 : vector<8x32xf32>
    %108 = math.tanh %107 : vector<8x32xf32>
    %109 = arith.mulf %104, %108 : vector<8x32xf32>
    %110 = arith.index_cast %64 : i32 to index
    %c0_38 = arith.constant 0 : index
    %111 = vector.load %arg11[%110, %c0_38] : memref<64x32xf32, #tpu.memory_space<vmem>>, vector<8x32xf32>
    tpu.vector_store %arg11[%110, %c0_38], %109 {strides = array<i32>} : memref<64x32xf32, #tpu.memory_space<vmem>>, vector<8x32xf32>,
    %c2_i32 = arith.constant 2 : i32
    %c8_i32_39 = arith.constant 8 : i32
    %112 = arith.muli %c2_i32, %c8_i32_39 : i32
    %113 = tpu.assume_multiple %112, 8 : i32
    %114 = arith.index_cast %113 : i32 to index
    %c0_40 = arith.constant 0 : index
    %115 = vector.load %arg10[%114, %c0_40] : memref<64x128xf32, #tpu.memory_space<vmem>>, vector<8x128xf32>
    %c0_41 = arith.constant 0 : index
    %c0_42 = arith.constant 0 : index
    %116 = vector.load %arg2[%c0_41, %c0_42] : memref<32x128xf32, #tpu.memory_space<vmem>>, vector<32x128xf32>
    %cst_43 = arith.constant dense<0.000000e+00> : vector<8x128xf32>
    %117 = tpu.matmul %85, %116, %cst_43 {dimension_numbers = #tpu.dot_dimension_numbers<[1], [0], [0], [1], [0, 0, 1, 1], [], []>} : vector<8x32xf32>, vector<32x128xf32>, vector<8x128xf32> -> vector<8x128xf32>
    %118 = arith.addf %115, %117 : vector<8x128xf32>
    %119 = math.tanh %118 : vector<8x128xf32>
    %120 = arith.negf %118 : vector<8x128xf32>
    %121 = math.exp %120 : vector<8x128xf32>
    %cst_44 = arith.constant 1.000000e+00 : f32
    %122 = vector.broadcast %cst_44 : f32 to vector<8x128xf32>
    %123 = arith.addf %122, %121 : vector<8x128xf32>
    %124 = arith.divf %122, %123 : vector<8x128xf32>
    %125 = arith.select %12, %119, %124 : vector<8x128xi1>, vector<8x128xf32>
    %126 = vector.extract_strided_slice %125 {offsets = [0, 0], sizes = [8, 32], strides = [1, 1]} : vector<8x128xf32> to vector<8x32xf32>
    %127 = vector.extract_strided_slice %125 {offsets = [0, 32], sizes = [8, 32], strides = [1, 1]} : vector<8x128xf32> to vector<8x32xf32>
    %128 = vector.extract_strided_slice %125 {offsets = [0, 64], sizes = [8, 32], strides = [1, 1]} : vector<8x128xf32> to vector<8x32xf32>
    %129 = vector.extract_strided_slice %125 {offsets = [0, 96], sizes = [8, 32], strides = [1, 1]} : vector<8x128xf32> to vector<8x32xf32>
    %130 = arith.mulf %127, %83 : vector<8x32xf32>
    %131 = arith.mulf %126, %128 : vector<8x32xf32>
    %132 = arith.addf %130, %131 : vector<8x32xf32>
    %133 = math.tanh %132 : vector<8x32xf32>
    %134 = arith.mulf %129, %133 : vector<8x32xf32>
    %c0_45 = arith.constant 0 : index
    %c0_46 = arith.constant 0 : index
    %135 = vector.load %arg4[%c0_45, %c0_46] : memref<32x128xf32, #tpu.memory_space<vmem>>, vector<32x128xf32>
    %cst_47 = arith.constant dense<0.000000e+00> : vector<8x128xf32>
    %136 = tpu.matmul %134, %135, %cst_47 {dimension_numbers = #tpu.dot_dimension_numbers<[1], [0], [0], [1], [0, 0, 1, 1], [], []>} : vector<8x32xf32>, vector<32x128xf32>, vector<8x128xf32> -> vector<8x128xf32>
    %c0_48 = arith.constant 0 : index
    %c0_49 = arith.constant 0 : index
    %137 = vector.load %arg5[%c0_48, %c0_49] : memref<32x128xf32, #tpu.memory_space<vmem>>, vector<32x128xf32>
    %cst_50 = arith.constant dense<0.000000e+00> : vector<8x128xf32>
    %138 = tpu.matmul %109, %137, %cst_50 {dimension_numbers = #tpu.dot_dimension_numbers<[1], [0], [0], [1], [0, 0, 1, 1], [], []>} : vector<8x32xf32>, vector<32x128xf32>, vector<8x128xf32> -> vector<8x128xf32>
    %139 = arith.addf %136, %138 : vector<8x128xf32>
    %c0_51 = arith.constant 0 : index
    %c0_52 = arith.constant 0 : index
    %140 = vector.load %arg6[%c0_51, %c0_52] : memref<1x128xf32, #tpu.memory_space<vmem>>, vector<1x128xf32>
    %141 = vector.broadcast %140 : vector<1x128xf32> to vector<8x128xf32>
    %142 = arith.addf %139, %141 : vector<8x128xf32>
    %143 = math.tanh %142 : vector<8x128xf32>
    %144 = arith.negf %142 : vector<8x128xf32>
    %145 = math.exp %144 : vector<8x128xf32>
    %cst_53 = arith.constant 1.000000e+00 : f32
    %146 = vector.broadcast %cst_53 : f32 to vector<8x128xf32>
    %147 = arith.addf %146, %145 : vector<8x128xf32>
    %148 = arith.divf %146, %147 : vector<8x128xf32>
    %149 = arith.select %12, %143, %148 : vector<8x128xi1>, vector<8x128xf32>
    %150 = vector.extract_strided_slice %149 {offsets = [0, 0], sizes = [8, 32], strides = [1, 1]} : vector<8x128xf32> to vector<8x32xf32>
    %151 = vector.extract_strided_slice %149 {offsets = [0, 32], sizes = [8, 32], strides = [1, 1]} : vector<8x128xf32> to vector<8x32xf32>
    %152 = vector.extract_strided_slice %149 {offsets = [0, 64], sizes = [8, 32], strides = [1, 1]} : vector<8x128xf32> to vector<8x32xf32>
    %153 = vector.extract_strided_slice %149 {offsets = [0, 96], sizes = [8, 32], strides = [1, 1]} : vector<8x128xf32> to vector<8x32xf32>
    %154 = arith.mulf %151, %107 : vector<8x32xf32>
    %155 = arith.mulf %150, %152 : vector<8x32xf32>
    %156 = arith.addf %154, %155 : vector<8x32xf32>
    %157 = math.tanh %156 : vector<8x32xf32>
    %158 = arith.mulf %153, %157 : vector<8x32xf32>
    %159 = arith.index_cast %113 : i32 to index
    %c0_54 = arith.constant 0 : index
    %160 = vector.load %arg11[%159, %c0_54] : memref<64x32xf32, #tpu.memory_space<vmem>>, vector<8x32xf32>
    tpu.vector_store %arg11[%159, %c0_54], %158 {strides = array<i32>} : memref<64x32xf32, #tpu.memory_space<vmem>>, vector<8x32xf32>,
    %c3_i32 = arith.constant 3 : i32
    %c8_i32_55 = arith.constant 8 : i32
    %161 = arith.muli %c3_i32, %c8_i32_55 : i32
    %162 = tpu.assume_multiple %161, 8 : i32
    %163 = arith.index_cast %162 : i32 to index
    %c0_56 = arith.constant 0 : index
    %164 = vector.load %arg10[%163, %c0_56] : memref<64x128xf32, #tpu.memory_space<vmem>>, vector<8x128xf32>
    %c0_57 = arith.constant 0 : index
    %c0_58 = arith.constant 0 : index
    %165 = vector.load %arg2[%c0_57, %c0_58] : memref<32x128xf32, #tpu.memory_space<vmem>>, vector<32x128xf32>
    %cst_59 = arith.constant dense<0.000000e+00> : vector<8x128xf32>
    %166 = tpu.matmul %134, %165, %cst_59 {dimension_numbers = #tpu.dot_dimension_numbers<[1], [0], [0], [1], [0, 0, 1, 1], [], []>} : vector<8x32xf32>, vector<32x128xf32>, vector<8x128xf32> -> vector<8x128xf32>
    %167 = arith.addf %164, %166 : vector<8x128xf32>
    %168 = math.tanh %167 : vector<8x128xf32>
    %169 = arith.negf %167 : vector<8x128xf32>
    %170 = math.exp %169 : vector<8x128xf32>
    %cst_60 = arith.constant 1.000000e+00 : f32
    %171 = vector.broadcast %cst_60 : f32 to vector<8x128xf32>
    %172 = arith.addf %171, %170 : vector<8x128xf32>
    %173 = arith.divf %171, %172 : vector<8x128xf32>
    %174 = arith.select %12, %168, %173 : vector<8x128xi1>, vector<8x128xf32>
    %175 = vector.extract_strided_slice %174 {offsets = [0, 0], sizes = [8, 32], strides = [1, 1]} : vector<8x128xf32> to vector<8x32xf32>
    %176 = vector.extract_strided_slice %174 {offsets = [0, 32], sizes = [8, 32], strides = [1, 1]} : vector<8x128xf32> to vector<8x32xf32>
    %177 = vector.extract_strided_slice %174 {offsets = [0, 64], sizes = [8, 32], strides = [1, 1]} : vector<8x128xf32> to vector<8x32xf32>
    %178 = vector.extract_strided_slice %174 {offsets = [0, 96], sizes = [8, 32], strides = [1, 1]} : vector<8x128xf32> to vector<8x32xf32>
    %179 = arith.mulf %176, %132 : vector<8x32xf32>
    %180 = arith.mulf %175, %177 : vector<8x32xf32>
    %181 = arith.addf %179, %180 : vector<8x32xf32>
    %182 = math.tanh %181 : vector<8x32xf32>
    %183 = arith.mulf %178, %182 : vector<8x32xf32>
    %c0_61 = arith.constant 0 : index
    %c0_62 = arith.constant 0 : index
    %184 = vector.load %arg4[%c0_61, %c0_62] : memref<32x128xf32, #tpu.memory_space<vmem>>, vector<32x128xf32>
    %cst_63 = arith.constant dense<0.000000e+00> : vector<8x128xf32>
    %185 = tpu.matmul %183, %184, %cst_63 {dimension_numbers = #tpu.dot_dimension_numbers<[1], [0], [0], [1], [0, 0, 1, 1], [], []>} : vector<8x32xf32>, vector<32x128xf32>, vector<8x128xf32> -> vector<8x128xf32>
    %c0_64 = arith.constant 0 : index
    %c0_65 = arith.constant 0 : index
    %186 = vector.load %arg5[%c0_64, %c0_65] : memref<32x128xf32, #tpu.memory_space<vmem>>, vector<32x128xf32>
    %cst_66 = arith.constant dense<0.000000e+00> : vector<8x128xf32>
    %187 = tpu.matmul %158, %186, %cst_66 {dimension_numbers = #tpu.dot_dimension_numbers<[1], [0], [0], [1], [0, 0, 1, 1], [], []>} : vector<8x32xf32>, vector<32x128xf32>, vector<8x128xf32> -> vector<8x128xf32>
    %188 = arith.addf %185, %187 : vector<8x128xf32>
    %c0_67 = arith.constant 0 : index
    %c0_68 = arith.constant 0 : index
    %189 = vector.load %arg6[%c0_67, %c0_68] : memref<1x128xf32, #tpu.memory_space<vmem>>, vector<1x128xf32>
    %190 = vector.broadcast %189 : vector<1x128xf32> to vector<8x128xf32>
    %191 = arith.addf %188, %190 : vector<8x128xf32>
    %192 = math.tanh %191 : vector<8x128xf32>
    %193 = arith.negf %191 : vector<8x128xf32>
    %194 = math.exp %193 : vector<8x128xf32>
    %cst_69 = arith.constant 1.000000e+00 : f32
    %195 = vector.broadcast %cst_69 : f32 to vector<8x128xf32>
    %196 = arith.addf %195, %194 : vector<8x128xf32>
    %197 = arith.divf %195, %196 : vector<8x128xf32>
    %198 = arith.select %12, %192, %197 : vector<8x128xi1>, vector<8x128xf32>
    %199 = vector.extract_strided_slice %198 {offsets = [0, 0], sizes = [8, 32], strides = [1, 1]} : vector<8x128xf32> to vector<8x32xf32>
    %200 = vector.extract_strided_slice %198 {offsets = [0, 32], sizes = [8, 32], strides = [1, 1]} : vector<8x128xf32> to vector<8x32xf32>
    %201 = vector.extract_strided_slice %198 {offsets = [0, 64], sizes = [8, 32], strides = [1, 1]} : vector<8x128xf32> to vector<8x32xf32>
    %202 = vector.extract_strided_slice %198 {offsets = [0, 96], sizes = [8, 32], strides = [1, 1]} : vector<8x128xf32> to vector<8x32xf32>
    %203 = arith.mulf %200, %156 : vector<8x32xf32>
    %204 = arith.mulf %199, %201 : vector<8x32xf32>
    %205 = arith.addf %203, %204 : vector<8x32xf32>
    %206 = math.tanh %205 : vector<8x32xf32>
    %207 = arith.mulf %202, %206 : vector<8x32xf32>
    %208 = arith.index_cast %162 : i32 to index
    %c0_70 = arith.constant 0 : index
    %209 = vector.load %arg11[%208, %c0_70] : memref<64x32xf32, #tpu.memory_space<vmem>>, vector<8x32xf32>
    tpu.vector_store %arg11[%208, %c0_70], %207 {strides = array<i32>} : memref<64x32xf32, #tpu.memory_space<vmem>>, vector<8x32xf32>,
    %c4_i32 = arith.constant 4 : i32
    %c8_i32_71 = arith.constant 8 : i32
    %210 = arith.muli %c4_i32, %c8_i32_71 : i32
    %211 = tpu.assume_multiple %210, 8 : i32
    %212 = arith.index_cast %211 : i32 to index
    %c0_72 = arith.constant 0 : index
    %213 = vector.load %arg10[%212, %c0_72] : memref<64x128xf32, #tpu.memory_space<vmem>>, vector<8x128xf32>
    %c0_73 = arith.constant 0 : index
    %c0_74 = arith.constant 0 : index
    %214 = vector.load %arg2[%c0_73, %c0_74] : memref<32x128xf32, #tpu.memory_space<vmem>>, vector<32x128xf32>
    %cst_75 = arith.constant dense<0.000000e+00> : vector<8x128xf32>
    %215 = tpu.matmul %183, %214, %cst_75 {dimension_numbers = #tpu.dot_dimension_numbers<[1], [0], [0], [1], [0, 0, 1, 1], [], []>} : vector<8x32xf32>, vector<32x128xf32>, vector<8x128xf32> -> vector<8x128xf32>
    %216 = arith.addf %213, %215 : vector<8x128xf32>
    %217 = math.tanh %216 : vector<8x128xf32>
    %218 = arith.negf %216 : vector<8x128xf32>
    %219 = math.exp %218 : vector<8x128xf32>
    %cst_76 = arith.constant 1.000000e+00 : f32
    %220 = vector.broadcast %cst_76 : f32 to vector<8x128xf32>
    %221 = arith.addf %220, %219 : vector<8x128xf32>
    %222 = arith.divf %220, %221 : vector<8x128xf32>
    %223 = arith.select %12, %217, %222 : vector<8x128xi1>, vector<8x128xf32>
    %224 = vector.extract_strided_slice %223 {offsets = [0, 0], sizes = [8, 32], strides = [1, 1]} : vector<8x128xf32> to vector<8x32xf32>
    %225 = vector.extract_strided_slice %223 {offsets = [0, 32], sizes = [8, 32], strides = [1, 1]} : vector<8x128xf32> to vector<8x32xf32>
    %226 = vector.extract_strided_slice %223 {offsets = [0, 64], sizes = [8, 32], strides = [1, 1]} : vector<8x128xf32> to vector<8x32xf32>
    %227 = vector.extract_strided_slice %223 {offsets = [0, 96], sizes = [8, 32], strides = [1, 1]} : vector<8x128xf32> to vector<8x32xf32>
    %228 = arith.mulf %225, %181 : vector<8x32xf32>
    %229 = arith.mulf %224, %226 : vector<8x32xf32>
    %230 = arith.addf %228, %229 : vector<8x32xf32>
    %231 = math.tanh %230 : vector<8x32xf32>
    %232 = arith.mulf %227, %231 : vector<8x32xf32>
    %c0_77 = arith.constant 0 : index
    %c0_78 = arith.constant 0 : index
    %233 = vector.load %arg4[%c0_77, %c0_78] : memref<32x128xf32, #tpu.memory_space<vmem>>, vector<32x128xf32>
    %cst_79 = arith.constant dense<0.000000e+00> : vector<8x128xf32>
    %234 = tpu.matmul %232, %233, %cst_79 {dimension_numbers = #tpu.dot_dimension_numbers<[1], [0], [0], [1], [0, 0, 1, 1], [], []>} : vector<8x32xf32>, vector<32x128xf32>, vector<8x128xf32> -> vector<8x128xf32>
    %c0_80 = arith.constant 0 : index
    %c0_81 = arith.constant 0 : index
    %235 = vector.load %arg5[%c0_80, %c0_81] : memref<32x128xf32, #tpu.memory_space<vmem>>, vector<32x128xf32>
    %cst_82 = arith.constant dense<0.000000e+00> : vector<8x128xf32>
    %236 = tpu.matmul %207, %235, %cst_82 {dimension_numbers = #tpu.dot_dimension_numbers<[1], [0], [0], [1], [0, 0, 1, 1], [], []>} : vector<8x32xf32>, vector<32x128xf32>, vector<8x128xf32> -> vector<8x128xf32>
    %237 = arith.addf %234, %236 : vector<8x128xf32>
    %c0_83 = arith.constant 0 : index
    %c0_84 = arith.constant 0 : index
    %238 = vector.load %arg6[%c0_83, %c0_84] : memref<1x128xf32, #tpu.memory_space<vmem>>, vector<1x128xf32>
    %239 = vector.broadcast %238 : vector<1x128xf32> to vector<8x128xf32>
    %240 = arith.addf %237, %239 : vector<8x128xf32>
    %241 = math.tanh %240 : vector<8x128xf32>
    %242 = arith.negf %240 : vector<8x128xf32>
    %243 = math.exp %242 : vector<8x128xf32>
    %cst_85 = arith.constant 1.000000e+00 : f32
    %244 = vector.broadcast %cst_85 : f32 to vector<8x128xf32>
    %245 = arith.addf %244, %243 : vector<8x128xf32>
    %246 = arith.divf %244, %245 : vector<8x128xf32>
    %247 = arith.select %12, %241, %246 : vector<8x128xi1>, vector<8x128xf32>
    %248 = vector.extract_strided_slice %247 {offsets = [0, 0], sizes = [8, 32], strides = [1, 1]} : vector<8x128xf32> to vector<8x32xf32>
    %249 = vector.extract_strided_slice %247 {offsets = [0, 32], sizes = [8, 32], strides = [1, 1]} : vector<8x128xf32> to vector<8x32xf32>
    %250 = vector.extract_strided_slice %247 {offsets = [0, 64], sizes = [8, 32], strides = [1, 1]} : vector<8x128xf32> to vector<8x32xf32>
    %251 = vector.extract_strided_slice %247 {offsets = [0, 96], sizes = [8, 32], strides = [1, 1]} : vector<8x128xf32> to vector<8x32xf32>
    %252 = arith.mulf %249, %205 : vector<8x32xf32>
    %253 = arith.mulf %248, %250 : vector<8x32xf32>
    %254 = arith.addf %252, %253 : vector<8x32xf32>
    %255 = math.tanh %254 : vector<8x32xf32>
    %256 = arith.mulf %251, %255 : vector<8x32xf32>
    %257 = arith.index_cast %211 : i32 to index
    %c0_86 = arith.constant 0 : index
    %258 = vector.load %arg11[%257, %c0_86] : memref<64x32xf32, #tpu.memory_space<vmem>>, vector<8x32xf32>
    tpu.vector_store %arg11[%257, %c0_86], %256 {strides = array<i32>} : memref<64x32xf32, #tpu.memory_space<vmem>>, vector<8x32xf32>,
    %c5_i32 = arith.constant 5 : i32
    %c8_i32_87 = arith.constant 8 : i32
    %259 = arith.muli %c5_i32, %c8_i32_87 : i32
    %260 = tpu.assume_multiple %259, 8 : i32
    %261 = arith.index_cast %260 : i32 to index
    %c0_88 = arith.constant 0 : index
    %262 = vector.load %arg10[%261, %c0_88] : memref<64x128xf32, #tpu.memory_space<vmem>>, vector<8x128xf32>
    %c0_89 = arith.constant 0 : index
    %c0_90 = arith.constant 0 : index
    %263 = vector.load %arg2[%c0_89, %c0_90] : memref<32x128xf32, #tpu.memory_space<vmem>>, vector<32x128xf32>
    %cst_91 = arith.constant dense<0.000000e+00> : vector<8x128xf32>
    %264 = tpu.matmul %232, %263, %cst_91 {dimension_numbers = #tpu.dot_dimension_numbers<[1], [0], [0], [1], [0, 0, 1, 1], [], []>} : vector<8x32xf32>, vector<32x128xf32>, vector<8x128xf32> -> vector<8x128xf32>
    %265 = arith.addf %262, %264 : vector<8x128xf32>
    %266 = math.tanh %265 : vector<8x128xf32>
    %267 = arith.negf %265 : vector<8x128xf32>
    %268 = math.exp %267 : vector<8x128xf32>
    %cst_92 = arith.constant 1.000000e+00 : f32
    %269 = vector.broadcast %cst_92 : f32 to vector<8x128xf32>
    %270 = arith.addf %269, %268 : vector<8x128xf32>
    %271 = arith.divf %269, %270 : vector<8x128xf32>
    %272 = arith.select %12, %266, %271 : vector<8x128xi1>, vector<8x128xf32>
    %273 = vector.extract_strided_slice %272 {offsets = [0, 0], sizes = [8, 32], strides = [1, 1]} : vector<8x128xf32> to vector<8x32xf32>
    %274 = vector.extract_strided_slice %272 {offsets = [0, 32], sizes = [8, 32], strides = [1, 1]} : vector<8x128xf32> to vector<8x32xf32>
    %275 = vector.extract_strided_slice %272 {offsets = [0, 64], sizes = [8, 32], strides = [1, 1]} : vector<8x128xf32> to vector<8x32xf32>
    %276 = vector.extract_strided_slice %272 {offsets = [0, 96], sizes = [8, 32], strides = [1, 1]} : vector<8x128xf32> to vector<8x32xf32>
    %277 = arith.mulf %274, %230 : vector<8x32xf32>
    %278 = arith.mulf %273, %275 : vector<8x32xf32>
    %279 = arith.addf %277, %278 : vector<8x32xf32>
    %280 = math.tanh %279 : vector<8x32xf32>
    %281 = arith.mulf %276, %280 : vector<8x32xf32>
    %c0_93 = arith.constant 0 : index
    %c0_94 = arith.constant 0 : index
    %282 = vector.load %arg4[%c0_93, %c0_94] : memref<32x128xf32, #tpu.memory_space<vmem>>, vector<32x128xf32>
    %cst_95 = arith.constant dense<0.000000e+00> : vector<8x128xf32>
    %283 = tpu.matmul %281, %282, %cst_95 {dimension_numbers = #tpu.dot_dimension_numbers<[1], [0], [0], [1], [0, 0, 1, 1], [], []>} : vector<8x32xf32>, vector<32x128xf32>, vector<8x128xf32> -> vector<8x128xf32>
    %c0_96 = arith.constant 0 : index
    %c0_97 = arith.constant 0 : index
    %284 = vector.load %arg5[%c0_96, %c0_97] : memref<32x128xf32, #tpu.memory_space<vmem>>, vector<32x128xf32>
    %cst_98 = arith.constant dense<0.000000e+00> : vector<8x128xf32>
    %285 = tpu.matmul %256, %284, %cst_98 {dimension_numbers = #tpu.dot_dimension_numbers<[1], [0], [0], [1], [0, 0, 1, 1], [], []>} : vector<8x32xf32>, vector<32x128xf32>, vector<8x128xf32> -> vector<8x128xf32>
    %286 = arith.addf %283, %285 : vector<8x128xf32>
    %c0_99 = arith.constant 0 : index
    %c0_100 = arith.constant 0 : index
    %287 = vector.load %arg6[%c0_99, %c0_100] : memref<1x128xf32, #tpu.memory_space<vmem>>, vector<1x128xf32>
    %288 = vector.broadcast %287 : vector<1x128xf32> to vector<8x128xf32>
    %289 = arith.addf %286, %288 : vector<8x128xf32>
    %290 = math.tanh %289 : vector<8x128xf32>
    %291 = arith.negf %289 : vector<8x128xf32>
    %292 = math.exp %291 : vector<8x128xf32>
    %cst_101 = arith.constant 1.000000e+00 : f32
    %293 = vector.broadcast %cst_101 : f32 to vector<8x128xf32>
    %294 = arith.addf %293, %292 : vector<8x128xf32>
    %295 = arith.divf %293, %294 : vector<8x128xf32>
    %296 = arith.select %12, %290, %295 : vector<8x128xi1>, vector<8x128xf32>
    %297 = vector.extract_strided_slice %296 {offsets = [0, 0], sizes = [8, 32], strides = [1, 1]} : vector<8x128xf32> to vector<8x32xf32>
    %298 = vector.extract_strided_slice %296 {offsets = [0, 32], sizes = [8, 32], strides = [1, 1]} : vector<8x128xf32> to vector<8x32xf32>
    %299 = vector.extract_strided_slice %296 {offsets = [0, 64], sizes = [8, 32], strides = [1, 1]} : vector<8x128xf32> to vector<8x32xf32>
    %300 = vector.extract_strided_slice %296 {offsets = [0, 96], sizes = [8, 32], strides = [1, 1]} : vector<8x128xf32> to vector<8x32xf32>
    %301 = arith.mulf %298, %254 : vector<8x32xf32>
    %302 = arith.mulf %297, %299 : vector<8x32xf32>
    %303 = arith.addf %301, %302 : vector<8x32xf32>
    %304 = math.tanh %303 : vector<8x32xf32>
    %305 = arith.mulf %300, %304 : vector<8x32xf32>
    %306 = arith.index_cast %260 : i32 to index
    %c0_102 = arith.constant 0 : index
    %307 = vector.load %arg11[%306, %c0_102] : memref<64x32xf32, #tpu.memory_space<vmem>>, vector<8x32xf32>
    tpu.vector_store %arg11[%306, %c0_102], %305 {strides = array<i32>} : memref<64x32xf32, #tpu.memory_space<vmem>>, vector<8x32xf32>,
    %c6_i32 = arith.constant 6 : i32
    %c8_i32_103 = arith.constant 8 : i32
    %308 = arith.muli %c6_i32, %c8_i32_103 : i32
    %309 = tpu.assume_multiple %308, 8 : i32
    %310 = arith.index_cast %309 : i32 to index
    %c0_104 = arith.constant 0 : index
    %311 = vector.load %arg10[%310, %c0_104] : memref<64x128xf32, #tpu.memory_space<vmem>>, vector<8x128xf32>
    %c0_105 = arith.constant 0 : index
    %c0_106 = arith.constant 0 : index
    %312 = vector.load %arg2[%c0_105, %c0_106] : memref<32x128xf32, #tpu.memory_space<vmem>>, vector<32x128xf32>
    %cst_107 = arith.constant dense<0.000000e+00> : vector<8x128xf32>
    %313 = tpu.matmul %281, %312, %cst_107 {dimension_numbers = #tpu.dot_dimension_numbers<[1], [0], [0], [1], [0, 0, 1, 1], [], []>} : vector<8x32xf32>, vector<32x128xf32>, vector<8x128xf32> -> vector<8x128xf32>
    %314 = arith.addf %311, %313 : vector<8x128xf32>
    %315 = math.tanh %314 : vector<8x128xf32>
    %316 = arith.negf %314 : vector<8x128xf32>
    %317 = math.exp %316 : vector<8x128xf32>
    %cst_108 = arith.constant 1.000000e+00 : f32
    %318 = vector.broadcast %cst_108 : f32 to vector<8x128xf32>
    %319 = arith.addf %318, %317 : vector<8x128xf32>
    %320 = arith.divf %318, %319 : vector<8x128xf32>
    %321 = arith.select %12, %315, %320 : vector<8x128xi1>, vector<8x128xf32>
    %322 = vector.extract_strided_slice %321 {offsets = [0, 0], sizes = [8, 32], strides = [1, 1]} : vector<8x128xf32> to vector<8x32xf32>
    %323 = vector.extract_strided_slice %321 {offsets = [0, 32], sizes = [8, 32], strides = [1, 1]} : vector<8x128xf32> to vector<8x32xf32>
    %324 = vector.extract_strided_slice %321 {offsets = [0, 64], sizes = [8, 32], strides = [1, 1]} : vector<8x128xf32> to vector<8x32xf32>
    %325 = vector.extract_strided_slice %321 {offsets = [0, 96], sizes = [8, 32], strides = [1, 1]} : vector<8x128xf32> to vector<8x32xf32>
    %326 = arith.mulf %323, %279 : vector<8x32xf32>
    %327 = arith.mulf %322, %324 : vector<8x32xf32>
    %328 = arith.addf %326, %327 : vector<8x32xf32>
    %329 = math.tanh %328 : vector<8x32xf32>
    %330 = arith.mulf %325, %329 : vector<8x32xf32>
    %c0_109 = arith.constant 0 : index
    %c0_110 = arith.constant 0 : index
    %331 = vector.load %arg4[%c0_109, %c0_110] : memref<32x128xf32, #tpu.memory_space<vmem>>, vector<32x128xf32>
    %cst_111 = arith.constant dense<0.000000e+00> : vector<8x128xf32>
    %332 = tpu.matmul %330, %331, %cst_111 {dimension_numbers = #tpu.dot_dimension_numbers<[1], [0], [0], [1], [0, 0, 1, 1], [], []>} : vector<8x32xf32>, vector<32x128xf32>, vector<8x128xf32> -> vector<8x128xf32>
    %c0_112 = arith.constant 0 : index
    %c0_113 = arith.constant 0 : index
    %333 = vector.load %arg5[%c0_112, %c0_113] : memref<32x128xf32, #tpu.memory_space<vmem>>, vector<32x128xf32>
    %cst_114 = arith.constant dense<0.000000e+00> : vector<8x128xf32>
    %334 = tpu.matmul %305, %333, %cst_114 {dimension_numbers = #tpu.dot_dimension_numbers<[1], [0], [0], [1], [0, 0, 1, 1], [], []>} : vector<8x32xf32>, vector<32x128xf32>, vector<8x128xf32> -> vector<8x128xf32>
    %335 = arith.addf %332, %334 : vector<8x128xf32>
    %c0_115 = arith.constant 0 : index
    %c0_116 = arith.constant 0 : index
    %336 = vector.load %arg6[%c0_115, %c0_116] : memref<1x128xf32, #tpu.memory_space<vmem>>, vector<1x128xf32>
    %337 = vector.broadcast %336 : vector<1x128xf32> to vector<8x128xf32>
    %338 = arith.addf %335, %337 : vector<8x128xf32>
    %339 = math.tanh %338 : vector<8x128xf32>
    %340 = arith.negf %338 : vector<8x128xf32>
    %341 = math.exp %340 : vector<8x128xf32>
    %cst_117 = arith.constant 1.000000e+00 : f32
    %342 = vector.broadcast %cst_117 : f32 to vector<8x128xf32>
    %343 = arith.addf %342, %341 : vector<8x128xf32>
    %344 = arith.divf %342, %343 : vector<8x128xf32>
    %345 = arith.select %12, %339, %344 : vector<8x128xi1>, vector<8x128xf32>
    %346 = vector.extract_strided_slice %345 {offsets = [0, 0], sizes = [8, 32], strides = [1, 1]} : vector<8x128xf32> to vector<8x32xf32>
    %347 = vector.extract_strided_slice %345 {offsets = [0, 32], sizes = [8, 32], strides = [1, 1]} : vector<8x128xf32> to vector<8x32xf32>
    %348 = vector.extract_strided_slice %345 {offsets = [0, 64], sizes = [8, 32], strides = [1, 1]} : vector<8x128xf32> to vector<8x32xf32>
    %349 = vector.extract_strided_slice %345 {offsets = [0, 96], sizes = [8, 32], strides = [1, 1]} : vector<8x128xf32> to vector<8x32xf32>
    %350 = arith.mulf %347, %303 : vector<8x32xf32>
    %351 = arith.mulf %346, %348 : vector<8x32xf32>
    %352 = arith.addf %350, %351 : vector<8x32xf32>
    %353 = math.tanh %352 : vector<8x32xf32>
    %354 = arith.mulf %349, %353 : vector<8x32xf32>
    %355 = arith.index_cast %309 : i32 to index
    %c0_118 = arith.constant 0 : index
    %356 = vector.load %arg11[%355, %c0_118] : memref<64x32xf32, #tpu.memory_space<vmem>>, vector<8x32xf32>
    tpu.vector_store %arg11[%355, %c0_118], %354 {strides = array<i32>} : memref<64x32xf32, #tpu.memory_space<vmem>>, vector<8x32xf32>,
    %c7_i32 = arith.constant 7 : i32
    %c8_i32_119 = arith.constant 8 : i32
    %357 = arith.muli %c7_i32, %c8_i32_119 : i32
    %358 = tpu.assume_multiple %357, 8 : i32
    %359 = arith.index_cast %358 : i32 to index
    %c0_120 = arith.constant 0 : index
    %360 = vector.load %arg10[%359, %c0_120] : memref<64x128xf32, #tpu.memory_space<vmem>>, vector<8x128xf32>
    %c0_121 = arith.constant 0 : index
    %c0_122 = arith.constant 0 : index
    %361 = vector.load %arg2[%c0_121, %c0_122] : memref<32x128xf32, #tpu.memory_space<vmem>>, vector<32x128xf32>
    %cst_123 = arith.constant dense<0.000000e+00> : vector<8x128xf32>
    %362 = tpu.matmul %330, %361, %cst_123 {dimension_numbers = #tpu.dot_dimension_numbers<[1], [0], [0], [1], [0, 0, 1, 1], [], []>} : vector<8x32xf32>, vector<32x128xf32>, vector<8x128xf32> -> vector<8x128xf32>
    %363 = arith.addf %360, %362 : vector<8x128xf32>
    %364 = math.tanh %363 : vector<8x128xf32>
    %365 = arith.negf %363 : vector<8x128xf32>
    %366 = math.exp %365 : vector<8x128xf32>
    %cst_124 = arith.constant 1.000000e+00 : f32
    %367 = vector.broadcast %cst_124 : f32 to vector<8x128xf32>
    %368 = arith.addf %367, %366 : vector<8x128xf32>
    %369 = arith.divf %367, %368 : vector<8x128xf32>
    %370 = arith.select %12, %364, %369 : vector<8x128xi1>, vector<8x128xf32>
    %371 = vector.extract_strided_slice %370 {offsets = [0, 0], sizes = [8, 32], strides = [1, 1]} : vector<8x128xf32> to vector<8x32xf32>
    %372 = vector.extract_strided_slice %370 {offsets = [0, 32], sizes = [8, 32], strides = [1, 1]} : vector<8x128xf32> to vector<8x32xf32>
    %373 = vector.extract_strided_slice %370 {offsets = [0, 64], sizes = [8, 32], strides = [1, 1]} : vector<8x128xf32> to vector<8x32xf32>
    %374 = vector.extract_strided_slice %370 {offsets = [0, 96], sizes = [8, 32], strides = [1, 1]} : vector<8x128xf32> to vector<8x32xf32>
    %375 = arith.mulf %372, %328 : vector<8x32xf32>
    %376 = arith.mulf %371, %373 : vector<8x32xf32>
    %377 = arith.addf %375, %376 : vector<8x32xf32>
    %378 = math.tanh %377 : vector<8x32xf32>
    %379 = arith.mulf %374, %378 : vector<8x32xf32>
    %c0_125 = arith.constant 0 : index
    %c0_126 = arith.constant 0 : index
    %380 = vector.load %arg4[%c0_125, %c0_126] : memref<32x128xf32, #tpu.memory_space<vmem>>, vector<32x128xf32>
    %cst_127 = arith.constant dense<0.000000e+00> : vector<8x128xf32>
    %381 = tpu.matmul %379, %380, %cst_127 {dimension_numbers = #tpu.dot_dimension_numbers<[1], [0], [0], [1], [0, 0, 1, 1], [], []>} : vector<8x32xf32>, vector<32x128xf32>, vector<8x128xf32> -> vector<8x128xf32>
    %c0_128 = arith.constant 0 : index
    %c0_129 = arith.constant 0 : index
    %382 = vector.load %arg5[%c0_128, %c0_129] : memref<32x128xf32, #tpu.memory_space<vmem>>, vector<32x128xf32>
    %cst_130 = arith.constant dense<0.000000e+00> : vector<8x128xf32>
    %383 = tpu.matmul %354, %382, %cst_130 {dimension_numbers = #tpu.dot_dimension_numbers<[1], [0], [0], [1], [0, 0, 1, 1], [], []>} : vector<8x32xf32>, vector<32x128xf32>, vector<8x128xf32> -> vector<8x128xf32>
    %384 = arith.addf %381, %383 : vector<8x128xf32>
    %c0_131 = arith.constant 0 : index
    %c0_132 = arith.constant 0 : index
    %385 = vector.load %arg6[%c0_131, %c0_132] : memref<1x128xf32, #tpu.memory_space<vmem>>, vector<1x128xf32>
    %386 = vector.broadcast %385 : vector<1x128xf32> to vector<8x128xf32>
    %387 = arith.addf %384, %386 : vector<8x128xf32>
    %388 = math.tanh %387 : vector<8x128xf32>
    %389 = arith.negf %387 : vector<8x128xf32>
    %390 = math.exp %389 : vector<8x128xf32>
    %cst_133 = arith.constant 1.000000e+00 : f32
    %391 = vector.broadcast %cst_133 : f32 to vector<8x128xf32>
    %392 = arith.addf %391, %390 : vector<8x128xf32>
    %393 = arith.divf %391, %392 : vector<8x128xf32>
    %394 = arith.select %12, %388, %393 : vector<8x128xi1>, vector<8x128xf32>
    %395 = vector.extract_strided_slice %394 {offsets = [0, 0], sizes = [8, 32], strides = [1, 1]} : vector<8x128xf32> to vector<8x32xf32>
    %396 = vector.extract_strided_slice %394 {offsets = [0, 32], sizes = [8, 32], strides = [1, 1]} : vector<8x128xf32> to vector<8x32xf32>
    %397 = vector.extract_strided_slice %394 {offsets = [0, 64], sizes = [8, 32], strides = [1, 1]} : vector<8x128xf32> to vector<8x32xf32>
    %398 = vector.extract_strided_slice %394 {offsets = [0, 96], sizes = [8, 32], strides = [1, 1]} : vector<8x128xf32> to vector<8x32xf32>
    %399 = arith.mulf %396, %352 : vector<8x32xf32>
    %400 = arith.mulf %395, %397 : vector<8x32xf32>
    %401 = arith.addf %399, %400 : vector<8x32xf32>
    %402 = math.tanh %401 : vector<8x32xf32>
    %403 = arith.mulf %398, %402 : vector<8x32xf32>
    %404 = arith.index_cast %358 : i32 to index
    %c0_134 = arith.constant 0 : index
    %405 = vector.load %arg11[%404, %c0_134] : memref<64x32xf32, #tpu.memory_space<vmem>>, vector<8x32xf32>
    tpu.vector_store %arg11[%404, %c0_134], %403 {strides = array<i32>} : memref<64x32xf32, #tpu.memory_space<vmem>>, vector<8x32xf32>,
    %c8_i32_135 = arith.constant 8 : i32
    %c0_136 = arith.constant 0 : index
    %c0_137 = arith.constant 0 : index
    %406 = vector.load %arg11[%c0_136, %c0_137] : memref<64x32xf32, #tpu.memory_space<vmem>>, vector<64x32xf32>
    %c0_138 = arith.constant 0 : index
    %c0_139 = arith.constant 0 : index
    %407 = vector.load %arg7[%c0_138, %c0_139] : memref<32x128xf32, #tpu.memory_space<vmem>>, vector<32x128xf32>
    %cst_140 = arith.constant dense<0.000000e+00> : vector<64x128xf32>
    %408 = tpu.matmul %406, %407, %cst_140 {dimension_numbers = #tpu.dot_dimension_numbers<[1], [0], [0], [1], [0, 0, 1, 1], [], []>} : vector<64x32xf32>, vector<32x128xf32>, vector<64x128xf32> -> vector<64x128xf32>
    %c0_141 = arith.constant 0 : index
    %c0_142 = arith.constant 0 : index
    %409 = vector.load %arg8[%c0_141, %c0_142] : memref<1x128xf32, #tpu.memory_space<vmem>>, vector<1x128xf32>
    %410 = vector.broadcast %409 : vector<1x128xf32> to vector<64x128xf32>
    %411 = arith.addf %408, %410 : vector<64x128xf32>
    %c0_143 = arith.constant 0 : index
    %c0_144 = arith.constant 0 : index
    %412 = vector.load %arg9[%c0_143, %c0_144] : memref<64x128xf32, #tpu.memory_space<vmem>>, vector<64x128xf32>
    tpu.vector_store %arg9[%c0_143, %c0_144], %411 {strides = array<i32>} : memref<64x128xf32, #tpu.memory_space<vmem>>, vector<64x128xf32>,
    return
  }
}

</mosaic_0001>

<llo_original>
// kernel: simple_lstm_forward.1
$region0: #{simple_lstm_forward.1}
  #allocation0 [shape = 'u32[]', space=smem, size = 0x4, offset = 0x4, fixed_abs, tag = 'smem constant byte address 0x4 - core index']
  #allocation1 [shape = 'u32[144,128]{1,0:T(1,128)}', space=vmem, size = 0x12000, scoped, tag = 'internal scratch']
  #allocation2 [shape = 'f32[64,128]{1,0:T(8,128)}', space=vmem, size = 0x8000, scoped, tag = 'scratch operand']
  #allocation3 [shape = 'f32[64,32]{1,0:T(8,128)}', space=vmem, size = 0x8000, scoped, tag = 'scratch operand']
  %s0 = inlined_call_operand.vmem [shape: f32[64,16], index: 0, kind: input, shape index: {}]
  %s1 = inlined_call_operand.vmem [shape: f32[16,128], index: 1, kind: input, shape index: {}]
  %s2 = inlined_call_operand.vmem [shape: f32[32,128], index: 2, kind: input, shape index: {}]
  %s3 = inlined_call_operand.vmem [shape: f32[1,128], index: 3, kind: input, shape index: {}]
  %s4 = inlined_call_operand.vmem [shape: f32[32,128], index: 4, kind: input, shape index: {}]
  %s5 = inlined_call_operand.vmem [shape: f32[32,128], index: 5, kind: input, shape index: {}]
  %s6 = inlined_call_operand.vmem [shape: f32[1,128], index: 6, kind: input, shape index: {}]
  %s7 = inlined_call_operand.vmem [shape: f32[32,128], index: 7, kind: input, shape index: {}]
  %s8 = inlined_call_operand.vmem [shape: f32[1,128], index: 8, kind: input, shape index: {}]
  %s9 = inlined_call_operand.vmem [shape: f32[64,128], index: 9, kind: output, shape index: {}]
  %s10 = sld [smem:[#allocation0]]
  $region46: #{simple_lstm_forward.1} parent=0
    _
  %s12 = ssub.s32 1, %s10
  %s13 = scalar_select 0, %s12, %s10
  // Predicated region
  $region2: #{simple_lstm_forward.1} parent=0 // pred_check
    _
  $region3: #{simple_lstm_forward.1} parent=0 // pred_check_branch
    %15 = sbr.rel (0) target = $region5
  $region4: #{simple_lstm_forward.1} parent=0 // pred_region
    _
  $region5: #{simple_lstm_forward.1} parent=0 // pred_fallthru
    _
  // Predicated region
  $region6: #{simple_lstm_forward.1} parent=0 // pred_check
    _
  $region7: #{simple_lstm_forward.1} parent=0 // pred_check_branch
    %17 = sbr.rel (0) target = $region9
  $region8: #{simple_lstm_forward.1} parent=0 // pred_region
    _
  $region9: #{simple_lstm_forward.1} parent=0 // pred_fallthru
    _
  // Predicated region
  $region10: #{simple_lstm_forward.1} parent=0 // pred_check
    _
  $region11: #{simple_lstm_forward.1} parent=0 // pred_check_branch
    %19 = sbr.rel (0) target = $region13
  $region12: #{simple_lstm_forward.1} parent=0 // pred_region
    _
  $region13: #{simple_lstm_forward.1} parent=0 // pred_fallthru
    _
  // Predicated region
  $region14: #{simple_lstm_forward.1} parent=0 // pred_check
    _
  $region15: #{simple_lstm_forward.1} parent=0 // pred_check_branch
    %21 = sbr.rel (0) target = $region17
  $region16: #{simple_lstm_forward.1} parent=0 // pred_region
    _
  $region17: #{simple_lstm_forward.1} parent=0 // pred_fallthru
    _
  // Predicated region
  $region18: #{simple_lstm_forward.1} parent=0 // pred_check
    _
  $region19: #{simple_lstm_forward.1} parent=0 // pred_check_branch
    %23 = sbr.rel (0) target = $region21
  $region20: #{simple_lstm_forward.1} parent=0 // pred_region
    _
  $region21: #{simple_lstm_forward.1} parent=0 // pred_fallthru
    _
  // Predicated region
  $region22: #{simple_lstm_forward.1} parent=0 // pred_check
    _
  $region23: #{simple_lstm_forward.1} parent=0 // pred_check_branch
    %25 = sbr.rel (0) target = $region25
  $region24: #{simple_lstm_forward.1} parent=0 // pred_region
    _
  $region25: #{simple_lstm_forward.1} parent=0 // pred_fallthru
    _
  // Predicated region
  $region26: #{simple_lstm_forward.1} parent=0 // pred_check
    _
  $region27: #{simple_lstm_forward.1} parent=0 // pred_check_branch
    %27 = sbr.rel (0) target = $region29
  $region28: #{simple_lstm_forward.1} parent=0 // pred_region
    _
  $region29: #{simple_lstm_forward.1} parent=0 // pred_fallthru
    _
  // Predicated region
  $region30: #{simple_lstm_forward.1} parent=0 // pred_check
    _
  $region31: #{simple_lstm_forward.1} parent=0 // pred_check_branch
    %29 = sbr.rel (0) target = $region33
  $region32: #{simple_lstm_forward.1} parent=0 // pred_region
    _
  $region33: #{simple_lstm_forward.1} parent=0 // pred_fallthru
    _
  // Predicated region
  $region34: #{simple_lstm_forward.1} parent=0 // pred_check
    _
  $region35: #{simple_lstm_forward.1} parent=0 // pred_check_branch
    %31 = sbr.rel (0) target = $region37
  $region36: #{simple_lstm_forward.1} parent=0 // pred_region
    _
  $region37: #{simple_lstm_forward.1} parent=0 // pred_fallthru
    _
  %v32 = vld [vmem:[%s0] sm:$0xff]
  %v33 = vld [vmem:[%s0 + $0x8] sm:$0xff]
  %v34 = vld [vmem:[%s0 + $0x10] sm:$0xff]
  %v35 = vld [vmem:[%s0 + $0x18] sm:$0xff]
  %v36 = vld [vmem:[%s0 + $0x20] sm:$0xff]
  %v37 = vld [vmem:[%s0 + $0x28] sm:$0xff]
  %v38 = vld [vmem:[%s0 + $0x30] sm:$0xff]
  %v39 = vld [vmem:[%s0 + $0x38] sm:$0xff]
  %v40 = vld [vmem:[%s1] sm:$0xff]
  %v41 = vld [vmem:[%s1 + $0x8] sm:$0xff]
  %v42 = vld [vmem:[%s3] sm:$0x1]
  %v44 = vlaneseq
  %v45 = vshrl.u32 %v44, 7
  %v46 = vsub.s32 0, %v45
  %v47 = vrot.slane %v42, %v46
  %vm49 = vcmask 130048
  %v51 = vsel %vm49, %v32, 0
  %v54 = vsel %vm49, %v33, 0
  %v57 = vsel %vm49, %v34, 0
  %v60 = vsel %vm49, %v35, 0
  %v63 = vsel %vm49, %v36, 0
  %v66 = vsel %vm49, %v37, 0
  %v69 = vsel %vm49, %v38, 0
  %v72 = vsel %vm49, %v39, 0
  %74 = vmatprep.subr.mxu0 0.0
  %75 = vmatpush1.msra.mxu0 %v40
  %76 = vmatprep.subr.mxu0 0.0
  %77 = vmatpush1.msra.mxu0 %v41
  %78 = vmatprep.subr.mxu0 0.0
  %79 = vmatpush1.msra.mxu0 0.0
  %80 = vmatprep.subr.mxu0 0.0
  %81 = vmatpush1.msra.mxu0 0.0
  %82 = vmatprep.subr.mxu0 0.0
  %83 = vmatpush1.msra.mxu0 0.0
  %84 = vmatprep.subr.mxu0 0.0
  %85 = vmatpush1.msra.mxu0 0.0
  %86 = vmatprep.subr.mxu0 0.0
  %87 = vmatpush1.msra.mxu0 0.0
  %88 = vmatprep.subr.mxu0 0.0
  %89 = vmatpush1.msra.mxu0 0.0
  %90 = vmatprep.subr.mxu0 0.0
  %91 = vmatpush1.msra.mxu0 0.0
  %92 = vmatprep.subr.mxu0 0.0
  %93 = vmatpush1.msra.mxu0 0.0
  %94 = vmatprep.subr.mxu0 0.0
  %95 = vmatpush1.msra.mxu0 0.0
  %96 = vmatprep.subr.mxu0 0.0
  %97 = vmatpush1.msra.mxu0 0.0
  %98 = vmatprep.subr.mxu0 0.0
  %99 = vmatpush1.msra.mxu0 0.0
  %100 = vmatprep.subr.mxu0 0.0
  %101 = vmatpush1.msra.mxu0 0.0
  %102 = vmatprep.subr.mxu0 0.0
  %103 = vmatpush1.msra.mxu0 0.0
  %104 = vmatprep.subr.mxu0 0.0
  %105 = vmatpush1.msra.mxu0 0.0
  %106 = vmatprep.subr.mxu0 0.0
  %107 = vmatpush1.msra.mxu0 0.0
  %108 = vmatprep.subr.mxu0 0.0
  %109 = vmatpush1.msra.mxu0 0.0
  %110 = vmatprep.subr.mxu0 0.0
  %111 = vmatpush1.msra.mxu0 0.0
  %112 = vmatprep.subr.mxu0 0.0
  %113 = vmatpush1.msra.mxu0 0.0
  %114 = vmatprep.subr.mxu0 0.0
  %115 = vmatpush1.msra.mxu0 0.0
  %116 = vmatprep.subr.mxu0 0.0
  %117 = vmatpush1.msra.mxu0 0.0
  %118 = vmatprep.subr.mxu0 0.0
  %119 = vmatpush1.msra.mxu0 0.0
  %120 = vmatprep.subr.mxu0 0.0
  %121 = vmatpush1.msra.mxu0 0.0
  %122 = vmatprep.subr.mxu0 0.0
  %123 = vmatpush1.msra.mxu0 0.0
  %124 = vmatprep.subr.mxu0 0.0
  %125 = vmatpush1.msra.mxu0 0.0
  %126 = vmatprep.subr.mxu0 0.0
  %127 = vmatpush1.msra.mxu0 0.0
  %128 = vmatprep.subr.mxu0 0.0
  %129 = vmatpush1.msra.mxu0 0.0
  %130 = vmatprep.subr.mxu0 0.0
  %131 = vmatpush1.msra.mxu0 0.0
  %132 = vmatprep.subr.mxu0 0.0
  %133 = vmatpush1.msra.mxu0 0.0
  %134 = vmatprep.subr.mxu0 0.0
  %135 = vmatpush1.msra.mxu0 0.0
  %136 = vmatprep.subr.mxu0 0.0
  %137 = vmatpush1.msra.mxu0 0.0
  %138 = vmatprep.mubr.f32.mxu0 0.0
  %139 = vmatmul.mubr.f32.gmra.mrb[0].mxu0 %v51
  %v140 = vpop.f32.mrb[0].mxu0
  %v141 = vadd.f32 %v47, %v140
  %v142 = vpop.f32.mrb[0].mxu0
  %143 = vmatprep.mubr.f32.mxu0 0.0
  %144 = vmatmul.mubr.f32.gmra.mrb[0].mxu0 %v54
  %v145 = vpop.f32.mrb[0].mxu0
  %v146 = vadd.f32 %v47, %v145
  %v147 = vpop.f32.mrb[0].mxu0
  %148 = vmatprep.mubr.f32.mxu0 0.0
  %149 = vmatmul.mubr.f32.gmra.mrb[0].mxu0 %v57
  %v150 = vpop.f32.mrb[0].mxu0
  %v151 = vadd.f32 %v47, %v150
  %v152 = vpop.f32.mrb[0].mxu0
  %153 = vmatprep.mubr.f32.mxu0 0.0
  %154 = vmatmul.mubr.f32.gmra.mrb[0].mxu0 %v60
  %v155 = vpop.f32.mrb[0].mxu0
  %v156 = vadd.f32 %v47, %v155
  %v157 = vpop.f32.mrb[0].mxu0
  %158 = vmatprep.mubr.f32.mxu0 0.0
  %159 = vmatmul.mubr.f32.gmra.mrb[0].mxu0 %v63
  %v160 = vpop.f32.mrb[0].mxu0
  %v161 = vadd.f32 %v47, %v160
  %v162 = vpop.f32.mrb[0].mxu0
  %163 = vmatprep.mubr.f32.mxu0 0.0
  %164 = vmatmul.mubr.f32.gmra.mrb[0].mxu0 %v66
  %v165 = vpop.f32.mrb[0].mxu0
  %v166 = vadd.f32 %v47, %v165
  %v167 = vpop.f32.mrb[0].mxu0
  %168 = vmatprep.mubr.f32.mxu0 0.0
  %169 = vmatmul.mubr.f32.gmra.mrb[0].mxu0 %v69
  %v170 = vpop.f32.mrb[0].mxu0
  %v171 = vadd.f32 %v47, %v170
  %v172 = vpop.f32.mrb[0].mxu0
  %173 = vmatprep.mubr.f32.mxu0 0.0
  %174 = vmatmul.mubr.f32.gmra.mrb[0].mxu0 %v72
  %v175 = vpop.f32.mrb[0].mxu0
  %v176 = vadd.f32 %v47, %v175
  %v177 = vpop.f32.mrb[0].mxu0
  %178 = vdwg.mxu0
  %179 = vst [vmem:[#allocation2] sm:$0xff] %v141
  %180 = vst [vmem:[#allocation2 + $0x8] sm:$0xff] %v146
  %181 = vst [vmem:[#allocation2 + $0x10] sm:$0xff] %v151
  %182 = vst [vmem:[#allocation2 + $0x18] sm:$0xff] %v156
  %183 = vst [vmem:[#allocation2 + $0x20] sm:$0xff] %v161
  %184 = vst [vmem:[#allocation2 + $0x28] sm:$0xff] %v166
  %185 = vst [vmem:[#allocation2 + $0x30] sm:$0xff] %v171
  %186 = vst [vmem:[#allocation2 + $0x38] sm:$0xff] %v176
  %v187 = vlaneseq
  %v188 = vand.u32 %v187, 127
  %vm189 = vcmp.ge.s32.totalorder %v188, 64
  %vm190 = vcmp.lt.s32.totalorder %v188, 96
  %vm191 = vmand %vm189, %vm190
  %v192 = vld [vmem:[#allocation2] sm:$0xff]
  %v193 = vld [vmem:[%s2] sm:$0xff]
  %v194 = vld [vmem:[%s2 + $0x8] sm:$0xff]
  %v195 = vld [vmem:[%s2 + $0x10] sm:$0xff]
  %v196 = vld [vmem:[%s2 + $0x18] sm:$0xff]
  %vm197 = vcmask 261120
  %v199 = vsel %vm197, 0.0, 0
  %201 = vmatprep.subr.mxu0 0.0
  %202 = vmatpush1.msra.mxu0 %v193
  %203 = vmatprep.subr.mxu0 0.0
  %204 = vmatpush1.msra.mxu0 %v194
  %205 = vmatprep.subr.mxu0 0.0
  %206 = vmatpush1.msra.mxu0 %v195
  %207 = vmatprep.subr.mxu0 0.0
  %208 = vmatpush1.msra.mxu0 %v196
  %209 = vmatprep.subr.mxu0 0.0
  %210 = vmatpush1.msra.mxu0 0.0
  %211 = vmatprep.subr.mxu0 0.0
  %212 = vmatpush1.msra.mxu0 0.0
  %213 = vmatprep.subr.mxu0 0.0
  %214 = vmatpush1.msra.mxu0 0.0
  %215 = vmatprep.subr.mxu0 0.0
  %216 = vmatpush1.msra.mxu0 0.0
  %217 = vmatprep.subr.mxu0 0.0
  %218 = vmatpush1.msra.mxu0 0.0
  %219 = vmatprep.subr.mxu0 0.0
  %220 = vmatpush1.msra.mxu0 0.0
  %221 = vmatprep.subr.mxu0 0.0
  %222 = vmatpush1.msra.mxu0 0.0
  %223 = vmatprep.subr.mxu0 0.0
  %224 = vmatpush1.msra.mxu0 0.0
  %225 = vmatprep.subr.mxu0 0.0
  %226 = vmatpush1.msra.mxu0 0.0
  %227 = vmatprep.subr.mxu0 0.0
  %228 = vmatpush1.msra.mxu0 0.0
  %229 = vmatprep.subr.mxu0 0.0
  %230 = vmatpush1.msra.mxu0 0.0
  %231 = vmatprep.subr.mxu0 0.0
  %232 = vmatpush1.msra.mxu0 0.0
  %233 = vmatprep.subr.mxu0 0.0
  %234 = vmatpush1.msra.mxu0 0.0
  %235 = vmatprep.subr.mxu0 0.0
  %236 = vmatpush1.msra.mxu0 0.0
  %237 = vmatprep.subr.mxu0 0.0
  %238 = vmatpush1.msra.mxu0 0.0
  %239 = vmatprep.subr.mxu0 0.0
  %240 = vmatpush1.msra.mxu0 0.0
  %241 = vmatprep.subr.mxu0 0.0
  %242 = vmatpush1.msra.mxu0 0.0
  %243 = vmatprep.subr.mxu0 0.0
  %244 = vmatpush1.msra.mxu0 0.0
  %245 = vmatprep.subr.mxu0 0.0
  %246 = vmatpush1.msra.mxu0 0.0
  %247 = vmatprep.subr.mxu0 0.0
  %248 = vmatpush1.msra.mxu0 0.0
  %249 = vmatprep.subr.mxu0 0.0
  %250 = vmatpush1.msra.mxu0 0.0
  %251 = vmatprep.subr.mxu0 0.0
  %252 = vmatpush1.msra.mxu0 0.0
  %253 = vmatprep.subr.mxu0 0.0
  %254 = vmatpush1.msra.mxu0 0.0
  %255 = vmatprep.subr.mxu0 0.0
  %256 = vmatpush1.msra.mxu0 0.0
  %257 = vmatprep.subr.mxu0 0.0
  %258 = vmatpush1.msra.mxu0 0.0
  %259 = vmatprep.subr.mxu0 0.0
  %260 = vmatpush1.msra.mxu0 0.0
  %261 = vmatprep.subr.mxu0 0.0
  %262 = vmatpush1.msra.mxu0 0.0
  %263 = vmatprep.subr.mxu0 0.0
  %264 = vmatpush1.msra.mxu0 0.0
  %265 = vmatprep.mubr.f32.mxu0 0.0
  %266 = vmatmul.mubr.f32.gmra.mrb[0].mxu0 %v199
  %v267 = vpop.f32.mrb[0].mxu0
  %v268 = vadd.f32 0.0, %v267
  %v269 = vpop.f32.mrb[0].mxu0
  %270 = vdwg.mxu0
  %v271 = vadd.f32 %v192, %v268
  %v272 = vtanh.pop %v271
  %v273 = vxor.u32 %v271, 2147483648
  %v274 = vmul.f32 %v273, 1.442695
  %v275 = vpow.pop %v274
  %v276 = vadd.f32 %v275, 1.0
  %v277 = vrcp.pop %v276
  %v278 = vmul.f32 1.0, %v277
  %v279 = vsel %vm191, %v272, %v278
  %v280 = vmul.f32 %v279, 0.0
  %282 = vrot.lane.b32.xlu0 %v279, 64
  %v283 = vpop.permute.xlu0 %282
  %v285 = vmul.f32 %v279, %v283
  %287 = vrot.lane.b32.xlu0 %v285, 32
  %v288 = vpop.permute.xlu0 %287
  %v290 = vadd.f32 %v280, %v288
  %v291 = vtanh.pop %v290
  %293 = vrot.lane.b32.xlu0 %v291, 64
  %v294 = vpop.permute.xlu0 %293
  %v296 = vmul.f32 %v279, %v294
  %v297 = vld [vmem:[%s4] sm:$0xff]
  %v298 = vld [vmem:[%s4 + $0x8] sm:$0xff]
  %v299 = vld [vmem:[%s4 + $0x10] sm:$0xff]
  %v300 = vld [vmem:[%s4 + $0x18] sm:$0xff]
  %v301 = vld [vmem:[%s5] sm:$0xff]
  %v302 = vld [vmem:[%s5 + $0x8] sm:$0xff]
  %v303 = vld [vmem:[%s5 + $0x10] sm:$0xff]
  %v304 = vld [vmem:[%s5 + $0x18] sm:$0xff]
  %305 = vmatprep.subr.mxu0 0.0
  %306 = vmatpush1.msra.mxu0 %v301
  %307 = vmatprep.subr.mxu0 0.0
  %308 = vmatpush1.msra.mxu0 %v302
  %309 = vmatprep.subr.mxu0 0.0
  %310 = vmatpush1.msra.mxu0 %v303
  %311 = vmatprep.subr.mxu0 0.0
  %312 = vmatpush1.msra.mxu0 %v304
  %313 = vmatprep.subr.mxu0 0.0
  %314 = vmatpush1.msra.mxu0 0.0
  %315 = vmatprep.subr.mxu0 0.0
  %316 = vmatpush1.msra.mxu0 0.0
  %317 = vmatprep.subr.mxu0 0.0
  %318 = vmatpush1.msra.mxu0 0.0
  %319 = vmatprep.subr.mxu0 0.0
  %320 = vmatpush1.msra.mxu0 0.0
  %321 = vmatprep.subr.mxu0 0.0
  %322 = vmatpush1.msra.mxu0 0.0
  %323 = vmatprep.subr.mxu0 0.0
  %324 = vmatpush1.msra.mxu0 0.0
  %325 = vmatprep.subr.mxu0 0.0
  %326 = vmatpush1.msra.mxu0 0.0
  %327 = vmatprep.subr.mxu0 0.0
  %328 = vmatpush1.msra.mxu0 0.0
  %329 = vmatprep.subr.mxu0 0.0
  %330 = vmatpush1.msra.mxu0 0.0
  %331 = vmatprep.subr.mxu0 0.0
  %332 = vmatpush1.msra.mxu0 0.0
  %333 = vmatprep.subr.mxu0 0.0
  %334 = vmatpush1.msra.mxu0 0.0
  %335 = vmatprep.subr.mxu0 0.0
  %336 = vmatpush1.msra.mxu0 0.0
  %337 = vmatprep.subr.mxu0 0.0
  %338 = vmatpush1.msra.mxu0 0.0
  %339 = vmatprep.subr.mxu0 0.0
  %340 = vmatpush1.msra.mxu0 0.0
  %341 = vmatprep.subr.mxu0 0.0
  %342 = vmatpush1.msra.mxu0 0.0
  %343 = vmatprep.subr.mxu0 0.0
  %344 = vmatpush1.msra.mxu0 0.0
  %345 = vmatprep.subr.mxu0 0.0
  %346 = vmatpush1.msra.mxu0 0.0
  %347 = vmatprep.subr.mxu0 0.0
  %348 = vmatpush1.msra.mxu0 0.0
  %349 = vmatprep.subr.mxu0 0.0
  %350 = vmatpush1.msra.mxu0 0.0
  %351 = vmatprep.subr.mxu0 0.0
  %352 = vmatpush1.msra.mxu0 0.0
  %353 = vmatprep.subr.mxu0 0.0
  %354 = vmatpush1.msra.mxu0 0.0
  %355 = vmatprep.subr.mxu0 0.0
  %356 = vmatpush1.msra.mxu0 0.0
  %357 = vmatprep.subr.mxu0 0.0
  %358 = vmatpush1.msra.mxu0 0.0
  %359 = vmatprep.subr.mxu0 0.0
  %360 = vmatpush1.msra.mxu0 0.0
  %361 = vmatprep.subr.mxu0 0.0
  %362 = vmatpush1.msra.mxu0 0.0
  %363 = vmatprep.subr.mxu0 0.0
  %364 = vmatpush1.msra.mxu0 0.0
  %365 = vmatprep.subr.mxu0 0.0
  %366 = vmatpush1.msra.mxu0 0.0
  %367 = vmatprep.subr.mxu0 0.0
  %368 = vmatpush1.msra.mxu0 0.0
  %369 = vmatprep.mubr.f32.mxu0 0.0
  %370 = vmatmul.mubr.f32.gmra.mrb[0].mxu0 %v199
  %v371 = vpop.f32.mrb[0].mxu0
  %v372 = vadd.f32 0.0, %v371
  %v373 = vpop.f32.mrb[0].mxu0
  %374 = vdwg.mxu0
  %376 = vrot.lane.b32.xlu0 %v296, 32
  %v377 = vpop.permute.xlu0 %376
  %v378 = vsel %vm197, %v377, 0
  %380 = vmatprep.subr.mxu0 0.0
  %381 = vmatpush1.msra.mxu0 %v297
  %382 = vmatprep.subr.mxu0 0.0
  %383 = vmatpush1.msra.mxu0 %v298
  %384 = vmatprep.subr.mxu0 0.0
  %385 = vmatpush1.msra.mxu0 %v299
  %386 = vmatprep.subr.mxu0 0.0
  %387 = vmatpush1.msra.mxu0 %v300
  %388 = vmatprep.subr.mxu0 0.0
  %389 = vmatpush1.msra.mxu0 0.0
  %390 = vmatprep.subr.mxu0 0.0
  %391 = vmatpush1.msra.mxu0 0.0
  %392 = vmatprep.subr.mxu0 0.0
  %393 = vmatpush1.msra.mxu0 0.0
  %394 = vmatprep.subr.mxu0 0.0
  %395 = vmatpush1.msra.mxu0 0.0
  %396 = vmatprep.subr.mxu0 0.0
  %397 = vmatpush1.msra.mxu0 0.0
  %398 = vmatprep.subr.mxu0 0.0
  %399 = vmatpush1.msra.mxu0 0.0
  %400 = vmatprep.subr.mxu0 0.0
  %401 = vmatpush1.msra.mxu0 0.0
  %402 = vmatprep.subr.mxu0 0.0
  %403 = vmatpush1.msra.mxu0 0.0
  %404 = vmatprep.subr.mxu0 0.0
  %405 = vmatpush1.msra.mxu0 0.0
  %406 = vmatprep.subr.mxu0 0.0
  %407 = vmatpush1.msra.mxu0 0.0
  %408 = vmatprep.subr.mxu0 0.0
  %409 = vmatpush1.msra.mxu0 0.0
  %410 = vmatprep.subr.mxu0 0.0
  %411 = vmatpush1.msra.mxu0 0.0
  %412 = vmatprep.subr.mxu0 0.0
  %413 = vmatpush1.msra.mxu0 0.0
  %414 = vmatprep.subr.mxu0 0.0
  %415 = vmatpush1.msra.mxu0 0.0
  %416 = vmatprep.subr.mxu0 0.0
  %417 = vmatpush1.msra.mxu0 0.0
  %418 = vmatprep.subr.mxu0 0.0
  %419 = vmatpush1.msra.mxu0 0.0
  %420 = vmatprep.subr.mxu0 0.0
  %421 = vmatpush1.msra.mxu0 0.0
  %422 = vmatprep.subr.mxu0 0.0
  %423 = vmatpush1.msra.mxu0 0.0
  %424 = vmatprep.subr.mxu0 0.0
  %425 = vmatpush1.msra.mxu0 0.0
  %426 = vmatprep.subr.mxu0 0.0
  %427 = vmatpush1.msra.mxu0 0.0
  %428 = vmatprep.subr.mxu0 0.0
  %429 = vmatpush1.msra.mxu0 0.0
  %430 = vmatprep.subr.mxu0 0.0
  %431 = vmatpush1.msra.mxu0 0.0
  %432 = vmatprep.subr.mxu0 0.0
  %433 = vmatpush1.msra.mxu0 0.0
  %434 = vmatprep.subr.mxu0 0.0
  %435 = vmatpush1.msra.mxu0 0.0
  %436 = vmatprep.subr.mxu0 0.0
  %437 = vmatpush1.msra.mxu0 0.0
  %438 = vmatprep.subr.mxu0 0.0
  %439 = vmatpush1.msra.mxu0 0.0
  %440 = vmatprep.subr.mxu0 0.0
  %441 = vmatpush1.msra.mxu0 0.0
  %442 = vmatprep.subr.mxu0 0.0
  %443 = vmatpush1.msra.mxu0 0.0
  %444 = vmatprep.mubr.f32.mxu0 0.0
  %445 = vmatmul.mubr.f32.gmra.mrb[0].mxu0 %v378
  %v446 = vpop.f32.mrb[0].mxu0
  %v447 = vadd.f32 %v372, %v446
  %v448 = vpop.f32.mrb[0].mxu0
  %449 = vdwg.mxu0
  %v450 = vld [vmem:[%s6] sm:$0x1]
  %v452 = vlaneseq
  %v453 = vshrl.u32 %v452, 7
  %v454 = vsub.s32 0, %v453
  %v455 = vrot.slane %v450, %v454
  %v457 = vadd.f32 %v447, %v455
  %v458 = vtanh.pop %v457
  %v459 = vxor.u32 %v457, 2147483648
  %v460 = vmul.f32 %v459, 1.442695
  %v461 = vpow.pop %v460
  %v462 = vadd.f32 %v461, 1.0
  %v463 = vrcp.pop %v462
  %v464 = vmul.f32 1.0, %v463
  %v465 = vsel %vm191, %v458, %v464
  %v466 = vmul.f32 %v465, 0.0
  %468 = vrot.lane.b32.xlu0 %v465, 64
  %v469 = vpop.permute.xlu0 %468
  %v471 = vmul.f32 %v465, %v469
  %473 = vrot.lane.b32.xlu0 %v471, 32
  %v474 = vpop.permute.xlu0 %473
  %v476 = vadd.f32 %v466, %v474
  %v477 = vtanh.pop %v476
  %479 = vrot.lane.b32.xlu0 %v477, 64
  %v480 = vpop.permute.xlu0 %479
  %v482 = vmul.f32 %v465, %v480
  %484 = vrot.lane.b32.xlu0 %v482, 32
  %v485 = vpop.permute.xlu0 %484
  %487 = vst.msk [vmem:[#allocation3] sm:$0xff] %vm197, %v485
  %s488 = scalar_lea.vmem [#allocation2], 8
  %v489 = vld [vmem:[%s488] sm:$0xff]
  %v490 = vld [vmem:[%s2] sm:$0xff]
  %v491 = vld [vmem:[%s2 + $0x8] sm:$0xff]
  %v492 = vld [vmem:[%s2 + $0x10] sm:$0xff]
  %v493 = vld [vmem:[%s2 + $0x18] sm:$0xff]
  %494 = vmatprep.subr.mxu0 0.0
  %495 = vmatpush1.msra.mxu0 %v490
  %496 = vmatprep.subr.mxu0 0.0
  %497 = vmatpush1.msra.mxu0 %v491
  %498 = vmatprep.subr.mxu0 0.0
  %499 = vmatpush1.msra.mxu0 %v492
  %500 = vmatprep.subr.mxu0 0.0
  %501 = vmatpush1.msra.mxu0 %v493
  %502 = vmatprep.subr.mxu0 0.0
  %503 = vmatpush1.msra.mxu0 0.0
  %504 = vmatprep.subr.mxu0 0.0
  %505 = vmatpush1.msra.mxu0 0.0
  %506 = vmatprep.subr.mxu0 0.0
  %507 = vmatpush1.msra.mxu0 0.0
  %508 = vmatprep.subr.mxu0 0.0
  %509 = vmatpush1.msra.mxu0 0.0
  %510 = vmatprep.subr.mxu0 0.0
  %511 = vmatpush1.msra.mxu0 0.0
  %512 = vmatprep.subr.mxu0 0.0
  %513 = vmatpush1.msra.mxu0 0.0
  %514 = vmatprep.subr.mxu0 0.0
  %515 = vmatpush1.msra.mxu0 0.0
  %516 = vmatprep.subr.mxu0 0.0
  %517 = vmatpush1.msra.mxu0 0.0
  %518 = vmatprep.subr.mxu0 0.0
  %519 = vmatpush1.msra.mxu0 0.0
  %520 = vmatprep.subr.mxu0 0.0
  %521 = vmatpush1.msra.mxu0 0.0
  %522 = vmatprep.subr.mxu0 0.0
  %523 = vmatpush1.msra.mxu0 0.0
  %524 = vmatprep.subr.mxu0 0.0
  %525 = vmatpush1.msra.mxu0 0.0
  %526 = vmatprep.subr.mxu0 0.0
  %527 = vmatpush1.msra.mxu0 0.0
  %528 = vmatprep.subr.mxu0 0.0
  %529 = vmatpush1.msra.mxu0 0.0
  %530 = vmatprep.subr.mxu0 0.0
  %531 = vmatpush1.msra.mxu0 0.0
  %532 = vmatprep.subr.mxu0 0.0
  %533 = vmatpush1.msra.mxu0 0.0
  %534 = vmatprep.subr.mxu0 0.0
  %535 = vmatpush1.msra.mxu0 0.0
  %536 = vmatprep.subr.mxu0 0.0
  %537 = vmatpush1.msra.mxu0 0.0
  %538 = vmatprep.subr.mxu0 0.0
  %539 = vmatpush1.msra.mxu0 0.0
  %540 = vmatprep.subr.mxu0 0.0
  %541 = vmatpush1.msra.mxu0 0.0
  %542 = vmatprep.subr.mxu0 0.0
  %543 = vmatpush1.msra.mxu0 0.0
  %544 = vmatprep.subr.mxu0 0.0
  %545 = vmatpush1.msra.mxu0 0.0
  %546 = vmatprep.subr.mxu0 0.0
  %547 = vmatpush1.msra.mxu0 0.0
  %548 = vmatprep.subr.mxu0 0.0
  %549 = vmatpush1.msra.mxu0 0.0
  %550 = vmatprep.subr.mxu0 0.0
  %551 = vmatpush1.msra.mxu0 0.0
  %552 = vmatprep.subr.mxu0 0.0
  %553 = vmatpush1.msra.mxu0 0.0
  %554 = vmatprep.subr.mxu0 0.0
  %555 = vmatpush1.msra.mxu0 0.0
  %556 = vmatprep.subr.mxu0 0.0
  %557 = vmatpush1.msra.mxu0 0.0
  %558 = vmatprep.mubr.f32.mxu0 0.0
  %559 = vmatmul.mubr.f32.gmra.mrb[0].mxu0 %v378
  %v560 = vpop.f32.mrb[0].mxu0
  %v561 = vadd.f32 0.0, %v560
  %v562 = vpop.f32.mrb[0].mxu0
  %563 = vdwg.mxu0
  %v564 = vadd.f32 %v489, %v561
  %v565 = vtanh.pop %v564
  %v566 = vxor.u32 %v564, 2147483648
  %v567 = vmul.f32 %v566, 1.442695
  %v568 = vpow.pop %v567
  %v569 = vadd.f32 %v568, 1.0
  %v570 = vrcp.pop %v569
  %v571 = vmul.f32 1.0, %v570
  %v572 = vsel %vm191, %v565, %v571
  %v573 = vmul.f32 %v572, %v290
  %575 = vrot.lane.b32.xlu0 %v572, 64
  %v576 = vpop.permute.xlu0 %575
  %v578 = vmul.f32 %v572, %v576
  %580 = vrot.lane.b32.xlu0 %v578, 32
  %v581 = vpop.permute.xlu0 %580
  %v583 = vadd.f32 %v573, %v581
  %v584 = vtanh.pop %v583
  %586 = vrot.lane.b32.xlu0 %v584, 64
  %v587 = vpop.permute.xlu0 %586
  %v589 = vmul.f32 %v572, %v587
  %v590 = vld [vmem:[%s4] sm:$0xff]
  %v591 = vld [vmem:[%s4 + $0x8] sm:$0xff]
  %v592 = vld [vmem:[%s4 + $0x10] sm:$0xff]
  %v593 = vld [vmem:[%s4 + $0x18] sm:$0xff]
  %v594 = vld [vmem:[%s5] sm:$0xff]
  %v595 = vld [vmem:[%s5 + $0x8] sm:$0xff]
  %v596 = vld [vmem:[%s5 + $0x10] sm:$0xff]
  %v597 = vld [vmem:[%s5 + $0x18] sm:$0xff]
  %v598 = vsel %vm197, %v485, 0
  %600 = vmatprep.subr.mxu0 0.0
  %601 = vmatpush1.msra.mxu0 %v594
  %602 = vmatprep.subr.mxu0 0.0
  %603 = vmatpush1.msra.mxu0 %v595
  %604 = vmatprep.subr.mxu0 0.0
  %605 = vmatpush1.msra.mxu0 %v596
  %606 = vmatprep.subr.mxu0 0.0
  %607 = vmatpush1.msra.mxu0 %v597
  %608 = vmatprep.subr.mxu0 0.0
  %609 = vmatpush1.msra.mxu0 0.0
  %610 = vmatprep.subr.mxu0 0.0
  %611 = vmatpush1.msra.mxu0 0.0
  %612 = vmatprep.subr.mxu0 0.0
  %613 = vmatpush1.msra.mxu0 0.0
  %614 = vmatprep.subr.mxu0 0.0
  %615 = vmatpush1.msra.mxu0 0.0
  %616 = vmatprep.subr.mxu0 0.0
  %617 = vmatpush1.msra.mxu0 0.0
  %618 = vmatprep.subr.mxu0 0.0
  %619 = vmatpush1.msra.mxu0 0.0
  %620 = vmatprep.subr.mxu0 0.0
  %621 = vmatpush1.msra.mxu0 0.0
  %622 = vmatprep.subr.mxu0 0.0
  %623 = vmatpush1.msra.mxu0 0.0
  %624 = vmatprep.subr.mxu0 0.0
  %625 = vmatpush1.msra.mxu0 0.0
  %626 = vmatprep.subr.mxu0 0.0
  %627 = vmatpush1.msra.mxu0 0.0
  %628 = vmatprep.subr.mxu0 0.0
  %629 = vmatpush1.msra.mxu0 0.0
  %630 = vmatprep.subr.mxu0 0.0
  %631 = vmatpush1.msra.mxu0 0.0
  %632 = vmatprep.subr.mxu0 0.0
  %633 = vmatpush1.msra.mxu0 0.0
  %634 = vmatprep.subr.mxu0 0.0
  %635 = vmatpush1.msra.mxu0 0.0
  %636 = vmatprep.subr.mxu0 0.0
  %637 = vmatpush1.msra.mxu0 0.0
  %638 = vmatprep.subr.mxu0 0.0
  %639 = vmatpush1.msra.mxu0 0.0
  %640 = vmatprep.subr.mxu0 0.0
  %641 = vmatpush1.msra.mxu0 0.0
  %642 = vmatprep.subr.mxu0 0.0
  %643 = vmatpush1.msra.mxu0 0.0
  %644 = vmatprep.subr.mxu0 0.0
  %645 = vmatpush1.msra.mxu0 0.0
  %646 = vmatprep.subr.mxu0 0.0
  %647 = vmatpush1.msra.mxu0 0.0
  %648 = vmatprep.subr.mxu0 0.0
  %649 = vmatpush1.msra.mxu0 0.0
  %650 = vmatprep.subr.mxu0 0.0
  %651 = vmatpush1.msra.mxu0 0.0
  %652 = vmatprep.subr.mxu0 0.0
  %653 = vmatpush1.msra.mxu0 0.0
  %654 = vmatprep.subr.mxu0 0.0
  %655 = vmatpush1.msra.mxu0 0.0
  %656 = vmatprep.subr.mxu0 0.0
  %657 = vmatpush1.msra.mxu0 0.0
  %658 = vmatprep.subr.mxu0 0.0
  %659 = vmatpush1.msra.mxu0 0.0
  %660 = vmatprep.subr.mxu0 0.0
  %661 = vmatpush1.msra.mxu0 0.0
  %662 = vmatprep.subr.mxu0 0.0
  %663 = vmatpush1.msra.mxu0 0.0
  %664 = vmatprep.mubr.f32.mxu0 0.0
  %665 = vmatmul.mubr.f32.gmra.mrb[0].mxu0 %v598
  %v666 = vpop.f32.mrb[0].mxu0
  %v667 = vadd.f32 0.0, %v666
  %v668 = vpop.f32.mrb[0].mxu0
  %669 = vdwg.mxu0
  %671 = vrot.lane.b32.xlu0 %v589, 32
  %v672 = vpop.permute.xlu0 %671
  %v673 = vsel %vm197, %v672, 0
  %675 = vmatprep.subr.mxu0 0.0
  %676 = vmatpush1.msra.mxu0 %v590
  %677 = vmatprep.subr.mxu0 0.0
  %678 = vmatpush1.msra.mxu0 %v591
  %679 = vmatprep.subr.mxu0 0.0
  %680 = vmatpush1.msra.mxu0 %v592
  %681 = vmatprep.subr.mxu0 0.0
  %682 = vmatpush1.msra.mxu0 %v593
  %683 = vmatprep.subr.mxu0 0.0
  %684 = vmatpush1.msra.mxu0 0.0
  %685 = vmatprep.subr.mxu0 0.0
  %686 = vmatpush1.msra.mxu0 0.0
  %687 = vmatprep.subr.mxu0 0.0
  %688 = vmatpush1.msra.mxu0 0.0
  %689 = vmatprep.subr.mxu0 0.0
  %690 = vmatpush1.msra.mxu0 0.0
  %691 = vmatprep.subr.mxu0 0.0
  %692 = vmatpush1.msra.mxu0 0.0
  %693 = vmatprep.subr.mxu0 0.0
  %694 = vmatpush1.msra.mxu0 0.0
  %695 = vmatprep.subr.mxu0 0.0
  %696 = vmatpush1.msra.mxu0 0.0
  %697 = vmatprep.subr.mxu0 0.0
  %698 = vmatpush1.msra.mxu0 0.0
  %699 = vmatprep.subr.mxu0 0.0
  %700 = vmatpush1.msra.mxu0 0.0
  %701 = vmatprep.subr.mxu0 0.0
  %702 = vmatpush1.msra.mxu0 0.0
  %703 = vmatprep.subr.mxu0 0.0
  %704 = vmatpush1.msra.mxu0 0.0
  %705 = vmatprep.subr.mxu0 0.0
  %706 = vmatpush1.msra.mxu0 0.0
  %707 = vmatprep.subr.mxu0 0.0
  %708 = vmatpush1.msra.mxu0 0.0
  %709 = vmatprep.subr.mxu0 0.0
  %710 = vmatpush1.msra.mxu0 0.0
  %711 = vmatprep.subr.mxu0 0.0
  %712 = vmatpush1.msra.mxu0 0.0
  %713 = vmatprep.subr.mxu0 0.0
  %714 = vmatpush1.msra.mxu0 0.0
  %715 = vmatprep.subr.mxu0 0.0
  %716 = vmatpush1.msra.mxu0 0.0
  %717 = vmatprep.subr.mxu0 0.0
  %718 = vmatpush1.msra.mxu0 0.0
  %719 = vmatprep.subr.mxu0 0.0
  %720 = vmatpush1.msra.mxu0 0.0
  %721 = vmatprep.subr.mxu0 0.0
  %722 = vmatpush1.msra.mxu0 0.0
  %723 = vmatprep.subr.mxu0 0.0
  %724 = vmatpush1.msra.mxu0 0.0
  %725 = vmatprep.subr.mxu0 0.0
  %726 = vmatpush1.msra.mxu0 0.0
  %727 = vmatprep.subr.mxu0 0.0
  %728 = vmatpush1.msra.mxu0 0.0
  %729 = vmatprep.subr.mxu0 0.0
  %730 = vmatpush1.msra.mxu0 0.0
  %731 = vmatprep.subr.mxu0 0.0
  %732 = vmatpush1.msra.mxu0 0.0
  %733 = vmatprep.subr.mxu0 0.0
  %734 = vmatpush1.msra.mxu0 0.0
  %735 = vmatprep.subr.mxu0 0.0
  %736 = vmatpush1.msra.mxu0 0.0
  %737 = vmatprep.subr.mxu0 0.0
  %738 = vmatpush1.msra.mxu0 0.0
  %739 = vmatprep.mubr.f32.mxu0 0.0
  %740 = vmatmul.mubr.f32.gmra.mrb[0].mxu0 %v673
  %v741 = vpop.f32.mrb[0].mxu0
  %v742 = vadd.f32 %v667, %v741
  %v743 = vpop.f32.mrb[0].mxu0
  %744 = vdwg.mxu0
  %v745 = vld [vmem:[%s6] sm:$0x1]
  %v747 = vlaneseq
  %v748 = vshrl.u32 %v747, 7
  %v749 = vsub.s32 0, %v748
  %v750 = vrot.slane %v745, %v749
  %v752 = vadd.f32 %v742, %v750
  %v753 = vtanh.pop %v752
  %v754 = vxor.u32 %v752, 2147483648
  %v755 = vmul.f32 %v754, 1.442695
  %v756 = vpow.pop %v755
  %v757 = vadd.f32 %v756, 1.0
  %v758 = vrcp.pop %v757
  %v759 = vmul.f32 1.0, %v758
  %v760 = vsel %vm191, %v753, %v759
  %v761 = vmul.f32 %v760, %v476
  %763 = vrot.lane.b32.xlu0 %v760, 64
  %v764 = vpop.permute.xlu0 %763
  %v766 = vmul.f32 %v760, %v764
  %768 = vrot.lane.b32.xlu0 %v766, 32
  %v769 = vpop.permute.xlu0 %768
  %v771 = vadd.f32 %v761, %v769
  %v772 = vtanh.pop %v771
  %774 = vrot.lane.b32.xlu0 %v772, 64
  %v775 = vpop.permute.xlu0 %774
  %v777 = vmul.f32 %v760, %v775
  %779 = vrot.lane.b32.xlu0 %v777, 32
  %v780 = vpop.permute.xlu0 %779
  %s782 = scalar_lea.vmem [#allocation3], 8
  %783 = vst.msk [vmem:[%s782] sm:$0xff] %vm197, %v780
  %s784 = scalar_lea.vmem [#allocation2], 16
  %v785 = vld [vmem:[%s784] sm:$0xff]
  %v786 = vld [vmem:[%s2] sm:$0xff]
  %v787 = vld [vmem:[%s2 + $0x8] sm:$0xff]
  %v788 = vld [vmem:[%s2 + $0x10] sm:$0xff]
  %v789 = vld [vmem:[%s2 + $0x18] sm:$0xff]
  %790 = vmatprep.subr.mxu0 0.0
  %791 = vmatpush1.msra.mxu0 %v786
  %792 = vmatprep.subr.mxu0 0.0
  %793 = vmatpush1.msra.mxu0 %v787
  %794 = vmatprep.subr.mxu0 0.0
  %795 = vmatpush1.msra.mxu0 %v788
  %796 = vmatprep.subr.mxu0 0.0
  %797 = vmatpush1.msra.mxu0 %v789
  %798 = vmatprep.subr.mxu0 0.0
  %799 = vmatpush1.msra.mxu0 0.0
  %800 = vmatprep.subr.mxu0 0.0
  %801 = vmatpush1.msra.mxu0 0.0
  %802 = vmatprep.subr.mxu0 0.0
  %803 = vmatpush1.msra.mxu0 0.0
  %804 = vmatprep.subr.mxu0 0.0
  %805 = vmatpush1.msra.mxu0 0.0
  %806 = vmatprep.subr.mxu0 0.0
  %807 = vmatpush1.msra.mxu0 0.0
  %808 = vmatprep.subr.mxu0 0.0
  %809 = vmatpush1.msra.mxu0 0.0
  %810 = vmatprep.subr.mxu0 0.0
  %811 = vmatpush1.msra.mxu0 0.0
  %812 = vmatprep.subr.mxu0 0.0
  %813 = vmatpush1.msra.mxu0 0.0
  %814 = vmatprep.subr.mxu0 0.0
  %815 = vmatpush1.msra.mxu0 0.0
  %816 = vmatprep.subr.mxu0 0.0
  %817 = vmatpush1.msra.mxu0 0.0
  %818 = vmatprep.subr.mxu0 0.0
  %819 = vmatpush1.msra.mxu0 0.0
  %820 = vmatprep.subr.mxu0 0.0
  %821 = vmatpush1.msra.mxu0 0.0
  %822 = vmatprep.subr.mxu0 0.0
  %823 = vmatpush1.msra.mxu0 0.0
  %824 = vmatprep.subr.mxu0 0.0
  %825 = vmatpush1.msra.mxu0 0.0
  %826 = vmatprep.subr.mxu0 0.0
  %827 = vmatpush1.msra.mxu0 0.0
  %828 = vmatprep.subr.mxu0 0.0
  %829 = vmatpush1.msra.mxu0 0.0
  %830 = vmatprep.subr.mxu0 0.0
  %831 = vmatpush1.msra.mxu0 0.0
  %832 = vmatprep.subr.mxu0 0.0
  %833 = vmatpush1.msra.mxu0 0.0
  %834 = vmatprep.subr.mxu0 0.0
  %835 = vmatpush1.msra.mxu0 0.0
  %836 = vmatprep.subr.mxu0 0.0
  %837 = vmatpush1.msra.mxu0 0.0
  %838 = vmatprep.subr.mxu0 0.0
  %839 = vmatpush1.msra.mxu0 0.0
  %840 = vmatprep.subr.mxu0 0.0
  %841 = vmatpush1.msra.mxu0 0.0
  %842 = vmatprep.subr.mxu0 0.0
  %843 = vmatpush1.msra.mxu0 0.0
  %844 = vmatprep.subr.mxu0 0.0
  %845 = vmatpush1.msra.mxu0 0.0
  %846 = vmatprep.subr.mxu0 0.0
  %847 = vmatpush1.msra.mxu0 0.0
  %848 = vmatprep.subr.mxu0 0.0
  %849 = vmatpush1.msra.mxu0 0.0
  %850 = vmatprep.subr.mxu0 0.0
  %851 = vmatpush1.msra.mxu0 0.0
  %852 = vmatprep.subr.mxu0 0.0
  %853 = vmatpush1.msra.mxu0 0.0
  %854 = vmatprep.mubr.f32.mxu0 0.0
  %855 = vmatmul.mubr.f32.gmra.mrb[0].mxu0 %v673
  %v856 = vpop.f32.mrb[0].mxu0
  %v857 = vadd.f32 0.0, %v856
  %v858 = vpop.f32.mrb[0].mxu0
  %859 = vdwg.mxu0
  %v860 = vadd.f32 %v785, %v857
  %v861 = vtanh.pop %v860
  %v862 = vxor.u32 %v860, 2147483648
  %v863 = vmul.f32 %v862, 1.442695
  %v864 = vpow.pop %v863
  %v865 = vadd.f32 %v864, 1.0
  %v866 = vrcp.pop %v865
  %v867 = vmul.f32 1.0, %v866
  %v868 = vsel %vm191, %v861, %v867
  %v869 = vmul.f32 %v868, %v583
  %871 = vrot.lane.b32.xlu0 %v868, 64
  %v872 = vpop.permute.xlu0 %871
  %v874 = vmul.f32 %v868, %v872
  %876 = vrot.lane.b32.xlu0 %v874, 32
  %v877 = vpop.permute.xlu0 %876
  %v879 = vadd.f32 %v869, %v877
  %v880 = vtanh.pop %v879
  %882 = vrot.lane.b32.xlu0 %v880, 64
  %v883 = vpop.permute.xlu0 %882
  %v885 = vmul.f32 %v868, %v883
  %v886 = vld [vmem:[%s4] sm:$0xff]
  %v887 = vld [vmem:[%s4 + $0x8] sm:$0xff]
  %v888 = vld [vmem:[%s4 + $0x10] sm:$0xff]
  %v889 = vld [vmem:[%s4 + $0x18] sm:$0xff]
  %v890 = vld [vmem:[%s5] sm:$0xff]
  %v891 = vld [vmem:[%s5 + $0x8] sm:$0xff]
  %v892 = vld [vmem:[%s5 + $0x10] sm:$0xff]
  %v893 = vld [vmem:[%s5 + $0x18] sm:$0xff]
  %v894 = vsel %vm197, %v780, 0
  %896 = vmatprep.subr.mxu0 0.0
  %897 = vmatpush1.msra.mxu0 %v890
  %898 = vmatprep.subr.mxu0 0.0
  %899 = vmatpush1.msra.mxu0 %v891
  %900 = vmatprep.subr.mxu0 0.0
  %901 = vmatpush1.msra.mxu0 %v892
  %902 = vmatprep.subr.mxu0 0.0
  %903 = vmatpush1.msra.mxu0 %v893
  %904 = vmatprep.subr.mxu0 0.0
  %905 = vmatpush1.msra.mxu0 0.0
  %906 = vmatprep.subr.mxu0 0.0
  %907 = vmatpush1.msra.mxu0 0.0
  %908 = vmatprep.subr.mxu0 0.0
  %909 = vmatpush1.msra.mxu0 0.0
  %910 = vmatprep.subr.mxu0 0.0
  %911 = vmatpush1.msra.mxu0 0.0
  %912 = vmatprep.subr.mxu0 0.0
  %913 = vmatpush1.msra.mxu0 0.0
  %914 = vmatprep.subr.mxu0 0.0
  %915 = vmatpush1.msra.mxu0 0.0
  %916 = vmatprep.subr.mxu0 0.0
  %917 = vmatpush1.msra.mxu0 0.0
  %918 = vmatprep.subr.mxu0 0.0
  %919 = vmatpush1.msra.mxu0 0.0
  %920 = vmatprep.subr.mxu0 0.0
  %921 = vmatpush1.msra.mxu0 0.0
  %922 = vmatprep.subr.mxu0 0.0
  %923 = vmatpush1.msra.mxu0 0.0
  %924 = vmatprep.subr.mxu0 0.0
  %925 = vmatpush1.msra.mxu0 0.0
  %926 = vmatprep.subr.mxu0 0.0
  %927 = vmatpush1.msra.mxu0 0.0
  %928 = vmatprep.subr.mxu0 0.0
  %929 = vmatpush1.msra.mxu0 0.0
  %930 = vmatprep.subr.mxu0 0.0
  %931 = vmatpush1.msra.mxu0 0.0
  %932 = vmatprep.subr.mxu0 0.0
  %933 = vmatpush1.msra.mxu0 0.0
  %934 = vmatprep.subr.mxu0 0.0
  %935 = vmatpush1.msra.mxu0 0.0
  %936 = vmatprep.subr.mxu0 0.0
  %937 = vmatpush1.msra.mxu0 0.0
  %938 = vmatprep.subr.mxu0 0.0
  %939 = vmatpush1.msra.mxu0 0.0
  %940 = vmatprep.subr.mxu0 0.0
  %941 = vmatpush1.msra.mxu0 0.0
  %942 = vmatprep.subr.mxu0 0.0
  %943 = vmatpush1.msra.mxu0 0.0
  %944 = vmatprep.subr.mxu0 0.0
  %945 = vmatpush1.msra.mxu0 0.0
  %946 = vmatprep.subr.mxu0 0.0
  %947 = vmatpush1.msra.mxu0 0.0
  %948 = vmatprep.subr.mxu0 0.0
  %949 = vmatpush1.msra.mxu0 0.0
  %950 = vmatprep.subr.mxu0 0.0
  %951 = vmatpush1.msra.mxu0 0.0
  %952 = vmatprep.subr.mxu0 0.0
  %953 = vmatpush1.msra.mxu0 0.0
  %954 = vmatprep.subr.mxu0 0.0
  %955 = vmatpush1.msra.mxu0 0.0
  %956 = vmatprep.subr.mxu0 0.0
  %957 = vmatpush1.msra.mxu0 0.0
  %958 = vmatprep.subr.mxu0 0.0
  %959 = vmatpush1.msra.mxu0 0.0
  %960 = vmatprep.mubr.f32.mxu0 0.0
  %961 = vmatmul.mubr.f32.gmra.mrb[0].mxu0 %v894
  %v962 = vpop.f32.mrb[0].mxu0
  %v963 = vadd.f32 0.0, %v962
  %v964 = vpop.f32.mrb[0].mxu0
  %965 = vdwg.mxu0
  %967 = vrot.lane.b32.xlu0 %v885, 32
  %v968 = vpop.permute.xlu0 %967
  %v969 = vsel %vm197, %v968, 0
  %971 = vmatprep.subr.mxu0 0.0
  %972 = vmatpush1.msra.mxu0 %v886
  %973 = vmatprep.subr.mxu0 0.0
  %974 = vmatpush1.msra.mxu0 %v887
  %975 = vmatprep.subr.mxu0 0.0
  %976 = vmatpush1.msra.mxu0 %v888
  %977 = vmatprep.subr.mxu0 0.0
  %978 = vmatpush1.msra.mxu0 %v889
  %979 = vmatprep.subr.mxu0 0.0
  %980 = vmatpush1.msra.mxu0 0.0
  %981 = vmatprep.subr.mxu0 0.0
  %982 = vmatpush1.msra.mxu0 0.0
  %983 = vmatprep.subr.mxu0 0.0
  %984 = vmatpush1.msra.mxu0 0.0
  %985 = vmatprep.subr.mxu0 0.0
  %986 = vmatpush1.msra.mxu0 0.0
  %987 = vmatprep.subr.mxu0 0.0
  %988 = vmatpush1.msra.mxu0 0.0
  %989 = vmatprep.subr.mxu0 0.0
  %990 = vmatpush1.msra.mxu0 0.0
  %991 = vmatprep.subr.mxu0 0.0
  %992 = vmatpush1.msra.mxu0 0.0
  %993 = vmatprep.subr.mxu0 0.0
  %994 = vmatpush1.msra.mxu0 0.0
  %995 = vmatprep.subr.mxu0 0.0
  %996 = vmatpush1.msra.mxu0 0.0
  %997 = vmatprep.subr.mxu0 0.0
  %998 = vmatpush1.msra.mxu0 0.0
  %999 = vmatprep.subr.mxu0 0.0
  %1000 = vmatpush1.msra.mxu0 0.0
  %1001 = vmatprep.subr.mxu0 0.0
  %1002 = vmatpush1.msra.mxu0 0.0
  %1003 = vmatprep.subr.mxu0 0.0
  %1004 = vmatpush1.msra.mxu0 0.0
  %1005 = vmatprep.subr.mxu0 0.0
  %1006 = vmatpush1.msra.mxu0 0.0
  %1007 = vmatprep.subr.mxu0 0.0
  %1008 = vmatpush1.msra.mxu0 0.0
  %1009 = vmatprep.subr.mxu0 0.0
  %1010 = vmatpush1.msra.mxu0 0.0
  %1011 = vmatprep.subr.mxu0 0.0
  %1012 = vmatpush1.msra.mxu0 0.0
  %1013 = vmatprep.subr.mxu0 0.0
  %1014 = vmatpush1.msra.mxu0 0.0
  %1015 = vmatprep.subr.mxu0 0.0
  %1016 = vmatpush1.msra.mxu0 0.0
  %1017 = vmatprep.subr.mxu0 0.0
  %1018 = vmatpush1.msra.mxu0 0.0
  %1019 = vmatprep.subr.mxu0 0.0
  %1020 = vmatpush1.msra.mxu0 0.0
  %1021 = vmatprep.subr.mxu0 0.0
  %1022 = vmatpush1.msra.mxu0 0.0
  %1023 = vmatprep.subr.mxu0 0.0
  %1024 = vmatpush1.msra.mxu0 0.0
  %1025 = vmatprep.subr.mxu0 0.0
  %1026 = vmatpush1.msra.mxu0 0.0
  %1027 = vmatprep.subr.mxu0 0.0
  %1028 = vmatpush1.msra.mxu0 0.0
  %1029 = vmatprep.subr.mxu0 0.0
  %1030 = vmatpush1.msra.mxu0 0.0
  %1031 = vmatprep.subr.mxu0 0.0
  %1032 = vmatpush1.msra.mxu0 0.0
  %1033 = vmatprep.subr.mxu0 0.0
  %1034 = vmatpush1.msra.mxu0 0.0
  %1035 = vmatprep.mubr.f32.mxu0 0.0
  %1036 = vmatmul.mubr.f32.gmra.mrb[0].mxu0 %v969
  %v1037 = vpop.f32.mrb[0].mxu0
  %v1038 = vadd.f32 %v963, %v1037
  %v1039 = vpop.f32.mrb[0].mxu0
  %1040 = vdwg.mxu0
  %v1041 = vld [vmem:[%s6] sm:$0x1]
  %v1043 = vlaneseq
  %v1044 = vshrl.u32 %v1043, 7
  %v1045 = vsub.s32 0, %v1044
  %v1046 = vrot.slane %v1041, %v1045
  %v1048 = vadd.f32 %v1038, %v1046
  %v1049 = vtanh.pop %v1048
  %v1050 = vxor.u32 %v1048, 2147483648
  %v1051 = vmul.f32 %v1050, 1.442695
  %v1052 = vpow.pop %v1051
  %v1053 = vadd.f32 %v1052, 1.0
  %v1054 = vrcp.pop %v1053
  %v1055 = vmul.f32 1.0, %v1054
  %v1056 = vsel %vm191, %v1049, %v1055
  %v1057 = vmul.f32 %v1056, %v771
  %1059 = vrot.lane.b32.xlu0 %v1056, 64
  %v1060 = vpop.permute.xlu0 %1059
  %v1062 = vmul.f32 %v1056, %v1060
  %1064 = vrot.lane.b32.xlu0 %v1062, 32
  %v1065 = vpop.permute.xlu0 %1064
  %v1067 = vadd.f32 %v1057, %v1065
  %v1068 = vtanh.pop %v1067
  %1070 = vrot.lane.b32.xlu0 %v1068, 64
  %v1071 = vpop.permute.xlu0 %1070
  %v1073 = vmul.f32 %v1056, %v1071
  %1075 = vrot.lane.b32.xlu0 %v1073, 32
  %v1076 = vpop.permute.xlu0 %1075
  %s1078 = scalar_lea.vmem [#allocation3], 16
  %1079 = vst.msk [vmem:[%s1078] sm:$0xff] %vm197, %v1076
  %s1080 = scalar_lea.vmem [#allocation2], 24
  %v1081 = vld [vmem:[%s1080] sm:$0xff]
  %v1082 = vld [vmem:[%s2] sm:$0xff]
  %v1083 = vld [vmem:[%s2 + $0x8] sm:$0xff]
  %v1084 = vld [vmem:[%s2 + $0x10] sm:$0xff]
  %v1085 = vld [vmem:[%s2 + $0x18] sm:$0xff]
  %1086 = vmatprep.subr.mxu0 0.0
  %1087 = vmatpush1.msra.mxu0 %v1082
  %1088 = vmatprep.subr.mxu0 0.0
  %1089 = vmatpush1.msra.mxu0 %v1083
  %1090 = vmatprep.subr.mxu0 0.0
  %1091 = vmatpush1.msra.mxu0 %v1084
  %1092 = vmatprep.subr.mxu0 0.0
  %1093 = vmatpush1.msra.mxu0 %v1085
  %1094 = vmatprep.subr.mxu0 0.0
  %1095 = vmatpush1.msra.mxu0 0.0
  %1096 = vmatprep.subr.mxu0 0.0
  %1097 = vmatpush1.msra.mxu0 0.0
  %1098 = vmatprep.subr.mxu0 0.0
  %1099 = vmatpush1.msra.mxu0 0.0
  %1100 = vmatprep.subr.mxu0 0.0
  %1101 = vmatpush1.msra.mxu0 0.0
  %1102 = vmatprep.subr.mxu0 0.0
  %1103 = vmatpush1.msra.mxu0 0.0
  %1104 = vmatprep.subr.mxu0 0.0
  %1105 = vmatpush1.msra.mxu0 0.0
  %1106 = vmatprep.subr.mxu0 0.0
  %1107 = vmatpush1.msra.mxu0 0.0
  %1108 = vmatprep.subr.mxu0 0.0
  %1109 = vmatpush1.msra.mxu0 0.0
  %1110 = vmatprep.subr.mxu0 0.0
  %1111 = vmatpush1.msra.mxu0 0.0
  %1112 = vmatprep.subr.mxu0 0.0
  %1113 = vmatpush1.msra.mxu0 0.0
  %1114 = vmatprep.subr.mxu0 0.0
  %1115 = vmatpush1.msra.mxu0 0.0
  %1116 = vmatprep.subr.mxu0 0.0
  %1117 = vmatpush1.msra.mxu0 0.0
  %1118 = vmatprep.subr.mxu0 0.0
  %1119 = vmatpush1.msra.mxu0 0.0
  %1120 = vmatprep.subr.mxu0 0.0
  %1121 = vmatpush1.msra.mxu0 0.0
  %1122 = vmatprep.subr.mxu0 0.0
  %1123 = vmatpush1.msra.mxu0 0.0
  %1124 = vmatprep.subr.mxu0 0.0
  %1125 = vmatpush1.msra.mxu0 0.0
  %1126 = vmatprep.subr.mxu0 0.0
  %1127 = vmatpush1.msra.mxu0 0.0
  %1128 = vmatprep.subr.mxu0 0.0
  %1129 = vmatpush1.msra.mxu0 0.0
  %1130 = vmatprep.subr.mxu0 0.0
  %1131 = vmatpush1.msra.mxu0 0.0
  %1132 = vmatprep.subr.mxu0 0.0
  %1133 = vmatpush1.msra.mxu0 0.0
  %1134 = vmatprep.subr.mxu0 0.0
  %1135 = vmatpush1.msra.mxu0 0.0
  %1136 = vmatprep.subr.mxu0 0.0
  %1137 = vmatpush1.msra.mxu0 0.0
  %1138 = vmatprep.subr.mxu0 0.0
  %1139 = vmatpush1.msra.mxu0 0.0
  %1140 = vmatprep.subr.mxu0 0.0
  %1141 = vmatpush1.msra.mxu0 0.0
  %1142 = vmatprep.subr.mxu0 0.0
  %1143 = vmatpush1.msra.mxu0 0.0
  %1144 = vmatprep.subr.mxu0 0.0
  %1145 = vmatpush1.msra.mxu0 0.0
  %1146 = vmatprep.subr.mxu0 0.0
  %1147 = vmatpush1.msra.mxu0 0.0
  %1148 = vmatprep.subr.mxu0 0.0
  %1149 = vmatpush1.msra.mxu0 0.0
  %1150 = vmatprep.mubr.f32.mxu0 0.0
  %1151 = vmatmul.mubr.f32.gmra.mrb[0].mxu0 %v969
  %v1152 = vpop.f32.mrb[0].mxu0
  %v1153 = vadd.f32 0.0, %v1152
  %v1154 = vpop.f32.mrb[0].mxu0
  %1155 = vdwg.mxu0
  %v1156 = vadd.f32 %v1081, %v1153
  %v1157 = vtanh.pop %v1156
  %v1158 = vxor.u32 %v1156, 2147483648
  %v1159 = vmul.f32 %v1158, 1.442695
  %v1160 = vpow.pop %v1159
  %v1161 = vadd.f32 %v1160, 1.0
  %v1162 = vrcp.pop %v1161
  %v1163 = vmul.f32 1.0, %v1162
  %v1164 = vsel %vm191, %v1157, %v1163
  %v1165 = vmul.f32 %v1164, %v879
  %1167 = vrot.lane.b32.xlu0 %v1164, 64
  %v1168 = vpop.permute.xlu0 %1167
  %v1170 = vmul.f32 %v1164, %v1168
  %1172 = vrot.lane.b32.xlu0 %v1170, 32
  %v1173 = vpop.permute.xlu0 %1172
  %v1175 = vadd.f32 %v1165, %v1173
  %v1176 = vtanh.pop %v1175
  %1178 = vrot.lane.b32.xlu0 %v1176, 64
  %v1179 = vpop.permute.xlu0 %1178
  %v1181 = vmul.f32 %v1164, %v1179
  %v1182 = vld [vmem:[%s4] sm:$0xff]
  %v1183 = vld [vmem:[%s4 + $0x8] sm:$0xff]
  %v1184 = vld [vmem:[%s4 + $0x10] sm:$0xff]
  %v1185 = vld [vmem:[%s4 + $0x18] sm:$0xff]
  %v1186 = vld [vmem:[%s5] sm:$0xff]
  %v1187 = vld [vmem:[%s5 + $0x8] sm:$0xff]
  %v1188 = vld [vmem:[%s5 + $0x10] sm:$0xff]
  %v1189 = vld [vmem:[%s5 + $0x18] sm:$0xff]
  %v1190 = vsel %vm197, %v1076, 0
  %1192 = vmatprep.subr.mxu0 0.0
  %1193 = vmatpush1.msra.mxu0 %v1186
  %1194 = vmatprep.subr.mxu0 0.0
  %1195 = vmatpush1.msra.mxu0 %v1187
  %1196 = vmatprep.subr.mxu0 0.0
  %1197 = vmatpush1.msra.mxu0 %v1188
  %1198 = vmatprep.subr.mxu0 0.0
  %1199 = vmatpush1.msra.mxu0 %v1189
  %1200 = vmatprep.subr.mxu0 0.0
  %1201 = vmatpush1.msra.mxu0 0.0
  %1202 = vmatprep.subr.mxu0 0.0
  %1203 = vmatpush1.msra.mxu0 0.0
  %1204 = vmatprep.subr.mxu0 0.0
  %1205 = vmatpush1.msra.mxu0 0.0
  %1206 = vmatprep.subr.mxu0 0.0
  %1207 = vmatpush1.msra.mxu0 0.0
  %1208 = vmatprep.subr.mxu0 0.0
  %1209 = vmatpush1.msra.mxu0 0.0
  %1210 = vmatprep.subr.mxu0 0.0
  %1211 = vmatpush1.msra.mxu0 0.0
  %1212 = vmatprep.subr.mxu0 0.0
  %1213 = vmatpush1.msra.mxu0 0.0
  %1214 = vmatprep.subr.mxu0 0.0
  %1215 = vmatpush1.msra.mxu0 0.0
  %1216 = vmatprep.subr.mxu0 0.0
  %1217 = vmatpush1.msra.mxu0 0.0
  %1218 = vmatprep.subr.mxu0 0.0
  %1219 = vmatpush1.msra.mxu0 0.0
  %1220 = vmatprep.subr.mxu0 0.0
  %1221 = vmatpush1.msra.mxu0 0.0
  %1222 = vmatprep.subr.mxu0 0.0
  %1223 = vmatpush1.msra.mxu0 0.0
  %1224 = vmatprep.subr.mxu0 0.0
  %1225 = vmatpush1.msra.mxu0 0.0
  %1226 = vmatprep.subr.mxu0 0.0
  %1227 = vmatpush1.msra.mxu0 0.0
  %1228 = vmatprep.subr.mxu0 0.0
  %1229 = vmatpush1.msra.mxu0 0.0
  %1230 = vmatprep.subr.mxu0 0.0
  %1231 = vmatpush1.msra.mxu0 0.0
  %1232 = vmatprep.subr.mxu0 0.0
  %1233 = vmatpush1.msra.mxu0 0.0
  %1234 = vmatprep.subr.mxu0 0.0
  %1235 = vmatpush1.msra.mxu0 0.0
  %1236 = vmatprep.subr.mxu0 0.0
  %1237 = vmatpush1.msra.mxu0 0.0
  %1238 = vmatprep.subr.mxu0 0.0
  %1239 = vmatpush1.msra.mxu0 0.0
  %1240 = vmatprep.subr.mxu0 0.0
  %1241 = vmatpush1.msra.mxu0 0.0
  %1242 = vmatprep.subr.mxu0 0.0
  %1243 = vmatpush1.msra.mxu0 0.0
  %1244 = vmatprep.subr.mxu0 0.0
  %1245 = vmatpush1.msra.mxu0 0.0
  %1246 = vmatprep.subr.mxu0 0.0
  %1247 = vmatpush1.msra.mxu0 0.0
  %1248 = vmatprep.subr.mxu0 0.0
  %1249 = vmatpush1.msra.mxu0 0.0
  %1250 = vmatprep.subr.mxu0 0.0
  %1251 = vmatpush1.msra.mxu0 0.0
  %1252 = vmatprep.subr.mxu0 0.0
  %1253 = vmatpush1.msra.mxu0 0.0
  %1254 = vmatprep.subr.mxu0 0.0
  %1255 = vmatpush1.msra.mxu0 0.0
  %1256 = vmatprep.mubr.f32.mxu0 0.0
  %1257 = vmatmul.mubr.f32.gmra.mrb[0].mxu0 %v1190
  %v1258 = vpop.f32.mrb[0].mxu0
  %v1259 = vadd.f32 0.0, %v1258
  %v1260 = vpop.f32.mrb[0].mxu0
  %1261 = vdwg.mxu0
  %1263 = vrot.lane.b32.xlu0 %v1181, 32
  %v1264 = vpop.permute.xlu0 %1263
  %v1265 = vsel %vm197, %v1264, 0
  %1267 = vmatprep.subr.mxu0 0.0
  %1268 = vmatpush1.msra.mxu0 %v1182
  %1269 = vmatprep.subr.mxu0 0.0
  %1270 = vmatpush1.msra.mxu0 %v1183
  %1271 = vmatprep.subr.mxu0 0.0
  %1272 = vmatpush1.msra.mxu0 %v1184
  %1273 = vmatprep.subr.mxu0 0.0
  %1274 = vmatpush1.msra.mxu0 %v1185
  %1275 = vmatprep.subr.mxu0 0.0
  %1276 = vmatpush1.msra.mxu0 0.0
  %1277 = vmatprep.subr.mxu0 0.0
  %1278 = vmatpush1.msra.mxu0 0.0
  %1279 = vmatprep.subr.mxu0 0.0
  %1280 = vmatpush1.msra.mxu0 0.0
  %1281 = vmatprep.subr.mxu0 0.0
  %1282 = vmatpush1.msra.mxu0 0.0
  %1283 = vmatprep.subr.mxu0 0.0
  %1284 = vmatpush1.msra.mxu0 0.0
  %1285 = vmatprep.subr.mxu0 0.0
  %1286 = vmatpush1.msra.mxu0 0.0
  %1287 = vmatprep.subr.mxu0 0.0
  %1288 = vmatpush1.msra.mxu0 0.0
  %1289 = vmatprep.subr.mxu0 0.0
  %1290 = vmatpush1.msra.mxu0 0.0
  %1291 = vmatprep.subr.mxu0 0.0
  %1292 = vmatpush1.msra.mxu0 0.0
  %1293 = vmatprep.subr.mxu0 0.0
  %1294 = vmatpush1.msra.mxu0 0.0
  %1295 = vmatprep.subr.mxu0 0.0
  %1296 = vmatpush1.msra.mxu0 0.0
  %1297 = vmatprep.subr.mxu0 0.0
  %1298 = vmatpush1.msra.mxu0 0.0
  %1299 = vmatprep.subr.mxu0 0.0
  %1300 = vmatpush1.msra.mxu0 0.0
  %1301 = vmatprep.subr.mxu0 0.0
  %1302 = vmatpush1.msra.mxu0 0.0
  %1303 = vmatprep.subr.mxu0 0.0
  %1304 = vmatpush1.msra.mxu0 0.0
  %1305 = vmatprep.subr.mxu0 0.0
  %1306 = vmatpush1.msra.mxu0 0.0
  %1307 = vmatprep.subr.mxu0 0.0
  %1308 = vmatpush1.msra.mxu0 0.0
  %1309 = vmatprep.subr.mxu0 0.0
  %1310 = vmatpush1.msra.mxu0 0.0
  %1311 = vmatprep.subr.mxu0 0.0
  %1312 = vmatpush1.msra.mxu0 0.0
  %1313 = vmatprep.subr.mxu0 0.0
  %1314 = vmatpush1.msra.mxu0 0.0
  %1315 = vmatprep.subr.mxu0 0.0
  %1316 = vmatpush1.msra.mxu0 0.0
  %1317 = vmatprep.subr.mxu0 0.0
  %1318 = vmatpush1.msra.mxu0 0.0
  %1319 = vmatprep.subr.mxu0 0.0
  %1320 = vmatpush1.msra.mxu0 0.0
  %1321 = vmatprep.subr.mxu0 0.0
  %1322 = vmatpush1.msra.mxu0 0.0
  %1323 = vmatprep.subr.mxu0 0.0
  %1324 = vmatpush1.msra.mxu0 0.0
  %1325 = vmatprep.subr.mxu0 0.0
  %1326 = vmatpush1.msra.mxu0 0.0
  %1327 = vmatprep.subr.mxu0 0.0
  %1328 = vmatpush1.msra.mxu0 0.0
  %1329 = vmatprep.subr.mxu0 0.0
  %1330 = vmatpush1.msra.mxu0 0.0
  %1331 = vmatprep.mubr.f32.mxu0 0.0
  %1332 = vmatmul.mubr.f32.gmra.mrb[0].mxu0 %v1265
  %v1333 = vpop.f32.mrb[0].mxu0
  %v1334 = vadd.f32 %v1259, %v1333
  %v1335 = vpop.f32.mrb[0].mxu0
  %1336 = vdwg.mxu0
  %v1337 = vld [vmem:[%s6] sm:$0x1]
  %v1339 = vlaneseq
  %v1340 = vshrl.u32 %v1339, 7
  %v1341 = vsub.s32 0, %v1340
  %v1342 = vrot.slane %v1337, %v1341
  %v1344 = vadd.f32 %v1334, %v1342
  %v1345 = vtanh.pop %v1344
  %v1346 = vxor.u32 %v1344, 2147483648
  %v1347 = vmul.f32 %v1346, 1.442695
  %v1348 = vpow.pop %v1347
  %v1349 = vadd.f32 %v1348, 1.0
  %v1350 = vrcp.pop %v1349
  %v1351 = vmul.f32 1.0, %v1350
  %v1352 = vsel %vm191, %v1345, %v1351
  %v1353 = vmul.f32 %v1352, %v1067
  %1355 = vrot.lane.b32.xlu0 %v1352, 64
  %v1356 = vpop.permute.xlu0 %1355
  %v1358 = vmul.f32 %v1352, %v1356
  %1360 = vrot.lane.b32.xlu0 %v1358, 32
  %v1361 = vpop.permute.xlu0 %1360
  %v1363 = vadd.f32 %v1353, %v1361
  %v1364 = vtanh.pop %v1363
  %1366 = vrot.lane.b32.xlu0 %v1364, 64
  %v1367 = vpop.permute.xlu0 %1366
  %v1369 = vmul.f32 %v1352, %v1367
  %1371 = vrot.lane.b32.xlu0 %v1369, 32
  %v1372 = vpop.permute.xlu0 %1371
  %s1374 = scalar_lea.vmem [#allocation3], 24
  %1375 = vst.msk [vmem:[%s1374] sm:$0xff] %vm197, %v1372
  %s1376 = scalar_lea.vmem [#allocation2], 32
  %v1377 = vld [vmem:[%s1376] sm:$0xff]
  %v1378 = vld [vmem:[%s2] sm:$0xff]
  %v1379 = vld [vmem:[%s2 + $0x8] sm:$0xff]
  %v1380 = vld [vmem:[%s2 + $0x10] sm:$0xff]
  %v1381 = vld [vmem:[%s2 + $0x18] sm:$0xff]
  %1382 = vmatprep.subr.mxu0 0.0
  %1383 = vmatpush1.msra.mxu0 %v1378
  %1384 = vmatprep.subr.mxu0 0.0
  %1385 = vmatpush1.msra.mxu0 %v1379
  %1386 = vmatprep.subr.mxu0 0.0
  %1387 = vmatpush1.msra.mxu0 %v1380
  %1388 = vmatprep.subr.mxu0 0.0
  %1389 = vmatpush1.msra.mxu0 %v1381
  %1390 = vmatprep.subr.mxu0 0.0
  %1391 = vmatpush1.msra.mxu0 0.0
  %1392 = vmatprep.subr.mxu0 0.0
  %1393 = vmatpush1.msra.mxu0 0.0
  %1394 = vmatprep.subr.mxu0 0.0
  %1395 = vmatpush1.msra.mxu0 0.0
  %1396 = vmatprep.subr.mxu0 0.0
  %1397 = vmatpush1.msra.mxu0 0.0
  %1398 = vmatprep.subr.mxu0 0.0
  %1399 = vmatpush1.msra.mxu0 0.0
  %1400 = vmatprep.subr.mxu0 0.0
  %1401 = vmatpush1.msra.mxu0 0.0
  %1402 = vmatprep.subr.mxu0 0.0
  %1403 = vmatpush1.msra.mxu0 0.0
  %1404 = vmatprep.subr.mxu0 0.0
  %1405 = vmatpush1.msra.mxu0 0.0
  %1406 = vmatprep.subr.mxu0 0.0
  %1407 = vmatpush1.msra.mxu0 0.0
  %1408 = vmatprep.subr.mxu0 0.0
  %1409 = vmatpush1.msra.mxu0 0.0
  %1410 = vmatprep.subr.mxu0 0.0
  %1411 = vmatpush1.msra.mxu0 0.0
  %1412 = vmatprep.subr.mxu0 0.0
  %1413 = vmatpush1.msra.mxu0 0.0
  %1414 = vmatprep.subr.mxu0 0.0
  %1415 = vmatpush1.msra.mxu0 0.0
  %1416 = vmatprep.subr.mxu0 0.0
  %1417 = vmatpush1.msra.mxu0 0.0
  %1418 = vmatprep.subr.mxu0 0.0
  %1419 = vmatpush1.msra.mxu0 0.0
  %1420 = vmatprep.subr.mxu0 0.0
  %1421 = vmatpush1.msra.mxu0 0.0
  %1422 = vmatprep.subr.mxu0 0.0
  %1423 = vmatpush1.msra.mxu0 0.0
  %1424 = vmatprep.subr.mxu0 0.0
  %1425 = vmatpush1.msra.mxu0 0.0
  %1426 = vmatprep.subr.mxu0 0.0
  %1427 = vmatpush1.msra.mxu0 0.0
  %1428 = vmatprep.subr.mxu0 0.0
  %1429 = vmatpush1.msra.mxu0 0.0
  %1430 = vmatprep.subr.mxu0 0.0
  %1431 = vmatpush1.msra.mxu0 0.0
  %1432 = vmatprep.subr.mxu0 0.0
  %1433 = vmatpush1.msra.mxu0 0.0
  %1434 = vmatprep.subr.mxu0 0.0
  %1435 = vmatpush1.msra.mxu0 0.0
  %1436 = vmatprep.subr.mxu0 0.0
  %1437 = vmatpush1.msra.mxu0 0.0
  %1438 = vmatprep.subr.mxu0 0.0
  %1439 = vmatpush1.msra.mxu0 0.0
  %1440 = vmatprep.subr.mxu0 0.0
  %1441 = vmatpush1.msra.mxu0 0.0
  %1442 = vmatprep.subr.mxu0 0.0
  %1443 = vmatpush1.msra.mxu0 0.0
  %1444 = vmatprep.subr.mxu0 0.0
  %1445 = vmatpush1.msra.mxu0 0.0
  %1446 = vmatprep.mubr.f32.mxu0 0.0
  %1447 = vmatmul.mubr.f32.gmra.mrb[0].mxu0 %v1265
  %v1448 = vpop.f32.mrb[0].mxu0
  %v1449 = vadd.f32 0.0, %v1448
  %v1450 = vpop.f32.mrb[0].mxu0
  %1451 = vdwg.mxu0
  %v1452 = vadd.f32 %v1377, %v1449
  %v1453 = vtanh.pop %v1452
  %v1454 = vxor.u32 %v1452, 2147483648
  %v1455 = vmul.f32 %v1454, 1.442695
  %v1456 = vpow.pop %v1455
  %v1457 = vadd.f32 %v1456, 1.0
  %v1458 = vrcp.pop %v1457
  %v1459 = vmul.f32 1.0, %v1458
  %v1460 = vsel %vm191, %v1453, %v1459
  %v1461 = vmul.f32 %v1460, %v1175
  %1463 = vrot.lane.b32.xlu0 %v1460, 64
  %v1464 = vpop.permute.xlu0 %1463
  %v1466 = vmul.f32 %v1460, %v1464
  %1468 = vrot.lane.b32.xlu0 %v1466, 32
  %v1469 = vpop.permute.xlu0 %1468
  %v1471 = vadd.f32 %v1461, %v1469
  %v1472 = vtanh.pop %v1471
  %1474 = vrot.lane.b32.xlu0 %v1472, 64
  %v1475 = vpop.permute.xlu0 %1474
  %v1477 = vmul.f32 %v1460, %v1475
  %v1478 = vld [vmem:[%s4] sm:$0xff]
  %v1479 = vld [vmem:[%s4 + $0x8] sm:$0xff]
  %v1480 = vld [vmem:[%s4 + $0x10] sm:$0xff]
  %v1481 = vld [vmem:[%s4 + $0x18] sm:$0xff]
  %v1482 = vld [vmem:[%s5] sm:$0xff]
  %v1483 = vld [vmem:[%s5 + $0x8] sm:$0xff]
  %v1484 = vld [vmem:[%s5 + $0x10] sm:$0xff]
  %v1485 = vld [vmem:[%s5 + $0x18] sm:$0xff]
  %v1486 = vsel %vm197, %v1372, 0
  %1488 = vmatprep.subr.mxu0 0.0
  %1489 = vmatpush1.msra.mxu0 %v1482
  %1490 = vmatprep.subr.mxu0 0.0
  %1491 = vmatpush1.msra.mxu0 %v1483
  %1492 = vmatprep.subr.mxu0 0.0
  %1493 = vmatpush1.msra.mxu0 %v1484
  %1494 = vmatprep.subr.mxu0 0.0
  %1495 = vmatpush1.msra.mxu0 %v1485
  %1496 = vmatprep.subr.mxu0 0.0
  %1497 = vmatpush1.msra.mxu0 0.0
  %1498 = vmatprep.subr.mxu0 0.0
  %1499 = vmatpush1.msra.mxu0 0.0
  %1500 = vmatprep.subr.mxu0 0.0
  %1501 = vmatpush1.msra.mxu0 0.0
  %1502 = vmatprep.subr.mxu0 0.0
  %1503 = vmatpush1.msra.mxu0 0.0
  %1504 = vmatprep.subr.mxu0 0.0
  %1505 = vmatpush1.msra.mxu0 0.0
  %1506 = vmatprep.subr.mxu0 0.0
  %1507 = vmatpush1.msra.mxu0 0.0
  %1508 = vmatprep.subr.mxu0 0.0
  %1509 = vmatpush1.msra.mxu0 0.0
  %1510 = vmatprep.subr.mxu0 0.0
  %1511 = vmatpush1.msra.mxu0 0.0
  %1512 = vmatprep.subr.mxu0 0.0
  %1513 = vmatpush1.msra.mxu0 0.0
  %1514 = vmatprep.subr.mxu0 0.0
  %1515 = vmatpush1.msra.mxu0 0.0
  %1516 = vmatprep.subr.mxu0 0.0
  %1517 = vmatpush1.msra.mxu0 0.0
  %1518 = vmatprep.subr.mxu0 0.0
  %1519 = vmatpush1.msra.mxu0 0.0
  %1520 = vmatprep.subr.mxu0 0.0
  %1521 = vmatpush1.msra.mxu0 0.0
  %1522 = vmatprep.subr.mxu0 0.0
  %1523 = vmatpush1.msra.mxu0 0.0
  %1524 = vmatprep.subr.mxu0 0.0
  %1525 = vmatpush1.msra.mxu0 0.0
  %1526 = vmatprep.subr.mxu0 0.0
  %1527 = vmatpush1.msra.mxu0 0.0
  %1528 = vmatprep.subr.mxu0 0.0
  %1529 = vmatpush1.msra.mxu0 0.0
  %1530 = vmatprep.subr.mxu0 0.0
  %1531 = vmatpush1.msra.mxu0 0.0
  %1532 = vmatprep.subr.mxu0 0.0
  %1533 = vmatpush1.msra.mxu0 0.0
  %1534 = vmatprep.subr.mxu0 0.0
  %1535 = vmatpush1.msra.mxu0 0.0
  %1536 = vmatprep.subr.mxu0 0.0
  %1537 = vmatpush1.msra.mxu0 0.0
  %1538 = vmatprep.subr.mxu0 0.0
  %1539 = vmatpush1.msra.mxu0 0.0
  %1540 = vmatprep.subr.mxu0 0.0
  %1541 = vmatpush1.msra.mxu0 0.0
  %1542 = vmatprep.subr.mxu0 0.0
  %1543 = vmatpush1.msra.mxu0 0.0
  %1544 = vmatprep.subr.mxu0 0.0
  %1545 = vmatpush1.msra.mxu0 0.0
  %1546 = vmatprep.subr.mxu0 0.0
  %1547 = vmatpush1.msra.mxu0 0.0
  %1548 = vmatprep.subr.mxu0 0.0
  %1549 = vmatpush1.msra.mxu0 0.0
  %1550 = vmatprep.subr.mxu0 0.0
  %1551 = vmatpush1.msra.mxu0 0.0
  %1552 = vmatprep.mubr.f32.mxu0 0.0
  %1553 = vmatmul.mubr.f32.gmra.mrb[0].mxu0 %v1486
  %v1554 = vpop.f32.mrb[0].mxu0
  %v1555 = vadd.f32 0.0, %v1554
  %v1556 = vpop.f32.mrb[0].mxu0
  %1557 = vdwg.mxu0
  %1559 = vrot.lane.b32.xlu0 %v1477, 32
  %v1560 = vpop.permute.xlu0 %1559
  %v1561 = vsel %vm197, %v1560, 0
  %1563 = vmatprep.subr.mxu0 0.0
  %1564 = vmatpush1.msra.mxu0 %v1478
  %1565 = vmatprep.subr.mxu0 0.0
  %1566 = vmatpush1.msra.mxu0 %v1479
  %1567 = vmatprep.subr.mxu0 0.0
  %1568 = vmatpush1.msra.mxu0 %v1480
  %1569 = vmatprep.subr.mxu0 0.0
  %1570 = vmatpush1.msra.mxu0 %v1481
  %1571 = vmatprep.subr.mxu0 0.0
  %1572 = vmatpush1.msra.mxu0 0.0
  %1573 = vmatprep.subr.mxu0 0.0
  %1574 = vmatpush1.msra.mxu0 0.0
  %1575 = vmatprep.subr.mxu0 0.0
  %1576 = vmatpush1.msra.mxu0 0.0
  %1577 = vmatprep.subr.mxu0 0.0
  %1578 = vmatpush1.msra.mxu0 0.0
  %1579 = vmatprep.subr.mxu0 0.0
  %1580 = vmatpush1.msra.mxu0 0.0
  %1581 = vmatprep.subr.mxu0 0.0
  %1582 = vmatpush1.msra.mxu0 0.0
  %1583 = vmatprep.subr.mxu0 0.0
  %1584 = vmatpush1.msra.mxu0 0.0
  %1585 = vmatprep.subr.mxu0 0.0
  %1586 = vmatpush1.msra.mxu0 0.0
  %1587 = vmatprep.subr.mxu0 0.0
  %1588 = vmatpush1.msra.mxu0 0.0
  %1589 = vmatprep.subr.mxu0 0.0
  %1590 = vmatpush1.msra.mxu0 0.0
  %1591 = vmatprep.subr.mxu0 0.0
  %1592 = vmatpush1.msra.mxu0 0.0
  %1593 = vmatprep.subr.mxu0 0.0
  %1594 = vmatpush1.msra.mxu0 0.0
  %1595 = vmatprep.subr.mxu0 0.0
  %1596 = vmatpush1.msra.mxu0 0.0
  %1597 = vmatprep.subr.mxu0 0.0
  %1598 = vmatpush1.msra.mxu0 0.0
  %1599 = vmatprep.subr.mxu0 0.0
  %1600 = vmatpush1.msra.mxu0 0.0
  %1601 = vmatprep.subr.mxu0 0.0
  %1602 = vmatpush1.msra.mxu0 0.0
  %1603 = vmatprep.subr.mxu0 0.0
  %1604 = vmatpush1.msra.mxu0 0.0
  %1605 = vmatprep.subr.mxu0 0.0
  %1606 = vmatpush1.msra.mxu0 0.0
  %1607 = vmatprep.subr.mxu0 0.0
  %1608 = vmatpush1.msra.mxu0 0.0
  %1609 = vmatprep.subr.mxu0 0.0
  %1610 = vmatpush1.msra.mxu0 0.0
  %1611 = vmatprep.subr.mxu0 0.0
  %1612 = vmatpush1.msra.mxu0 0.0
  %1613 = vmatprep.subr.mxu0 0.0
  %1614 = vmatpush1.msra.mxu0 0.0
  %1615 = vmatprep.subr.mxu0 0.0
  %1616 = vmatpush1.msra.mxu0 0.0
  %1617 = vmatprep.subr.mxu0 0.0
  %1618 = vmatpush1.msra.mxu0 0.0
  %1619 = vmatprep.subr.mxu0 0.0
  %1620 = vmatpush1.msra.mxu0 0.0
  %1621 = vmatprep.subr.mxu0 0.0
  %1622 = vmatpush1.msra.mxu0 0.0
  %1623 = vmatprep.subr.mxu0 0.0
  %1624 = vmatpush1.msra.mxu0 0.0
  %1625 = vmatprep.subr.mxu0 0.0
  %1626 = vmatpush1.msra.mxu0 0.0
  %1627 = vmatprep.mubr.f32.mxu0 0.0
  %1628 = vmatmul.mubr.f32.gmra.mrb[0].mxu0 %v1561
  %v1629 = vpop.f32.mrb[0].mxu0
  %v1630 = vadd.f32 %v1555, %v1629
  %v1631 = vpop.f32.mrb[0].mxu0
  %1632 = vdwg.mxu0
  %v1633 = vld [vmem:[%s6] sm:$0x1]
  %v1635 = vlaneseq
  %v1636 = vshrl.u32 %v1635, 7
  %v1637 = vsub.s32 0, %v1636
  %v1638 = vrot.slane %v1633, %v1637
  %v1640 = vadd.f32 %v1630, %v1638
  %v1641 = vtanh.pop %v1640
  %v1642 = vxor.u32 %v1640, 2147483648
  %v1643 = vmul.f32 %v1642, 1.442695
  %v1644 = vpow.pop %v1643
  %v1645 = vadd.f32 %v1644, 1.0
  %v1646 = vrcp.pop %v1645
  %v1647 = vmul.f32 1.0, %v1646
  %v1648 = vsel %vm191, %v1641, %v1647
  %v1649 = vmul.f32 %v1648, %v1363
  %1651 = vrot.lane.b32.xlu0 %v1648, 64
  %v1652 = vpop.permute.xlu0 %1651
  %v1654 = vmul.f32 %v1648, %v1652
  %1656 = vrot.lane.b32.xlu0 %v1654, 32
  %v1657 = vpop.permute.xlu0 %1656
  %v1659 = vadd.f32 %v1649, %v1657
  %v1660 = vtanh.pop %v1659
  %1662 = vrot.lane.b32.xlu0 %v1660, 64
  %v1663 = vpop.permute.xlu0 %1662
  %v1665 = vmul.f32 %v1648, %v1663
  %1667 = vrot.lane.b32.xlu0 %v1665, 32
  %v1668 = vpop.permute.xlu0 %1667
  %s1670 = scalar_lea.vmem [#allocation3], 32
  %1671 = vst.msk [vmem:[%s1670] sm:$0xff] %vm197, %v1668
  %s1672 = scalar_lea.vmem [#allocation2], 40
  %v1673 = vld [vmem:[%s1672] sm:$0xff]
  %v1674 = vld [vmem:[%s2] sm:$0xff]
  %v1675 = vld [vmem:[%s2 + $0x8] sm:$0xff]
  %v1676 = vld [vmem:[%s2 + $0x10] sm:$0xff]
  %v1677 = vld [vmem:[%s2 + $0x18] sm:$0xff]
  %1678 = vmatprep.subr.mxu0 0.0
  %1679 = vmatpush1.msra.mxu0 %v1674
  %1680 = vmatprep.subr.mxu0 0.0
  %1681 = vmatpush1.msra.mxu0 %v1675
  %1682 = vmatprep.subr.mxu0 0.0
  %1683 = vmatpush1.msra.mxu0 %v1676
  %1684 = vmatprep.subr.mxu0 0.0
  %1685 = vmatpush1.msra.mxu0 %v1677
  %1686 = vmatprep.subr.mxu0 0.0
  %1687 = vmatpush1.msra.mxu0 0.0
  %1688 = vmatprep.subr.mxu0 0.0
  %1689 = vmatpush1.msra.mxu0 0.0
  %1690 = vmatprep.subr.mxu0 0.0
  %1691 = vmatpush1.msra.mxu0 0.0
  %1692 = vmatprep.subr.mxu0 0.0
  %1693 = vmatpush1.msra.mxu0 0.0
  %1694 = vmatprep.subr.mxu0 0.0
  %1695 = vmatpush1.msra.mxu0 0.0
  %1696 = vmatprep.subr.mxu0 0.0
  %1697 = vmatpush1.msra.mxu0 0.0
  %1698 = vmatprep.subr.mxu0 0.0
  %1699 = vmatpush1.msra.mxu0 0.0
  %1700 = vmatprep.subr.mxu0 0.0
  %1701 = vmatpush1.msra.mxu0 0.0
  %1702 = vmatprep.subr.mxu0 0.0
  %1703 = vmatpush1.msra.mxu0 0.0
  %1704 = vmatprep.subr.mxu0 0.0
  %1705 = vmatpush1.msra.mxu0 0.0
  %1706 = vmatprep.subr.mxu0 0.0
  %1707 = vmatpush1.msra.mxu0 0.0
  %1708 = vmatprep.subr.mxu0 0.0
  %1709 = vmatpush1.msra.mxu0 0.0
  %1710 = vmatprep.subr.mxu0 0.0
  %1711 = vmatpush1.msra.mxu0 0.0
  %1712 = vmatprep.subr.mxu0 0.0
  %1713 = vmatpush1.msra.mxu0 0.0
  %1714 = vmatprep.subr.mxu0 0.0
  %1715 = vmatpush1.msra.mxu0 0.0
  %1716 = vmatprep.subr.mxu0 0.0
  %1717 = vmatpush1.msra.mxu0 0.0
  %1718 = vmatprep.subr.mxu0 0.0
  %1719 = vmatpush1.msra.mxu0 0.0
  %1720 = vmatprep.subr.mxu0 0.0
  %1721 = vmatpush1.msra.mxu0 0.0
  %1722 = vmatprep.subr.mxu0 0.0
  %1723 = vmatpush1.msra.mxu0 0.0
  %1724 = vmatprep.subr.mxu0 0.0
  %1725 = vmatpush1.msra.mxu0 0.0
  %1726 = vmatprep.subr.mxu0 0.0
  %1727 = vmatpush1.msra.mxu0 0.0
  %1728 = vmatprep.subr.mxu0 0.0
  %1729 = vmatpush1.msra.mxu0 0.0
  %1730 = vmatprep.subr.mxu0 0.0
  %1731 = vmatpush1.msra.mxu0 0.0
  %1732 = vmatprep.subr.mxu0 0.0
  %1733 = vmatpush1.msra.mxu0 0.0
  %1734 = vmatprep.subr.mxu0 0.0
  %1735 = vmatpush1.msra.mxu0 0.0
  %1736 = vmatprep.subr.mxu0 0.0
  %1737 = vmatpush1.msra.mxu0 0.0
  %1738 = vmatprep.subr.mxu0 0.0
  %1739 = vmatpush1.msra.mxu0 0.0
  %1740 = vmatprep.subr.mxu0 0.0
  %1741 = vmatpush1.msra.mxu0 0.0
  %1742 = vmatprep.mubr.f32.mxu0 0.0
  %1743 = vmatmul.mubr.f32.gmra.mrb[0].mxu0 %v1561
  %v1744 = vpop.f32.mrb[0].mxu0
  %v1745 = vadd.f32 0.0, %v1744
  %v1746 = vpop.f32.mrb[0].mxu0
  %1747 = vdwg.mxu0
  %v1748 = vadd.f32 %v1673, %v1745
  %v1749 = vtanh.pop %v1748
  %v1750 = vxor.u32 %v1748, 2147483648
  %v1751 = vmul.f32 %v1750, 1.442695
  %v1752 = vpow.pop %v1751
  %v1753 = vadd.f32 %v1752, 1.0
  %v1754 = vrcp.pop %v1753
  %v1755 = vmul.f32 1.0, %v1754
  %v1756 = vsel %vm191, %v1749, %v1755
  %v1757 = vmul.f32 %v1756, %v1471
  %1759 = vrot.lane.b32.xlu0 %v1756, 64
  %v1760 = vpop.permute.xlu0 %1759
  %v1762 = vmul.f32 %v1756, %v1760
  %1764 = vrot.lane.b32.xlu0 %v1762, 32
  %v1765 = vpop.permute.xlu0 %1764
  %v1767 = vadd.f32 %v1757, %v1765
  %v1768 = vtanh.pop %v1767
  %1770 = vrot.lane.b32.xlu0 %v1768, 64
  %v1771 = vpop.permute.xlu0 %1770
  %v1773 = vmul.f32 %v1756, %v1771
  %v1774 = vld [vmem:[%s4] sm:$0xff]
  %v1775 = vld [vmem:[%s4 + $0x8] sm:$0xff]
  %v1776 = vld [vmem:[%s4 + $0x10] sm:$0xff]
  %v1777 = vld [vmem:[%s4 + $0x18] sm:$0xff]
  %v1778 = vld [vmem:[%s5] sm:$0xff]
  %v1779 = vld [vmem:[%s5 + $0x8] sm:$0xff]
  %v1780 = vld [vmem:[%s5 + $0x10] sm:$0xff]
  %v1781 = vld [vmem:[%s5 + $0x18] sm:$0xff]
  %v1782 = vsel %vm197, %v1668, 0
  %1784 = vmatprep.subr.mxu0 0.0
  %1785 = vmatpush1.msra.mxu0 %v1778
  %1786 = vmatprep.subr.mxu0 0.0
  %1787 = vmatpush1.msra.mxu0 %v1779
  %1788 = vmatprep.subr.mxu0 0.0
  %1789 = vmatpush1.msra.mxu0 %v1780
  %1790 = vmatprep.subr.mxu0 0.0
  %1791 = vmatpush1.msra.mxu0 %v1781
  %1792 = vmatprep.subr.mxu0 0.0
  %1793 = vmatpush1.msra.mxu0 0.0
  %1794 = vmatprep.subr.mxu0 0.0
  %1795 = vmatpush1.msra.mxu0 0.0
  %1796 = vmatprep.subr.mxu0 0.0
  %1797 = vmatpush1.msra.mxu0 0.0
  %1798 = vmatprep.subr.mxu0 0.0
  %1799 = vmatpush1.msra.mxu0 0.0
  %1800 = vmatprep.subr.mxu0 0.0
  %1801 = vmatpush1.msra.mxu0 0.0
  %1802 = vmatprep.subr.mxu0 0.0
  %1803 = vmatpush1.msra.mxu0 0.0
  %1804 = vmatprep.subr.mxu0 0.0
  %1805 = vmatpush1.msra.mxu0 0.0
  %1806 = vmatprep.subr.mxu0 0.0
  %1807 = vmatpush1.msra.mxu0 0.0
  %1808 = vmatprep.subr.mxu0 0.0
  %1809 = vmatpush1.msra.mxu0 0.0
  %1810 = vmatprep.subr.mxu0 0.0
  %1811 = vmatpush1.msra.mxu0 0.0
  %1812 = vmatprep.subr.mxu0 0.0
  %1813 = vmatpush1.msra.mxu0 0.0
  %1814 = vmatprep.subr.mxu0 0.0
  %1815 = vmatpush1.msra.mxu0 0.0
  %1816 = vmatprep.subr.mxu0 0.0
  %1817 = vmatpush1.msra.mxu0 0.0
  %1818 = vmatprep.subr.mxu0 0.0
  %1819 = vmatpush1.msra.mxu0 0.0
  %1820 = vmatprep.subr.mxu0 0.0
  %1821 = vmatpush1.msra.mxu0 0.0
  %1822 = vmatprep.subr.mxu0 0.0
  %1823 = vmatpush1.msra.mxu0 0.0
  %1824 = vmatprep.subr.mxu0 0.0
  %1825 = vmatpush1.msra.mxu0 0.0
  %1826 = vmatprep.subr.mxu0 0.0
  %1827 = vmatpush1.msra.mxu0 0.0
  %1828 = vmatprep.subr.mxu0 0.0
  %1829 = vmatpush1.msra.mxu0 0.0
  %1830 = vmatprep.subr.mxu0 0.0
  %1831 = vmatpush1.msra.mxu0 0.0
  %1832 = vmatprep.subr.mxu0 0.0
  %1833 = vmatpush1.msra.mxu0 0.0
  %1834 = vmatprep.subr.mxu0 0.0
  %1835 = vmatpush1.msra.mxu0 0.0
  %1836 = vmatprep.subr.mxu0 0.0
  %1837 = vmatpush1.msra.mxu0 0.0
  %1838 = vmatprep.subr.mxu0 0.0
  %1839 = vmatpush1.msra.mxu0 0.0
  %1840 = vmatprep.subr.mxu0 0.0
  %1841 = vmatpush1.msra.mxu0 0.0
  %1842 = vmatprep.subr.mxu0 0.0
  %1843 = vmatpush1.msra.mxu0 0.0
  %1844 = vmatprep.subr.mxu0 0.0
  %1845 = vmatpush1.msra.mxu0 0.0
  %1846 = vmatprep.subr.mxu0 0.0
  %1847 = vmatpush1.msra.mxu0 0.0
  %1848 = vmatprep.mubr.f32.mxu0 0.0
  %1849 = vmatmul.mubr.f32.gmra.mrb[0].mxu0 %v1782
  %v1850 = vpop.f32.mrb[0].mxu0
  %v1851 = vadd.f32 0.0, %v1850
  %v1852 = vpop.f32.mrb[0].mxu0
  %1853 = vdwg.mxu0
  %1855 = vrot.lane.b32.xlu0 %v1773, 32
  %v1856 = vpop.permute.xlu0 %1855
  %v1857 = vsel %vm197, %v1856, 0
  %1859 = vmatprep.subr.mxu0 0.0
  %1860 = vmatpush1.msra.mxu0 %v1774
  %1861 = vmatprep.subr.mxu0 0.0
  %1862 = vmatpush1.msra.mxu0 %v1775
  %1863 = vmatprep.subr.mxu0 0.0
  %1864 = vmatpush1.msra.mxu0 %v1776
  %1865 = vmatprep.subr.mxu0 0.0
  %1866 = vmatpush1.msra.mxu0 %v1777
  %1867 = vmatprep.subr.mxu0 0.0
  %1868 = vmatpush1.msra.mxu0 0.0
  %1869 = vmatprep.subr.mxu0 0.0
  %1870 = vmatpush1.msra.mxu0 0.0
  %1871 = vmatprep.subr.mxu0 0.0
  %1872 = vmatpush1.msra.mxu0 0.0
  %1873 = vmatprep.subr.mxu0 0.0
  %1874 = vmatpush1.msra.mxu0 0.0
  %1875 = vmatprep.subr.mxu0 0.0
  %1876 = vmatpush1.msra.mxu0 0.0
  %1877 = vmatprep.subr.mxu0 0.0
  %1878 = vmatpush1.msra.mxu0 0.0
  %1879 = vmatprep.subr.mxu0 0.0
  %1880 = vmatpush1.msra.mxu0 0.0
  %1881 = vmatprep.subr.mxu0 0.0
  %1882 = vmatpush1.msra.mxu0 0.0
  %1883 = vmatprep.subr.mxu0 0.0
  %1884 = vmatpush1.msra.mxu0 0.0
  %1885 = vmatprep.subr.mxu0 0.0
  %1886 = vmatpush1.msra.mxu0 0.0
  %1887 = vmatprep.subr.mxu0 0.0
  %1888 = vmatpush1.msra.mxu0 0.0
  %1889 = vmatprep.subr.mxu0 0.0
  %1890 = vmatpush1.msra.mxu0 0.0
  %1891 = vmatprep.subr.mxu0 0.0
  %1892 = vmatpush1.msra.mxu0 0.0
  %1893 = vmatprep.subr.mxu0 0.0
  %1894 = vmatpush1.msra.mxu0 0.0
  %1895 = vmatprep.subr.mxu0 0.0
  %1896 = vmatpush1.msra.mxu0 0.0
  %1897 = vmatprep.subr.mxu0 0.0
  %1898 = vmatpush1.msra.mxu0 0.0
  %1899 = vmatprep.subr.mxu0 0.0
  %1900 = vmatpush1.msra.mxu0 0.0
  %1901 = vmatprep.subr.mxu0 0.0
  %1902 = vmatpush1.msra.mxu0 0.0
  %1903 = vmatprep.subr.mxu0 0.0
  %1904 = vmatpush1.msra.mxu0 0.0
  %1905 = vmatprep.subr.mxu0 0.0
  %1906 = vmatpush1.msra.mxu0 0.0
  %1907 = vmatprep.subr.mxu0 0.0
  %1908 = vmatpush1.msra.mxu0 0.0
  %1909 = vmatprep.subr.mxu0 0.0
  %1910 = vmatpush1.msra.mxu0 0.0
  %1911 = vmatprep.subr.mxu0 0.0
  %1912 = vmatpush1.msra.mxu0 0.0
  %1913 = vmatprep.subr.mxu0 0.0
  %1914 = vmatpush1.msra.mxu0 0.0
  %1915 = vmatprep.subr.mxu0 0.0
  %1916 = vmatpush1.msra.mxu0 0.0
  %1917 = vmatprep.subr.mxu0 0.0
  %1918 = vmatpush1.msra.mxu0 0.0
  %1919 = vmatprep.subr.mxu0 0.0
  %1920 = vmatpush1.msra.mxu0 0.0
  %1921 = vmatprep.subr.mxu0 0.0
  %1922 = vmatpush1.msra.mxu0 0.0
  %1923 = vmatprep.mubr.f32.mxu0 0.0
  %1924 = vmatmul.mubr.f32.gmra.mrb[0].mxu0 %v1857
  %v1925 = vpop.f32.mrb[0].mxu0
  %v1926 = vadd.f32 %v1851, %v1925
  %v1927 = vpop.f32.mrb[0].mxu0
  %1928 = vdwg.mxu0
  %v1929 = vld [vmem:[%s6] sm:$0x1]
  %v1931 = vlaneseq
  %v1932 = vshrl.u32 %v1931, 7
  %v1933 = vsub.s32 0, %v1932
  %v1934 = vrot.slane %v1929, %v1933
  %v1936 = vadd.f32 %v1926, %v1934
  %v1937 = vtanh.pop %v1936
  %v1938 = vxor.u32 %v1936, 2147483648
  %v1939 = vmul.f32 %v1938, 1.442695
  %v1940 = vpow.pop %v1939
  %v1941 = vadd.f32 %v1940, 1.0
  %v1942 = vrcp.pop %v1941
  %v1943 = vmul.f32 1.0, %v1942
  %v1944 = vsel %vm191, %v1937, %v1943
  %v1945 = vmul.f32 %v1944, %v1659
  %1947 = vrot.lane.b32.xlu0 %v1944, 64
  %v1948 = vpop.permute.xlu0 %1947
  %v1950 = vmul.f32 %v1944, %v1948
  %1952 = vrot.lane.b32.xlu0 %v1950, 32
  %v1953 = vpop.permute.xlu0 %1952
  %v1955 = vadd.f32 %v1945, %v1953
  %v1956 = vtanh.pop %v1955
  %1958 = vrot.lane.b32.xlu0 %v1956, 64
  %v1959 = vpop.permute.xlu0 %1958
  %v1961 = vmul.f32 %v1944, %v1959
  %1963 = vrot.lane.b32.xlu0 %v1961, 32
  %v1964 = vpop.permute.xlu0 %1963
  %s1966 = scalar_lea.vmem [#allocation3], 40
  %1967 = vst.msk [vmem:[%s1966] sm:$0xff] %vm197, %v1964
  %s1968 = scalar_lea.vmem [#allocation2], 48
  %v1969 = vld [vmem:[%s1968] sm:$0xff]
  %v1970 = vld [vmem:[%s2] sm:$0xff]
  %v1971 = vld [vmem:[%s2 + $0x8] sm:$0xff]
  %v1972 = vld [vmem:[%s2 + $0x10] sm:$0xff]
  %v1973 = vld [vmem:[%s2 + $0x18] sm:$0xff]
  %1974 = vmatprep.subr.mxu0 0.0
  %1975 = vmatpush1.msra.mxu0 %v1970
  %1976 = vmatprep.subr.mxu0 0.0
  %1977 = vmatpush1.msra.mxu0 %v1971
  %1978 = vmatprep.subr.mxu0 0.0
  %1979 = vmatpush1.msra.mxu0 %v1972
  %1980 = vmatprep.subr.mxu0 0.0
  %1981 = vmatpush1.msra.mxu0 %v1973
  %1982 = vmatprep.subr.mxu0 0.0
  %1983 = vmatpush1.msra.mxu0 0.0
  %1984 = vmatprep.subr.mxu0 0.0
  %1985 = vmatpush1.msra.mxu0 0.0
  %1986 = vmatprep.subr.mxu0 0.0
  %1987 = vmatpush1.msra.mxu0 0.0
  %1988 = vmatprep.subr.mxu0 0.0
  %1989 = vmatpush1.msra.mxu0 0.0
  %1990 = vmatprep.subr.mxu0 0.0
  %1991 = vmatpush1.msra.mxu0 0.0
  %1992 = vmatprep.subr.mxu0 0.0
  %1993 = vmatpush1.msra.mxu0 0.0
  %1994 = vmatprep.subr.mxu0 0.0
  %1995 = vmatpush1.msra.mxu0 0.0
  %1996 = vmatprep.subr.mxu0 0.0
  %1997 = vmatpush1.msra.mxu0 0.0
  %1998 = vmatprep.subr.mxu0 0.0
  %1999 = vmatpush1.msra.mxu0 0.0
  %2000 = vmatprep.subr.mxu0 0.0
  %2001 = vmatpush1.msra.mxu0 0.0
  %2002 = vmatprep.subr.mxu0 0.0
  %2003 = vmatpush1.msra.mxu0 0.0
  %2004 = vmatprep.subr.mxu0 0.0
  %2005 = vmatpush1.msra.mxu0 0.0
  %2006 = vmatprep.subr.mxu0 0.0
  %2007 = vmatpush1.msra.mxu0 0.0
  %2008 = vmatprep.subr.mxu0 0.0
  %2009 = vmatpush1.msra.mxu0 0.0
  %2010 = vmatprep.subr.mxu0 0.0
  %2011 = vmatpush1.msra.mxu0 0.0
  %2012 = vmatprep.subr.mxu0 0.0
  %2013 = vmatpush1.msra.mxu0 0.0
  %2014 = vmatprep.subr.mxu0 0.0
  %2015 = vmatpush1.msra.mxu0 0.0
  %2016 = vmatprep.subr.mxu0 0.0
  %2017 = vmatpush1.msra.mxu0 0.0
  %2018 = vmatprep.subr.mxu0 0.0
  %2019 = vmatpush1.msra.mxu0 0.0
  %2020 = vmatprep.subr.mxu0 0.0
  %2021 = vmatpush1.msra.mxu0 0.0
  %2022 = vmatprep.subr.mxu0 0.0
  %2023 = vmatpush1.msra.mxu0 0.0
  %2024 = vmatprep.subr.mxu0 0.0
  %2025 = vmatpush1.msra.mxu0 0.0
  %2026 = vmatprep.subr.mxu0 0.0
  %2027 = vmatpush1.msra.mxu0 0.0
  %2028 = vmatprep.subr.mxu0 0.0
  %2029 = vmatpush1.msra.mxu0 0.0
  %2030 = vmatprep.subr.mxu0 0.0
  %2031 = vmatpush1.msra.mxu0 0.0
  %2032 = vmatprep.subr.mxu0 0.0
  %2033 = vmatpush1.msra.mxu0 0.0
  %2034 = vmatprep.subr.mxu0 0.0
  %2035 = vmatpush1.msra.mxu0 0.0
  %2036 = vmatprep.subr.mxu0 0.0
  %2037 = vmatpush1.msra.mxu0 0.0
  %2038 = vmatprep.mubr.f32.mxu0 0.0
  %2039 = vmatmul.mubr.f32.gmra.mrb[0].mxu0 %v1857
  %v2040 = vpop.f32.mrb[0].mxu0
  %v2041 = vadd.f32 0.0, %v2040
  %v2042 = vpop.f32.mrb[0].mxu0
  %2043 = vdwg.mxu0
  %v2044 = vadd.f32 %v1969, %v2041
  %v2045 = vtanh.pop %v2044
  %v2046 = vxor.u32 %v2044, 2147483648
  %v2047 = vmul.f32 %v2046, 1.442695
  %v2048 = vpow.pop %v2047
  %v2049 = vadd.f32 %v2048, 1.0
  %v2050 = vrcp.pop %v2049
  %v2051 = vmul.f32 1.0, %v2050
  %v2052 = vsel %vm191, %v2045, %v2051
  %v2053 = vmul.f32 %v2052, %v1767
  %2055 = vrot.lane.b32.xlu0 %v2052, 64
  %v2056 = vpop.permute.xlu0 %2055
  %v2058 = vmul.f32 %v2052, %v2056
  %2060 = vrot.lane.b32.xlu0 %v2058, 32
  %v2061 = vpop.permute.xlu0 %2060
  %v2063 = vadd.f32 %v2053, %v2061
  %v2064 = vtanh.pop %v2063
  %2066 = vrot.lane.b32.xlu0 %v2064, 64
  %v2067 = vpop.permute.xlu0 %2066
  %v2069 = vmul.f32 %v2052, %v2067
  %v2070 = vld [vmem:[%s4] sm:$0xff]
  %v2071 = vld [vmem:[%s4 + $0x8] sm:$0xff]
  %v2072 = vld [vmem:[%s4 + $0x10] sm:$0xff]
  %v2073 = vld [vmem:[%s4 + $0x18] sm:$0xff]
  %v2074 = vld [vmem:[%s5] sm:$0xff]
  %v2075 = vld [vmem:[%s5 + $0x8] sm:$0xff]
  %v2076 = vld [vmem:[%s5 + $0x10] sm:$0xff]
  %v2077 = vld [vmem:[%s5 + $0x18] sm:$0xff]
  %v2078 = vsel %vm197, %v1964, 0
  %2080 = vmatprep.subr.mxu0 0.0
  %2081 = vmatpush1.msra.mxu0 %v2074
  %2082 = vmatprep.subr.mxu0 0.0
  %2083 = vmatpush1.msra.mxu0 %v2075
  %2084 = vmatprep.subr.mxu0 0.0
  %2085 = vmatpush1.msra.mxu0 %v2076
  %2086 = vmatprep.subr.mxu0 0.0
  %2087 = vmatpush1.msra.mxu0 %v2077
  %2088 = vmatprep.subr.mxu0 0.0
  %2089 = vmatpush1.msra.mxu0 0.0
  %2090 = vmatprep.subr.mxu0 0.0
  %2091 = vmatpush1.msra.mxu0 0.0
  %2092 = vmatprep.subr.mxu0 0.0
  %2093 = vmatpush1.msra.mxu0 0.0
  %2094 = vmatprep.subr.mxu0 0.0
  %2095 = vmatpush1.msra.mxu0 0.0
  %2096 = vmatprep.subr.mxu0 0.0
  %2097 = vmatpush1.msra.mxu0 0.0
  %2098 = vmatprep.subr.mxu0 0.0
  %2099 = vmatpush1.msra.mxu0 0.0
  %2100 = vmatprep.subr.mxu0 0.0
  %2101 = vmatpush1.msra.mxu0 0.0
  %2102 = vmatprep.subr.mxu0 0.0
  %2103 = vmatpush1.msra.mxu0 0.0
  %2104 = vmatprep.subr.mxu0 0.0
  %2105 = vmatpush1.msra.mxu0 0.0
  %2106 = vmatprep.subr.mxu0 0.0
  %2107 = vmatpush1.msra.mxu0 0.0
  %2108 = vmatprep.subr.mxu0 0.0
  %2109 = vmatpush1.msra.mxu0 0.0
  %2110 = vmatprep.subr.mxu0 0.0
  %2111 = vmatpush1.msra.mxu0 0.0
  %2112 = vmatprep.subr.mxu0 0.0
  %2113 = vmatpush1.msra.mxu0 0.0
  %2114 = vmatprep.subr.mxu0 0.0
  %2115 = vmatpush1.msra.mxu0 0.0
  %2116 = vmatprep.subr.mxu0 0.0
  %2117 = vmatpush1.msra.mxu0 0.0
  %2118 = vmatprep.subr.mxu0 0.0
  %2119 = vmatpush1.msra.mxu0 0.0
  %2120 = vmatprep.subr.mxu0 0.0
  %2121 = vmatpush1.msra.mxu0 0.0
  %2122 = vmatprep.subr.mxu0 0.0
  %2123 = vmatpush1.msra.mxu0 0.0
  %2124 = vmatprep.subr.mxu0 0.0
  %2125 = vmatpush1.msra.mxu0 0.0
  %2126 = vmatprep.subr.mxu0 0.0
  %2127 = vmatpush1.msra.mxu0 0.0
  %2128 = vmatprep.subr.mxu0 0.0
  %2129 = vmatpush1.msra.mxu0 0.0
  %2130 = vmatprep.subr.mxu0 0.0
  %2131 = vmatpush1.msra.mxu0 0.0
  %2132 = vmatprep.subr.mxu0 0.0
  %2133 = vmatpush1.msra.mxu0 0.0
  %2134 = vmatprep.subr.mxu0 0.0
  %2135 = vmatpush1.msra.mxu0 0.0
  %2136 = vmatprep.subr.mxu0 0.0
  %2137 = vmatpush1.msra.mxu0 0.0
  %2138 = vmatprep.subr.mxu0 0.0
  %2139 = vmatpush1.msra.mxu0 0.0
  %2140 = vmatprep.subr.mxu0 0.0
  %2141 = vmatpush1.msra.mxu0 0.0
  %2142 = vmatprep.subr.mxu0 0.0
  %2143 = vmatpush1.msra.mxu0 0.0
  %2144 = vmatprep.mubr.f32.mxu0 0.0
  %2145 = vmatmul.mubr.f32.gmra.mrb[0].mxu0 %v2078
  %v2146 = vpop.f32.mrb[0].mxu0
  %v2147 = vadd.f32 0.0, %v2146
  %v2148 = vpop.f32.mrb[0].mxu0
  %2149 = vdwg.mxu0
  %2151 = vrot.lane.b32.xlu0 %v2069, 32
  %v2152 = vpop.permute.xlu0 %2151
  %v2153 = vsel %vm197, %v2152, 0
  %2155 = vmatprep.subr.mxu0 0.0
  %2156 = vmatpush1.msra.mxu0 %v2070
  %2157 = vmatprep.subr.mxu0 0.0
  %2158 = vmatpush1.msra.mxu0 %v2071
  %2159 = vmatprep.subr.mxu0 0.0
  %2160 = vmatpush1.msra.mxu0 %v2072
  %2161 = vmatprep.subr.mxu0 0.0
  %2162 = vmatpush1.msra.mxu0 %v2073
  %2163 = vmatprep.subr.mxu0 0.0
  %2164 = vmatpush1.msra.mxu0 0.0
  %2165 = vmatprep.subr.mxu0 0.0
  %2166 = vmatpush1.msra.mxu0 0.0
  %2167 = vmatprep.subr.mxu0 0.0
  %2168 = vmatpush1.msra.mxu0 0.0
  %2169 = vmatprep.subr.mxu0 0.0
  %2170 = vmatpush1.msra.mxu0 0.0
  %2171 = vmatprep.subr.mxu0 0.0
  %2172 = vmatpush1.msra.mxu0 0.0
  %2173 = vmatprep.subr.mxu0 0.0
  %2174 = vmatpush1.msra.mxu0 0.0
  %2175 = vmatprep.subr.mxu0 0.0
  %2176 = vmatpush1.msra.mxu0 0.0
  %2177 = vmatprep.subr.mxu0 0.0
  %2178 = vmatpush1.msra.mxu0 0.0
  %2179 = vmatprep.subr.mxu0 0.0
  %2180 = vmatpush1.msra.mxu0 0.0
  %2181 = vmatprep.subr.mxu0 0.0
  %2182 = vmatpush1.msra.mxu0 0.0
  %2183 = vmatprep.subr.mxu0 0.0
  %2184 = vmatpush1.msra.mxu0 0.0
  %2185 = vmatprep.subr.mxu0 0.0
  %2186 = vmatpush1.msra.mxu0 0.0
  %2187 = vmatprep.subr.mxu0 0.0
  %2188 = vmatpush1.msra.mxu0 0.0
  %2189 = vmatprep.subr.mxu0 0.0
  %2190 = vmatpush1.msra.mxu0 0.0
  %2191 = vmatprep.subr.mxu0 0.0
  %2192 = vmatpush1.msra.mxu0 0.0
  %2193 = vmatprep.subr.mxu0 0.0
  %2194 = vmatpush1.msra.mxu0 0.0
  %2195 = vmatprep.subr.mxu0 0.0
  %2196 = vmatpush1.msra.mxu0 0.0
  %2197 = vmatprep.subr.mxu0 0.0
  %2198 = vmatpush1.msra.mxu0 0.0
  %2199 = vmatprep.subr.mxu0 0.0
  %2200 = vmatpush1.msra.mxu0 0.0
  %2201 = vmatprep.subr.mxu0 0.0
  %2202 = vmatpush1.msra.mxu0 0.0
  %2203 = vmatprep.subr.mxu0 0.0
  %2204 = vmatpush1.msra.mxu0 0.0
  %2205 = vmatprep.subr.mxu0 0.0
  %2206 = vmatpush1.msra.mxu0 0.0
  %2207 = vmatprep.subr.mxu0 0.0
  %2208 = vmatpush1.msra.mxu0 0.0
  %2209 = vmatprep.subr.mxu0 0.0
  %2210 = vmatpush1.msra.mxu0 0.0
  %2211 = vmatprep.subr.mxu0 0.0
  %2212 = vmatpush1.msra.mxu0 0.0
  %2213 = vmatprep.subr.mxu0 0.0
  %2214 = vmatpush1.msra.mxu0 0.0
  %2215 = vmatprep.subr.mxu0 0.0
  %2216 = vmatpush1.msra.mxu0 0.0
  %2217 = vmatprep.subr.mxu0 0.0
  %2218 = vmatpush1.msra.mxu0 0.0
  %2219 = vmatprep.mubr.f32.mxu0 0.0
  %2220 = vmatmul.mubr.f32.gmra.mrb[0].mxu0 %v2153
  %v2221 = vpop.f32.mrb[0].mxu0
  %v2222 = vadd.f32 %v2147, %v2221
  %v2223 = vpop.f32.mrb[0].mxu0
  %2224 = vdwg.mxu0
  %v2225 = vld [vmem:[%s6] sm:$0x1]
  %v2227 = vlaneseq
  %v2228 = vshrl.u32 %v2227, 7
  %v2229 = vsub.s32 0, %v2228
  %v2230 = vrot.slane %v2225, %v2229
  %v2232 = vadd.f32 %v2222, %v2230
  %v2233 = vtanh.pop %v2232
  %v2234 = vxor.u32 %v2232, 2147483648
  %v2235 = vmul.f32 %v2234, 1.442695
  %v2236 = vpow.pop %v2235
  %v2237 = vadd.f32 %v2236, 1.0
  %v2238 = vrcp.pop %v2237
  %v2239 = vmul.f32 1.0, %v2238
  %v2240 = vsel %vm191, %v2233, %v2239
  %v2241 = vmul.f32 %v2240, %v1955
  %2243 = vrot.lane.b32.xlu0 %v2240, 64
  %v2244 = vpop.permute.xlu0 %2243
  %v2246 = vmul.f32 %v2240, %v2244
  %2248 = vrot.lane.b32.xlu0 %v2246, 32
  %v2249 = vpop.permute.xlu0 %2248
  %v2251 = vadd.f32 %v2241, %v2249
  %v2252 = vtanh.pop %v2251
  %2254 = vrot.lane.b32.xlu0 %v2252, 64
  %v2255 = vpop.permute.xlu0 %2254
  %v2257 = vmul.f32 %v2240, %v2255
  %2259 = vrot.lane.b32.xlu0 %v2257, 32
  %v2260 = vpop.permute.xlu0 %2259
  %s2262 = scalar_lea.vmem [#allocation3], 48
  %2263 = vst.msk [vmem:[%s2262] sm:$0xff] %vm197, %v2260
  %s2264 = scalar_lea.vmem [#allocation2], 56
  %v2265 = vld [vmem:[%s2264] sm:$0xff]
  %v2266 = vld [vmem:[%s2] sm:$0xff]
  %v2267 = vld [vmem:[%s2 + $0x8] sm:$0xff]
  %v2268 = vld [vmem:[%s2 + $0x10] sm:$0xff]
  %v2269 = vld [vmem:[%s2 + $0x18] sm:$0xff]
  %2270 = vmatprep.subr.mxu0 0.0
  %2271 = vmatpush1.msra.mxu0 %v2266
  %2272 = vmatprep.subr.mxu0 0.0
  %2273 = vmatpush1.msra.mxu0 %v2267
  %2274 = vmatprep.subr.mxu0 0.0
  %2275 = vmatpush1.msra.mxu0 %v2268
  %2276 = vmatprep.subr.mxu0 0.0
  %2277 = vmatpush1.msra.mxu0 %v2269
  %2278 = vmatprep.subr.mxu0 0.0
  %2279 = vmatpush1.msra.mxu0 0.0
  %2280 = vmatprep.subr.mxu0 0.0
  %2281 = vmatpush1.msra.mxu0 0.0
  %2282 = vmatprep.subr.mxu0 0.0
  %2283 = vmatpush1.msra.mxu0 0.0
  %2284 = vmatprep.subr.mxu0 0.0
  %2285 = vmatpush1.msra.mxu0 0.0
  %2286 = vmatprep.subr.mxu0 0.0
  %2287 = vmatpush1.msra.mxu0 0.0
  %2288 = vmatprep.subr.mxu0 0.0
  %2289 = vmatpush1.msra.mxu0 0.0
  %2290 = vmatprep.subr.mxu0 0.0
  %2291 = vmatpush1.msra.mxu0 0.0
  %2292 = vmatprep.subr.mxu0 0.0
  %2293 = vmatpush1.msra.mxu0 0.0
  %2294 = vmatprep.subr.mxu0 0.0
  %2295 = vmatpush1.msra.mxu0 0.0
  %2296 = vmatprep.subr.mxu0 0.0
  %2297 = vmatpush1.msra.mxu0 0.0
  %2298 = vmatprep.subr.mxu0 0.0
  %2299 = vmatpush1.msra.mxu0 0.0
  %2300 = vmatprep.subr.mxu0 0.0
  %2301 = vmatpush1.msra.mxu0 0.0
  %2302 = vmatprep.subr.mxu0 0.0
  %2303 = vmatpush1.msra.mxu0 0.0
  %2304 = vmatprep.subr.mxu0 0.0
  %2305 = vmatpush1.msra.mxu0 0.0
  %2306 = vmatprep.subr.mxu0 0.0
  %2307 = vmatpush1.msra.mxu0 0.0
  %2308 = vmatprep.subr.mxu0 0.0
  %2309 = vmatpush1.msra.mxu0 0.0
  %2310 = vmatprep.subr.mxu0 0.0
  %2311 = vmatpush1.msra.mxu0 0.0
  %2312 = vmatprep.subr.mxu0 0.0
  %2313 = vmatpush1.msra.mxu0 0.0
  %2314 = vmatprep.subr.mxu0 0.0
  %2315 = vmatpush1.msra.mxu0 0.0
  %2316 = vmatprep.subr.mxu0 0.0
  %2317 = vmatpush1.msra.mxu0 0.0
  %2318 = vmatprep.subr.mxu0 0.0
  %2319 = vmatpush1.msra.mxu0 0.0
  %2320 = vmatprep.subr.mxu0 0.0
  %2321 = vmatpush1.msra.mxu0 0.0
  %2322 = vmatprep.subr.mxu0 0.0
  %2323 = vmatpush1.msra.mxu0 0.0
  %2324 = vmatprep.subr.mxu0 0.0
  %2325 = vmatpush1.msra.mxu0 0.0
  %2326 = vmatprep.subr.mxu0 0.0
  %2327 = vmatpush1.msra.mxu0 0.0
  %2328 = vmatprep.subr.mxu0 0.0
  %2329 = vmatpush1.msra.mxu0 0.0
  %2330 = vmatprep.subr.mxu0 0.0
  %2331 = vmatpush1.msra.mxu0 0.0
  %2332 = vmatprep.subr.mxu0 0.0
  %2333 = vmatpush1.msra.mxu0 0.0
  %2334 = vmatprep.mubr.f32.mxu0 0.0
  %2335 = vmatmul.mubr.f32.gmra.mrb[0].mxu0 %v2153
  %v2336 = vpop.f32.mrb[0].mxu0
  %v2337 = vadd.f32 0.0, %v2336
  %v2338 = vpop.f32.mrb[0].mxu0
  %2339 = vdwg.mxu0
  %v2340 = vadd.f32 %v2265, %v2337
  %v2341 = vtanh.pop %v2340
  %v2342 = vxor.u32 %v2340, 2147483648
  %v2343 = vmul.f32 %v2342, 1.442695
  %v2344 = vpow.pop %v2343
  %v2345 = vadd.f32 %v2344, 1.0
  %v2346 = vrcp.pop %v2345
  %v2347 = vmul.f32 1.0, %v2346
  %v2348 = vsel %vm191, %v2341, %v2347
  %v2349 = vmul.f32 %v2348, %v2063
  %2351 = vrot.lane.b32.xlu0 %v2348, 64
  %v2352 = vpop.permute.xlu0 %2351
  %v2354 = vmul.f32 %v2348, %v2352
  %2356 = vrot.lane.b32.xlu0 %v2354, 32
  %v2357 = vpop.permute.xlu0 %2356
  %v2359 = vadd.f32 %v2349, %v2357
  %v2360 = vtanh.pop %v2359
  %2362 = vrot.lane.b32.xlu0 %v2360, 64
  %v2363 = vpop.permute.xlu0 %2362
  %v2365 = vmul.f32 %v2348, %v2363
  %v2366 = vld [vmem:[%s4] sm:$0xff]
  %v2367 = vld [vmem:[%s4 + $0x8] sm:$0xff]
  %v2368 = vld [vmem:[%s4 + $0x10] sm:$0xff]
  %v2369 = vld [vmem:[%s4 + $0x18] sm:$0xff]
  %v2370 = vld [vmem:[%s5] sm:$0xff]
  %v2371 = vld [vmem:[%s5 + $0x8] sm:$0xff]
  %v2372 = vld [vmem:[%s5 + $0x10] sm:$0xff]
  %v2373 = vld [vmem:[%s5 + $0x18] sm:$0xff]
  %v2374 = vsel %vm197, %v2260, 0
  %2376 = vmatprep.subr.mxu0 0.0
  %2377 = vmatpush1.msra.mxu0 %v2370
  %2378 = vmatprep.subr.mxu0 0.0
  %2379 = vmatpush1.msra.mxu0 %v2371
  %2380 = vmatprep.subr.mxu0 0.0
  %2381 = vmatpush1.msra.mxu0 %v2372
  %2382 = vmatprep.subr.mxu0 0.0
  %2383 = vmatpush1.msra.mxu0 %v2373
  %2384 = vmatprep.subr.mxu0 0.0
  %2385 = vmatpush1.msra.mxu0 0.0
  %2386 = vmatprep.subr.mxu0 0.0
  %2387 = vmatpush1.msra.mxu0 0.0
  %2388 = vmatprep.subr.mxu0 0.0
  %2389 = vmatpush1.msra.mxu0 0.0
  %2390 = vmatprep.subr.mxu0 0.0
  %2391 = vmatpush1.msra.mxu0 0.0
  %2392 = vmatprep.subr.mxu0 0.0
  %2393 = vmatpush1.msra.mxu0 0.0
  %2394 = vmatprep.subr.mxu0 0.0
  %2395 = vmatpush1.msra.mxu0 0.0
  %2396 = vmatprep.subr.mxu0 0.0
  %2397 = vmatpush1.msra.mxu0 0.0
  %2398 = vmatprep.subr.mxu0 0.0
  %2399 = vmatpush1.msra.mxu0 0.0
  %2400 = vmatprep.subr.mxu0 0.0
  %2401 = vmatpush1.msra.mxu0 0.0
  %2402 = vmatprep.subr.mxu0 0.0
  %2403 = vmatpush1.msra.mxu0 0.0
  %2404 = vmatprep.subr.mxu0 0.0
  %2405 = vmatpush1.msra.mxu0 0.0
  %2406 = vmatprep.subr.mxu0 0.0
  %2407 = vmatpush1.msra.mxu0 0.0
  %2408 = vmatprep.subr.mxu0 0.0
  %2409 = vmatpush1.msra.mxu0 0.0
  %2410 = vmatprep.subr.mxu0 0.0
  %2411 = vmatpush1.msra.mxu0 0.0
  %2412 = vmatprep.subr.mxu0 0.0
  %2413 = vmatpush1.msra.mxu0 0.0
  %2414 = vmatprep.subr.mxu0 0.0
  %2415 = vmatpush1.msra.mxu0 0.0
  %2416 = vmatprep.subr.mxu0 0.0
  %2417 = vmatpush1.msra.mxu0 0.0
  %2418 = vmatprep.subr.mxu0 0.0
  %2419 = vmatpush1.msra.mxu0 0.0
  %2420 = vmatprep.subr.mxu0 0.0
  %2421 = vmatpush1.msra.mxu0 0.0
  %2422 = vmatprep.subr.mxu0 0.0
  %2423 = vmatpush1.msra.mxu0 0.0
  %2424 = vmatprep.subr.mxu0 0.0
  %2425 = vmatpush1.msra.mxu0 0.0
  %2426 = vmatprep.subr.mxu0 0.0
  %2427 = vmatpush1.msra.mxu0 0.0
  %2428 = vmatprep.subr.mxu0 0.0
  %2429 = vmatpush1.msra.mxu0 0.0
  %2430 = vmatprep.subr.mxu0 0.0
  %2431 = vmatpush1.msra.mxu0 0.0
  %2432 = vmatprep.subr.mxu0 0.0
  %2433 = vmatpush1.msra.mxu0 0.0
  %2434 = vmatprep.subr.mxu0 0.0
  %2435 = vmatpush1.msra.mxu0 0.0
  %2436 = vmatprep.subr.mxu0 0.0
  %2437 = vmatpush1.msra.mxu0 0.0
  %2438 = vmatprep.subr.mxu0 0.0
  %2439 = vmatpush1.msra.mxu0 0.0
  %2440 = vmatprep.mubr.f32.mxu0 0.0
  %2441 = vmatmul.mubr.f32.gmra.mrb[0].mxu0 %v2374
  %v2442 = vpop.f32.mrb[0].mxu0
  %v2443 = vadd.f32 0.0, %v2442
  %v2444 = vpop.f32.mrb[0].mxu0
  %2445 = vdwg.mxu0
  %2447 = vrot.lane.b32.xlu0 %v2365, 32
  %v2448 = vpop.permute.xlu0 %2447
  %v2449 = vsel %vm197, %v2448, 0
  %2451 = vmatprep.subr.mxu0 0.0
  %2452 = vmatpush1.msra.mxu0 %v2366
  %2453 = vmatprep.subr.mxu0 0.0
  %2454 = vmatpush1.msra.mxu0 %v2367
  %2455 = vmatprep.subr.mxu0 0.0
  %2456 = vmatpush1.msra.mxu0 %v2368
  %2457 = vmatprep.subr.mxu0 0.0
  %2458 = vmatpush1.msra.mxu0 %v2369
  %2459 = vmatprep.subr.mxu0 0.0
  %2460 = vmatpush1.msra.mxu0 0.0
  %2461 = vmatprep.subr.mxu0 0.0
  %2462 = vmatpush1.msra.mxu0 0.0
  %2463 = vmatprep.subr.mxu0 0.0
  %2464 = vmatpush1.msra.mxu0 0.0
  %2465 = vmatprep.subr.mxu0 0.0
  %2466 = vmatpush1.msra.mxu0 0.0
  %2467 = vmatprep.subr.mxu0 0.0
  %2468 = vmatpush1.msra.mxu0 0.0
  %2469 = vmatprep.subr.mxu0 0.0
  %2470 = vmatpush1.msra.mxu0 0.0
  %2471 = vmatprep.subr.mxu0 0.0
  %2472 = vmatpush1.msra.mxu0 0.0
  %2473 = vmatprep.subr.mxu0 0.0
  %2474 = vmatpush1.msra.mxu0 0.0
  %2475 = vmatprep.subr.mxu0 0.0
  %2476 = vmatpush1.msra.mxu0 0.0
  %2477 = vmatprep.subr.mxu0 0.0
  %2478 = vmatpush1.msra.mxu0 0.0
  %2479 = vmatprep.subr.mxu0 0.0
  %2480 = vmatpush1.msra.mxu0 0.0
  %2481 = vmatprep.subr.mxu0 0.0
  %2482 = vmatpush1.msra.mxu0 0.0
  %2483 = vmatprep.subr.mxu0 0.0
  %2484 = vmatpush1.msra.mxu0 0.0
  %2485 = vmatprep.subr.mxu0 0.0
  %2486 = vmatpush1.msra.mxu0 0.0
  %2487 = vmatprep.subr.mxu0 0.0
  %2488 = vmatpush1.msra.mxu0 0.0
  %2489 = vmatprep.subr.mxu0 0.0
  %2490 = vmatpush1.msra.mxu0 0.0
  %2491 = vmatprep.subr.mxu0 0.0
  %2492 = vmatpush1.msra.mxu0 0.0
  %2493 = vmatprep.subr.mxu0 0.0
  %2494 = vmatpush1.msra.mxu0 0.0
  %2495 = vmatprep.subr.mxu0 0.0
  %2496 = vmatpush1.msra.mxu0 0.0
  %2497 = vmatprep.subr.mxu0 0.0
  %2498 = vmatpush1.msra.mxu0 0.0
  %2499 = vmatprep.subr.mxu0 0.0
  %2500 = vmatpush1.msra.mxu0 0.0
  %2501 = vmatprep.subr.mxu0 0.0
  %2502 = vmatpush1.msra.mxu0 0.0
  %2503 = vmatprep.subr.mxu0 0.0
  %2504 = vmatpush1.msra.mxu0 0.0
  %2505 = vmatprep.subr.mxu0 0.0
  %2506 = vmatpush1.msra.mxu0 0.0
  %2507 = vmatprep.subr.mxu0 0.0
  %2508 = vmatpush1.msra.mxu0 0.0
  %2509 = vmatprep.subr.mxu0 0.0
  %2510 = vmatpush1.msra.mxu0 0.0
  %2511 = vmatprep.subr.mxu0 0.0
  %2512 = vmatpush1.msra.mxu0 0.0
  %2513 = vmatprep.subr.mxu0 0.0
  %2514 = vmatpush1.msra.mxu0 0.0
  %2515 = vmatprep.mubr.f32.mxu0 0.0
  %2516 = vmatmul.mubr.f32.gmra.mrb[0].mxu0 %v2449
  %v2517 = vpop.f32.mrb[0].mxu0
  %v2518 = vadd.f32 %v2443, %v2517
  %v2519 = vpop.f32.mrb[0].mxu0
  %2520 = vdwg.mxu0
  %v2521 = vld [vmem:[%s6] sm:$0x1]
  %v2523 = vlaneseq
  %v2524 = vshrl.u32 %v2523, 7
  %v2525 = vsub.s32 0, %v2524
  %v2526 = vrot.slane %v2521, %v2525
  %v2528 = vadd.f32 %v2518, %v2526
  %v2529 = vtanh.pop %v2528
  %v2530 = vxor.u32 %v2528, 2147483648
  %v2531 = vmul.f32 %v2530, 1.442695
  %v2532 = vpow.pop %v2531
  %v2533 = vadd.f32 %v2532, 1.0
  %v2534 = vrcp.pop %v2533
  %v2535 = vmul.f32 1.0, %v2534
  %v2536 = vsel %vm191, %v2529, %v2535
  %v2537 = vmul.f32 %v2536, %v2251
  %2539 = vrot.lane.b32.xlu0 %v2536, 64
  %v2540 = vpop.permute.xlu0 %2539
  %v2542 = vmul.f32 %v2536, %v2540
  %2544 = vrot.lane.b32.xlu0 %v2542, 32
  %v2545 = vpop.permute.xlu0 %2544
  %v2547 = vadd.f32 %v2537, %v2545
  %v2548 = vtanh.pop %v2547
  %2550 = vrot.lane.b32.xlu0 %v2548, 64
  %v2551 = vpop.permute.xlu0 %2550
  %v2553 = vmul.f32 %v2536, %v2551
  %2555 = vrot.lane.b32.xlu0 %v2553, 32
  %v2556 = vpop.permute.xlu0 %2555
  %s2558 = scalar_lea.vmem [#allocation3], 56
  %2559 = vst.msk [vmem:[%s2558] sm:$0xff] %vm197, %v2556
  %v2560 = vld [vmem:[#allocation3] sm:$0xff]
  %v2561 = vld [vmem:[#allocation3 + $0x8] sm:$0xff]
  %v2562 = vld [vmem:[#allocation3 + $0x10] sm:$0xff]
  %v2563 = vld [vmem:[#allocation3 + $0x18] sm:$0xff]
  %v2564 = vld [vmem:[#allocation3 + $0x20] sm:$0xff]
  %v2565 = vld [vmem:[#allocation3 + $0x28] sm:$0xff]
  %v2566 = vld [vmem:[#allocation3 + $0x30] sm:$0xff]
  %v2567 = vld [vmem:[#allocation3 + $0x38] sm:$0xff]
  %v2568 = vld [vmem:[%s7] sm:$0xff]
  %v2569 = vld [vmem:[%s7 + $0x8] sm:$0xff]
  %v2570 = vld [vmem:[%s7 + $0x10] sm:$0xff]
  %v2571 = vld [vmem:[%s7 + $0x18] sm:$0xff]
  %v2572 = vld [vmem:[%s8] sm:$0x1]
  %v2574 = vlaneseq
  %v2575 = vshrl.u32 %v2574, 7
  %v2576 = vsub.s32 0, %v2575
  %v2577 = vrot.slane %v2572, %v2576
  %v2580 = vsel %vm197, %v2560, 0
  %v2583 = vsel %vm197, %v2561, 0
  %v2586 = vsel %vm197, %v2562, 0
  %v2589 = vsel %vm197, %v2563, 0
  %v2592 = vsel %vm197, %v2564, 0
  %v2595 = vsel %vm197, %v2565, 0
  %v2598 = vsel %vm197, %v2566, 0
  %v2601 = vsel %vm197, %v2567, 0
  %2603 = vmatprep.subr.mxu0 0.0
  %2604 = vmatpush1.msra.mxu0 %v2568
  %2605 = vmatprep.subr.mxu0 0.0
  %2606 = vmatpush1.msra.mxu0 %v2569
  %2607 = vmatprep.subr.mxu0 0.0
  %2608 = vmatpush1.msra.mxu0 %v2570
  %2609 = vmatprep.subr.mxu0 0.0
  %2610 = vmatpush1.msra.mxu0 %v2571
  %2611 = vmatprep.subr.mxu0 0.0
  %2612 = vmatpush1.msra.mxu0 0.0
  %2613 = vmatprep.subr.mxu0 0.0
  %2614 = vmatpush1.msra.mxu0 0.0
  %2615 = vmatprep.subr.mxu0 0.0
  %2616 = vmatpush1.msra.mxu0 0.0
  %2617 = vmatprep.subr.mxu0 0.0
  %2618 = vmatpush1.msra.mxu0 0.0
  %2619 = vmatprep.subr.mxu0 0.0
  %2620 = vmatpush1.msra.mxu0 0.0
  %2621 = vmatprep.subr.mxu0 0.0
  %2622 = vmatpush1.msra.mxu0 0.0
  %2623 = vmatprep.subr.mxu0 0.0
  %2624 = vmatpush1.msra.mxu0 0.0
  %2625 = vmatprep.subr.mxu0 0.0
  %2626 = vmatpush1.msra.mxu0 0.0
  %2627 = vmatprep.subr.mxu0 0.0
  %2628 = vmatpush1.msra.mxu0 0.0
  %2629 = vmatprep.subr.mxu0 0.0
  %2630 = vmatpush1.msra.mxu0 0.0
  %2631 = vmatprep.subr.mxu0 0.0
  %2632 = vmatpush1.msra.mxu0 0.0
  %2633 = vmatprep.subr.mxu0 0.0
  %2634 = vmatpush1.msra.mxu0 0.0
  %2635 = vmatprep.subr.mxu0 0.0
  %2636 = vmatpush1.msra.mxu0 0.0
  %2637 = vmatprep.subr.mxu0 0.0
  %2638 = vmatpush1.msra.mxu0 0.0
  %2639 = vmatprep.subr.mxu0 0.0
  %2640 = vmatpush1.msra.mxu0 0.0
  %2641 = vmatprep.subr.mxu0 0.0
  %2642 = vmatpush1.msra.mxu0 0.0
  %2643 = vmatprep.subr.mxu0 0.0
  %2644 = vmatpush1.msra.mxu0 0.0
  %2645 = vmatprep.subr.mxu0 0.0
  %2646 = vmatpush1.msra.mxu0 0.0
  %2647 = vmatprep.subr.mxu0 0.0
  %2648 = vmatpush1.msra.mxu0 0.0
  %2649 = vmatprep.subr.mxu0 0.0
  %2650 = vmatpush1.msra.mxu0 0.0
  %2651 = vmatprep.subr.mxu0 0.0
  %2652 = vmatpush1.msra.mxu0 0.0
  %2653 = vmatprep.subr.mxu0 0.0
  %2654 = vmatpush1.msra.mxu0 0.0
  %2655 = vmatprep.subr.mxu0 0.0
  %2656 = vmatpush1.msra.mxu0 0.0
  %2657 = vmatprep.subr.mxu0 0.0
  %2658 = vmatpush1.msra.mxu0 0.0
  %2659 = vmatprep.subr.mxu0 0.0
  %2660 = vmatpush1.msra.mxu0 0.0
  %2661 = vmatprep.subr.mxu0 0.0
  %2662 = vmatpush1.msra.mxu0 0.0
  %2663 = vmatprep.subr.mxu0 0.0
  %2664 = vmatpush1.msra.mxu0 0.0
  %2665 = vmatprep.subr.mxu0 0.0
  %2666 = vmatpush1.msra.mxu0 0.0
  %2667 = vmatprep.mubr.f32.mxu0 0.0
  %2668 = vmatmul.mubr.f32.gmra.mrb[0].mxu0 %v2580
  %v2669 = vpop.f32.mrb[0].mxu0
  %v2670 = vadd.f32 %v2577, %v2669
  %v2671 = vpop.f32.mrb[0].mxu0
  %2672 = vmatprep.mubr.f32.mxu0 0.0
  %2673 = vmatmul.mubr.f32.gmra.mrb[0].mxu0 %v2583
  %v2674 = vpop.f32.mrb[0].mxu0
  %v2675 = vadd.f32 %v2577, %v2674
  %v2676 = vpop.f32.mrb[0].mxu0
  %2677 = vmatprep.mubr.f32.mxu0 0.0
  %2678 = vmatmul.mubr.f32.gmra.mrb[0].mxu0 %v2586
  %v2679 = vpop.f32.mrb[0].mxu0
  %v2680 = vadd.f32 %v2577, %v2679
  %v2681 = vpop.f32.mrb[0].mxu0
  %2682 = vmatprep.mubr.f32.mxu0 0.0
  %2683 = vmatmul.mubr.f32.gmra.mrb[0].mxu0 %v2589
  %v2684 = vpop.f32.mrb[0].mxu0
  %v2685 = vadd.f32 %v2577, %v2684
  %v2686 = vpop.f32.mrb[0].mxu0
  %2687 = vmatprep.mubr.f32.mxu0 0.0
  %2688 = vmatmul.mubr.f32.gmra.mrb[0].mxu0 %v2592
  %v2689 = vpop.f32.mrb[0].mxu0
  %v2690 = vadd.f32 %v2577, %v2689
  %v2691 = vpop.f32.mrb[0].mxu0
  %2692 = vmatprep.mubr.f32.mxu0 0.0
  %2693 = vmatmul.mubr.f32.gmra.mrb[0].mxu0 %v2595
  %v2694 = vpop.f32.mrb[0].mxu0
  %v2695 = vadd.f32 %v2577, %v2694
  %v2696 = vpop.f32.mrb[0].mxu0
  %2697 = vmatprep.mubr.f32.mxu0 0.0
  %2698 = vmatmul.mubr.f32.gmra.mrb[0].mxu0 %v2598
  %v2699 = vpop.f32.mrb[0].mxu0
  %v2700 = vadd.f32 %v2577, %v2699
  %v2701 = vpop.f32.mrb[0].mxu0
  %2702 = vmatprep.mubr.f32.mxu0 0.0
  %2703 = vmatmul.mubr.f32.gmra.mrb[0].mxu0 %v2601
  %v2704 = vpop.f32.mrb[0].mxu0
  %v2705 = vadd.f32 %v2577, %v2704
  %v2706 = vpop.f32.mrb[0].mxu0
  %2707 = vdwg.mxu0
  %2708 = vst [vmem:[%s9] sm:$0xff] %v2670
  %2709 = vst [vmem:[%s9 + $0x8] sm:$0xff] %v2675
  %2710 = vst [vmem:[%s9 + $0x10] sm:$0xff] %v2680
  %2711 = vst [vmem:[%s9 + $0x18] sm:$0xff] %v2685
  %2712 = vst [vmem:[%s9 + $0x20] sm:$0xff] %v2690
  %2713 = vst [vmem:[%s9 + $0x28] sm:$0xff] %v2695
  %2714 = vst [vmem:[%s9 + $0x30] sm:$0xff] %v2700
  %2715 = vst [vmem:[%s9 + $0x38] sm:$0xff] %v2705
  // Predicated region
  $region38: #{simple_lstm_forward.1} parent=0 // pred_check
    _
  $region39: #{simple_lstm_forward.1} parent=0 // pred_check_branch
    %2717 = sbr.rel (0) target = $region41
  $region40: #{simple_lstm_forward.1} parent=0 // pred_region
    _
  $region41: #{simple_lstm_forward.1} parent=0 // pred_fallthru
    _
  // Predicated region
  $region42: #{simple_lstm_forward.1} parent=0 // pred_check
    _
  $region43: #{simple_lstm_forward.1} parent=0 // pred_check_branch
    %2719 = sbr.rel (0) target = $region45
  $region44: #{simple_lstm_forward.1} parent=0 // pred_region
    _
  $region45: #{simple_lstm_forward.1} parent=0 // pred_fallthru
    _

</llo_original>
